<compile_context>
chip_gen: v7x
topology: tpu7x:2x2x1
jax: 0.10.0
libtpu: 0.0.40
codegen_flags: <defaults>
</compile_context>

<pallas_src>
import functools

import jax
import jax.numpy as jnp
from jax import lax
from jax.experimental import pallas as pl
from jax.experimental.pallas import tpu as pltpu


CPAD = 128  # lane-dense channel padding for activations / weights / outputs


# ---------------------------------------------------------------------------
# Pallas kernel: reparameterized RepVGG block = matmul + bias + ReLU
# ---------------------------------------------------------------------------
def _block_kernel(p_ref, w_ref, b_ref, o_ref):
    acc = jnp.dot(p_ref[...], w_ref[...], preferred_element_type=jnp.float32)
    o_ref[...] = jnp.maximum(acc + b_ref[...], 0.0).astype(o_ref.dtype)


def _round_up(x, m):
    return ((x + m - 1) // m) * m


def _fused_conv_matmul(p, w, b):
    """out[m, 128] = relu(p @ w + b); p/w bf16, accumulate f32, store bf16."""
    m, k = p.shape
    cout = w.shape[1]

    # Single shot if tiny, otherwise two row tiles so v7x megacore can split.
    if m >= 32:
        ntiles = 2
        mp = _round_up(m, 32)
    else:
        ntiles = 1
        mp = _round_up(m, 16)
    tm = mp // ntiles
    if mp != m:
        p = jnp.pad(p, ((0, mp - m), (0, 0)))

    out = pl.pallas_call(
        _block_kernel,
        out_shape=jax.ShapeDtypeStruct((mp, cout), jnp.bfloat16),
        grid=(ntiles,),
        in_specs=[
            pl.BlockSpec((tm, k), lambda i: (i, 0)),      # patches (bf16)
            pl.BlockSpec((k, cout), lambda i: (0, 0)),    # folded weight (bf16)
            pl.BlockSpec((1, cout), lambda i: (0, 0)),    # folded bias (f32)
        ],
        out_specs=pl.BlockSpec((tm, cout), lambda i: (i, 0)),
        compiler_params=pltpu.CompilerParams(
            dimension_semantics=("parallel",)),
    )(p, w, b)
    return out[:m]


# ---------------------------------------------------------------------------
# Per-block glue: im2col patch extraction (XLA) + Pallas kernel call
# ---------------------------------------------------------------------------
def repvgg_block_apply(x, params):
    """x: (N, H, W, CPAD) bf16, zero in padded channels.  Returns same layout."""
    n, h, w, cp = x.shape
    s = params["stride"]
    ho = (h + 2 - 3) // s + 1
    wo = (w + 2 - 3) // s + 1

    # im2col for the single reparameterized 3x3 / pad=1 / stride=s conv.
    xpad = jnp.pad(x, ((0, 0), (1, 1), (1, 1), (0, 0)))
    patches = []
    for kh in range(3):
        for kw in range(3):
            patches.append(
                lax.slice(
                    xpad,
                    (0, kh, kw, 0),
                    (n, kh + s * (ho - 1) + 1, kw + s * (wo - 1) + 1, cp),
                    (1, s, s, 1),
                ))
    p = jnp.concatenate(patches, axis=-1).reshape(n * ho * wo, 9 * cp)

    out = _fused_conv_matmul(p, params["w"], params["b"])
    return out.reshape(n, ho, wo, cp)


# ---------------------------------------------------------------------------
# Parameter construction (deterministic) with BN folded and branches
# reparameterized into a single 3x3 weight + bias (eval semantics).
# ---------------------------------------------------------------------------
def _bn_params(key, c):
    k1, k2, k3, k4 = jax.random.split(key, 4)
    gamma = jax.random.uniform(k1, (c,), jnp.float32, 0.5, 1.5)
    beta = 0.1 * jax.random.normal(k2, (c,), jnp.float32)
    mean = 0.1 * jax.random.normal(k3, (c,), jnp.float32)
    var = jax.random.uniform(k4, (c,), jnp.float32, 0.5, 1.5)
    return gamma, beta, mean, var


def make_block_params(key, cin, cout, stride, eps=1e-5):
    k_w3, k_bn3, k_w1, k_bn1, k_bnid = jax.random.split(key, 5)

    # 3x3 conv + BN (fused with running stats).
    w3 = 0.1 * jax.random.normal(k_w3, (cout, cin, 3, 3), jnp.float32)
    g, be, mu, va = _bn_params(k_bn3, cout)
    s3 = g / jnp.sqrt(va + eps)
    w3f = w3 * s3[:, None, None, None]
    b3 = be - mu * s3

    # 1x1 conv + BN (fused).
    w1 = 0.1 * jax.random.normal(k_w1, (cout, cin, 1, 1), jnp.float32)
    g, be, mu, va = _bn_params(k_bn1, cout)
    s1 = g / jnp.sqrt(va + eps)
    w1f = w1 * s1[:, None, None, None]
    b1 = be - mu * s1

    # Reparameterize: 1x1 folds exactly into the 3x3 center tap.
    w_rep = w3f.at[:, :, 1, 1].add(w1f[:, :, 0, 0])
    b_rep = b3 + b1

    # Identity BN branch (cin == cout, stride == 1) folds as a diagonal
    # added to the center tap.
    id_scale = None
    id_shift = None
    if cin == cout and stride == 1:
        g, be, mu, va = _bn_params(k_bnid, cin)
        sid = g / jnp.sqrt(va + eps)
        id_scale = sid
        id_shift = be - mu * sid
        w_rep = w_rep.at[jnp.arange(cout), jnp.arange(cin), 1, 1].add(sid)
        b_rep = b_rep + id_shift

    # Pad channels to CPAD (lane-dense), lay out for the im2col matmul:
    # rows ordered (kh, kw, cin_pad), cols = cout_pad.
    w_pad = jnp.pad(w_rep, ((0, CPAD - cout), (0, CPAD - cin), (0, 0), (0, 0)))
    w_mat = jnp.transpose(w_pad, (2, 3, 1, 0)).reshape(9 * CPAD, CPAD)
    b_pad = jnp.pad(b_rep, (0, CPAD - cout))

    return {
        "stride": stride,
        "cin": cin,
        "cout": cout,
        "w": w_mat.astype(jnp.bfloat16),
        "b": b_pad.reshape(1, CPAD).astype(jnp.float32),
        # f32 multi-branch parameters for the pure-XLA reference path.
        "ref": {"w3": w3f, "b3": b3, "w1": w1f, "b1": b1,
                "id_scale": id_scale, "id_shift": id_shift},
    }


def build_repvgg(key, width_multiplier, num_block):
    in_planes = min(64, int(64 * width_multiplier[0]))

    def stage_cfg(cin, cout, n):
        strides = [2] + [1] * (n - 1)
        cfg = []
        for s in strides:
            cfg.append((cin, cout, s))
            cin = cout
        return cfg

    stage_cfgs = [
        [(3, in_planes, 2)],                                                 # stage0
        stage_cfg(in_planes, int(64 * width_multiplier[0]), num_block[0]),   # stage1
        stage_cfg(int(64 * width_multiplier[0]),
                  int(128 * width_multiplier[1]), num_block[1]),             # stage2
        stage_cfg(int(128 * width_multiplier[1]),
                  int(256 * width_multiplier[2]), num_block[2]),             # stage3
        stage_cfg(int(256 * width_multiplier[2]),
                  int(512 * width_multiplier[3]), num_block[3]),             # stage4
    ]

    n_blocks = sum(len(c) for c in stage_cfgs)
    keys = iter(jax.random.split(key, n_blocks))
    stages = []
    for cfg in stage_cfgs:
        stages.append([make_block_params(next(keys), ci, co, s)
                       for (ci, co, s) in cfg])
    return stages


def repvgg_forward(x_nchw, stages):
    """x_nchw: (N, 3, H, W) float32 -> dict of stage outputs, NCHW float32."""
    x = jnp.transpose(x_nchw, (0, 2, 3, 1))                       # NCHW -> NHWC
    x = jnp.pad(x, ((0, 0), (0, 0), (0, 0), (0, CPAD - x.shape[-1])))
    x = x.astype(jnp.bfloat16)
    result = {}
    for si, stage in enumerate(stages):
        for blk in stage:
            x = repvgg_block_apply(x, blk)
        cout = stage[-1]["cout"]
        result[str(si)] = jnp.transpose(
            x[..., :cout], (0, 3, 1, 2)).astype(jnp.float32)       # NHWC -> NCHW
    return result


# ---------------------------------------------------------------------------
# Pure-XLA f32 multi-branch reference (validates reparam fold + kernel)
# ---------------------------------------------------------------------------
def _ref_block(x, params):
    s = params["stride"]
    r = params["ref"]
    dn = ("NCHW", "OIHW", "NCHW")
    y = lax.conv_general_dilated(x, r["w3"], (s, s), ((1, 1), (1, 1)),
                                 dimension_numbers=dn)
    y = y + r["b3"].reshape(1, -1, 1, 1)
    y1 = lax.conv_general_dilated(x, r["w1"], (s, s), ((0, 0), (0, 0)),
                                  dimension_numbers=dn)
    y = y + y1 + r["b1"].reshape(1, -1, 1, 1)
    if r["id_scale"] is not None:
        y = (y + x * r["id_scale"].reshape(1, -1, 1, 1)
             + r["id_shift"].reshape(1, -1, 1, 1))
    return jnp.maximum(y, 0.0)


def ref_forward(x_nchw, stages):
    x = x_nchw
    result = {}
    for si, stage in enumerate(stages):
        for blk in stage:
            x = _ref_block(x, blk)
        result[str(si)] = x
    return result


# ---------------------------------------------------------------------------
if __name__ == "__main__":
    key = jax.random.PRNGKey(0)
    k_params, k_x = jax.random.split(key)

    # Small RepVGG: width 0.25 everywhere, blocks [2,1,1,1]
    # channels: 3 -> 16 -> 16 -> 32 -> 64 -> 128, spatial 32 -> 16 -> 8 -> 4 -> 2 -> 1
    stages = build_repvgg(k_params, [0.25, 0.25, 0.25, 0.25], [2, 1, 1, 1])

    x = jax.random.normal(k_x, (2, 3, 32, 32), jnp.float32)  # NCHW input

    fwd = jax.jit(functools.partial(repvgg_forward, stages=stages))
    out = jax.block_until_ready(fwd(x))

    ref_fn = jax.jit(functools.partial(ref_forward, stages=stages))
    ref = jax.block_until_ready(ref_fn(x))

    expected_shapes = {
        "0": (2, 16, 16, 16),
        "1": (2, 16, 8, 8),
        "2": (2, 32, 4, 4),
        "3": (2, 64, 2, 2),
        "4": (2, 128, 1, 1),
    }
    for k_name, shp in expected_shapes.items():
        o = out[k_name]
        r = ref[k_name]
        assert o.shape == shp, (k_name, o.shape, shp)
        assert bool(jnp.all(jnp.isfinite(o)))
        err = float(jnp.linalg.norm(o - r) / (jnp.linalg.norm(r) + 1e-6))
        assert err < 0.05, (k_name, err)   # bf16-operand matmul tolerance

    print("KERNEL_OK")
</pallas_src>

<mosaic_0001>
module attributes {stable_mosaic.version = 11 : i64} {
  func.func @_block_kernel(%arg0: i32, %arg1: memref<256x1152xbf16, #tpu.memory_space<vmem>>, %arg2: memref<1152x128xbf16, #tpu.memory_space<vmem>>, %arg3: memref<1x128xf32, #tpu.memory_space<vmem>>, %arg4: memref<256x128xbf16, #tpu.memory_space<vmem>>) attributes {dimension_semantics = [#tpu.dimension_semantics<parallel>], iteration_bounds = array<i64: 2>, scalar_prefetch = 0 : i64, scratch_operands = 0 : i64, tpu.core_type = #tpu.core_type<tc>, window_params = [{transform_indices = @transform_0, window_bounds = array<i64: 256, 1152>}, {pipeline_mode = #tpu.pipeline_mode<synchronous>, transform_indices = @transform_1, window_bounds = array<i64: 1152, 128>}, {pipeline_mode = #tpu.pipeline_mode<synchronous>, transform_indices = @transform_2, window_bounds = array<i64: 1, 128>}, {transform_indices = @transform_3, window_bounds = array<i64: 256, 128>}]} {
    %c0 = arith.constant 0 : index
    %c0_0 = arith.constant 0 : index
    %0 = vector.load %arg1[%c0, %c0_0] : memref<256x1152xbf16, #tpu.memory_space<vmem>>, vector<256x1152xbf16>
    %c0_1 = arith.constant 0 : index
    %c0_2 = arith.constant 0 : index
    %1 = vector.load %arg2[%c0_1, %c0_2] : memref<1152x128xbf16, #tpu.memory_space<vmem>>, vector<1152x128xbf16>
    %cst = arith.constant dense<0.000000e+00> : vector<256x128xf32>
    %2 = tpu.matmul %0, %1, %cst {dimension_numbers = #tpu.dot_dimension_numbers<[1], [0], [0], [1], [0, 0, 1, 1], [], []>} : vector<256x1152xbf16>, vector<1152x128xbf16>, vector<256x128xf32> -> vector<256x128xf32>
    %c0_3 = arith.constant 0 : index
    %c0_4 = arith.constant 0 : index
    %3 = vector.load %arg3[%c0_3, %c0_4] : memref<1x128xf32, #tpu.memory_space<vmem>>, vector<1x128xf32>
    %4 = vector.broadcast %3 : vector<1x128xf32> to vector<256x128xf32>
    %5 = arith.addf %2, %4 : vector<256x128xf32>
    %cst_5 = arith.constant 0.000000e+00 : f32
    %6 = vector.broadcast %cst_5 : f32 to vector<256x128xf32>
    %7 = arith.maximumf %5, %6 : vector<256x128xf32>
    %8 = arith.truncf %7 : vector<256x128xf32> to vector<256x128xbf16>
    %c0_6 = arith.constant 0 : index
    %c0_7 = arith.constant 0 : index
    %9 = vector.load %arg4[%c0_6, %c0_7] : memref<256x128xbf16, #tpu.memory_space<vmem>>, vector<256x128xbf16>
    tpu.vector_store %arg4[%c0_6, %c0_7], %8 {strides = array<i32>} : memref<256x128xbf16, #tpu.memory_space<vmem>>, vector<256x128xbf16>,
    return
  }
  func.func @transform_0(%arg0: i32) -> (i32, i32) {
    %c0_i32 = arith.constant 0 : i32
    %c0_i32_0 = arith.constant 0 : i32
    return %arg0, %c0_i32 : i32, i32
  }
  func.func @transform_1(%arg0: i32) -> (i32, i32) {
    %c0_i32 = arith.constant 0 : i32
    %c0_i32_0 = arith.constant 0 : i32
    %c0_i32_1 = arith.constant 0 : i32
    return %c0_i32, %c0_i32_0 : i32, i32
  }
  func.func @transform_2(%arg0: i32) -> (i32, i32) {
    %c0_i32 = arith.constant 0 : i32
    %c0_i32_0 = arith.constant 0 : i32
    %c0_i32_1 = arith.constant 0 : i32
    return %c0_i32, %c0_i32_0 : i32, i32
  }
  func.func @transform_3(%arg0: i32) -> (i32, i32) {
    %c0_i32 = arith.constant 0 : i32
    %c0_i32_0 = arith.constant 0 : i32
    return %arg0, %c0_i32 : i32, i32
  }
}

module attributes {stable_mosaic.version = 11 : i64} {
  func.func @_block_kernel(%arg0: i32, %arg1: memref<64x1152xbf16, #tpu.memory_space<vmem>>, %arg2: memref<1152x128xbf16, #tpu.memory_space<vmem>>, %arg3: memref<1x128xf32, #tpu.memory_space<vmem>>, %arg4: memref<64x128xbf16, #tpu.memory_space<vmem>>) attributes {dimension_semantics = [#tpu.dimension_semantics<parallel>], iteration_bounds = array<i64: 2>, scalar_prefetch = 0 : i64, scratch_operands = 0 : i64, tpu.core_type = #tpu.core_type<tc>, window_params = [{transform_indices = @transform_0, window_bounds = array<i64: 64, 1152>}, {pipeline_mode = #tpu.pipeline_mode<synchronous>, transform_indices = @transform_1, window_bounds = array<i64: 1152, 128>}, {pipeline_mode = #tpu.pipeline_mode<synchronous>, transform_indices = @transform_2, window_bounds = array<i64: 1, 128>}, {transform_indices = @transform_3, window_bounds = array<i64: 64, 128>}]} {
    %c0 = arith.constant 0 : index
    %c0_0 = arith.constant 0 : index
    %0 = vector.load %arg1[%c0, %c0_0] : memref<64x1152xbf16, #tpu.memory_space<vmem>>, vector<64x1152xbf16>
    %c0_1 = arith.constant 0 : index
    %c0_2 = arith.constant 0 : index
    %1 = vector.load %arg2[%c0_1, %c0_2] : memref<1152x128xbf16, #tpu.memory_space<vmem>>, vector<1152x128xbf16>
    %cst = arith.constant dense<0.000000e+00> : vector<64x128xf32>
    %2 = tpu.matmul %0, %1, %cst {dimension_numbers = #tpu.dot_dimension_numbers<[1], [0], [0], [1], [0, 0, 1, 1], [], []>} : vector<64x1152xbf16>, vector<1152x128xbf16>, vector<64x128xf32> -> vector<64x128xf32>
    %c0_3 = arith.constant 0 : index
    %c0_4 = arith.constant 0 : index
    %3 = vector.load %arg3[%c0_3, %c0_4] : memref<1x128xf32, #tpu.memory_space<vmem>>, vector<1x128xf32>
    %4 = vector.broadcast %3 : vector<1x128xf32> to vector<64x128xf32>
    %5 = arith.addf %2, %4 : vector<64x128xf32>
    %cst_5 = arith.constant 0.000000e+00 : f32
    %6 = vector.broadcast %cst_5 : f32 to vector<64x128xf32>
    %7 = arith.maximumf %5, %6 : vector<64x128xf32>
    %8 = arith.truncf %7 : vector<64x128xf32> to vector<64x128xbf16>
    %c0_6 = arith.constant 0 : index
    %c0_7 = arith.constant 0 : index
    %9 = vector.load %arg4[%c0_6, %c0_7] : memref<64x128xbf16, #tpu.memory_space<vmem>>, vector<64x128xbf16>
    tpu.vector_store %arg4[%c0_6, %c0_7], %8 {strides = array<i32>} : memref<64x128xbf16, #tpu.memory_space<vmem>>, vector<64x128xbf16>,
    return
  }
  func.func @transform_0(%arg0: i32) -> (i32, i32) {
    %c0_i32 = arith.constant 0 : i32
    %c0_i32_0 = arith.constant 0 : i32
    return %arg0, %c0_i32 : i32, i32
  }
  func.func @transform_1(%arg0: i32) -> (i32, i32) {
    %c0_i32 = arith.constant 0 : i32
    %c0_i32_0 = arith.constant 0 : i32
    %c0_i32_1 = arith.constant 0 : i32
    return %c0_i32, %c0_i32_0 : i32, i32
  }
  func.func @transform_2(%arg0: i32) -> (i32, i32) {
    %c0_i32 = arith.constant 0 : i32
    %c0_i32_0 = arith.constant 0 : i32
    %c0_i32_1 = arith.constant 0 : i32
    return %c0_i32, %c0_i32_0 : i32, i32
  }
  func.func @transform_3(%arg0: i32) -> (i32, i32) {
    %c0_i32 = arith.constant 0 : i32
    %c0_i32_0 = arith.constant 0 : i32
    return %arg0, %c0_i32 : i32, i32
  }
}

module attributes {stable_mosaic.version = 11 : i64} {
  func.func @_block_kernel(%arg0: i32, %arg1: memref<16x1152xbf16, #tpu.memory_space<vmem>>, %arg2: memref<1152x128xbf16, #tpu.memory_space<vmem>>, %arg3: memref<1x128xf32, #tpu.memory_space<vmem>>, %arg4: memref<16x128xbf16, #tpu.memory_space<vmem>>) attributes {dimension_semantics = [#tpu.dimension_semantics<parallel>], iteration_bounds = array<i64: 2>, scalar_prefetch = 0 : i64, scratch_operands = 0 : i64, tpu.core_type = #tpu.core_type<tc>, window_params = [{transform_indices = @transform_0, window_bounds = array<i64: 16, 1152>}, {pipeline_mode = #tpu.pipeline_mode<synchronous>, transform_indices = @transform_1, window_bounds = array<i64: 1152, 128>}, {pipeline_mode = #tpu.pipeline_mode<synchronous>, transform_indices = @transform_2, window_bounds = array<i64: 1, 128>}, {transform_indices = @transform_3, window_bounds = array<i64: 16, 128>}]} {
    %c0 = arith.constant 0 : index
    %c0_0 = arith.constant 0 : index
    %0 = vector.load %arg1[%c0, %c0_0] : memref<16x1152xbf16, #tpu.memory_space<vmem>>, vector<16x1152xbf16>
    %c0_1 = arith.constant 0 : index
    %c0_2 = arith.constant 0 : index
    %1 = vector.load %arg2[%c0_1, %c0_2] : memref<1152x128xbf16, #tpu.memory_space<vmem>>, vector<1152x128xbf16>
    %cst = arith.constant dense<0.000000e+00> : vector<16x128xf32>
    %2 = tpu.matmul %0, %1, %cst {dimension_numbers = #tpu.dot_dimension_numbers<[1], [0], [0], [1], [0, 0, 1, 1], [], []>} : vector<16x1152xbf16>, vector<1152x128xbf16>, vector<16x128xf32> -> vector<16x128xf32>
    %c0_3 = arith.constant 0 : index
    %c0_4 = arith.constant 0 : index
    %3 = vector.load %arg3[%c0_3, %c0_4] : memref<1x128xf32, #tpu.memory_space<vmem>>, vector<1x128xf32>
    %4 = vector.broadcast %3 : vector<1x128xf32> to vector<16x128xf32>
    %5 = arith.addf %2, %4 : vector<16x128xf32>
    %cst_5 = arith.constant 0.000000e+00 : f32
    %6 = vector.broadcast %cst_5 : f32 to vector<16x128xf32>
    %7 = arith.maximumf %5, %6 : vector<16x128xf32>
    %8 = arith.truncf %7 : vector<16x128xf32> to vector<16x128xbf16>
    %c0_6 = arith.constant 0 : index
    %c0_7 = arith.constant 0 : index
    %9 = vector.load %arg4[%c0_6, %c0_7] : memref<16x128xbf16, #tpu.memory_space<vmem>>, vector<16x128xbf16>
    tpu.vector_store %arg4[%c0_6, %c0_7], %8 {strides = array<i32>} : memref<16x128xbf16, #tpu.memory_space<vmem>>, vector<16x128xbf16>,
    return
  }
  func.func @transform_0(%arg0: i32) -> (i32, i32) {
    %c0_i32 = arith.constant 0 : i32
    %c0_i32_0 = arith.constant 0 : i32
    return %arg0, %c0_i32 : i32, i32
  }
  func.func @transform_1(%arg0: i32) -> (i32, i32) {
    %c0_i32 = arith.constant 0 : i32
    %c0_i32_0 = arith.constant 0 : i32
    %c0_i32_1 = arith.constant 0 : i32
    return %c0_i32, %c0_i32_0 : i32, i32
  }
  func.func @transform_2(%arg0: i32) -> (i32, i32) {
    %c0_i32 = arith.constant 0 : i32
    %c0_i32_0 = arith.constant 0 : i32
    %c0_i32_1 = arith.constant 0 : i32
    return %c0_i32, %c0_i32_0 : i32, i32
  }
  func.func @transform_3(%arg0: i32) -> (i32, i32) {
    %c0_i32 = arith.constant 0 : i32
    %c0_i32_0 = arith.constant 0 : i32
    return %arg0, %c0_i32 : i32, i32
  }
}

module attributes {stable_mosaic.version = 11 : i64} {
  func.func @_block_kernel(%arg0: i32, %arg1: memref<16x1152xbf16, #tpu.memory_space<vmem>>, %arg2: memref<1152x128xbf16, #tpu.memory_space<vmem>>, %arg3: memref<1x128xf32, #tpu.memory_space<vmem>>, %arg4: memref<16x128xbf16, #tpu.memory_space<vmem>>) attributes {dimension_semantics = [#tpu.dimension_semantics<parallel>], iteration_bounds = array<i64: 1>, scalar_prefetch = 0 : i64, scratch_operands = 0 : i64, tpu.core_type = #tpu.core_type<tc>, window_params = [{transform_indices = @transform_0, window_bounds = array<i64: 16, 1152>}, {pipeline_mode = #tpu.pipeline_mode<synchronous>, transform_indices = @transform_1, window_bounds = array<i64: 1152, 128>}, {pipeline_mode = #tpu.pipeline_mode<synchronous>, transform_indices = @transform_2, window_bounds = array<i64: 1, 128>}, {transform_indices = @transform_3, window_bounds = array<i64: 16, 128>}]} {
    %c0 = arith.constant 0 : index
    %c0_0 = arith.constant 0 : index
    %0 = vector.load %arg1[%c0, %c0_0] : memref<16x1152xbf16, #tpu.memory_space<vmem>>, vector<16x1152xbf16>
    %c0_1 = arith.constant 0 : index
    %c0_2 = arith.constant 0 : index
    %1 = vector.load %arg2[%c0_1, %c0_2] : memref<1152x128xbf16, #tpu.memory_space<vmem>>, vector<1152x128xbf16>
    %cst = arith.constant dense<0.000000e+00> : vector<16x128xf32>
    %2 = tpu.matmul %0, %1, %cst {dimension_numbers = #tpu.dot_dimension_numbers<[1], [0], [0], [1], [0, 0, 1, 1], [], []>} : vector<16x1152xbf16>, vector<1152x128xbf16>, vector<16x128xf32> -> vector<16x128xf32>
    %c0_3 = arith.constant 0 : index
    %c0_4 = arith.constant 0 : index
    %3 = vector.load %arg3[%c0_3, %c0_4] : memref<1x128xf32, #tpu.memory_space<vmem>>, vector<1x128xf32>
    %4 = vector.broadcast %3 : vector<1x128xf32> to vector<16x128xf32>
    %5 = arith.addf %2, %4 : vector<16x128xf32>
    %cst_5 = arith.constant 0.000000e+00 : f32
    %6 = vector.broadcast %cst_5 : f32 to vector<16x128xf32>
    %7 = arith.maximumf %5, %6 : vector<16x128xf32>
    %8 = arith.truncf %7 : vector<16x128xf32> to vector<16x128xbf16>
    %c0_6 = arith.constant 0 : index
    %c0_7 = arith.constant 0 : index
    %9 = vector.load %arg4[%c0_6, %c0_7] : memref<16x128xbf16, #tpu.memory_space<vmem>>, vector<16x128xbf16>
    tpu.vector_store %arg4[%c0_6, %c0_7], %8 {strides = array<i32>} : memref<16x128xbf16, #tpu.memory_space<vmem>>, vector<16x128xbf16>,
    return
  }
  func.func @transform_0(%arg0: i32) -> (i32, i32) {
    %c0_i32 = arith.constant 0 : i32
    %c0_i32_0 = arith.constant 0 : i32
    return %arg0, %c0_i32 : i32, i32
  }
  func.func @transform_1(%arg0: i32) -> (i32, i32) {
    %c0_i32 = arith.constant 0 : i32
    %c0_i32_0 = arith.constant 0 : i32
    %c0_i32_1 = arith.constant 0 : i32
    return %c0_i32, %c0_i32_0 : i32, i32
  }
  func.func @transform_2(%arg0: i32) -> (i32, i32) {
    %c0_i32 = arith.constant 0 : i32
    %c0_i32_0 = arith.constant 0 : i32
    %c0_i32_1 = arith.constant 0 : i32
    return %c0_i32, %c0_i32_0 : i32, i32
  }
  func.func @transform_3(%arg0: i32) -> (i32, i32) {
    %c0_i32 = arith.constant 0 : i32
    %c0_i32_0 = arith.constant 0 : i32
    return %arg0, %c0_i32 : i32, i32
  }
}

</mosaic_0001>

<llo_original>
// kernel: repvgg_forward.7
$region0: #{repvgg_forward.7}
  #allocation0 [shape = 'u32[]', space=smem, size = 0x4, offset = 0x4, fixed_abs, tag = 'smem constant byte address 0x4 - core index']
  #allocation1 [shape = 'u32[144,128]{1,0:T(1,128)}', space=vmem, size = 0x12000, scoped, tag = 'internal scratch']
  %s0 = inlined_call_operand.vmem [shape: bf16[128,1152], index: 0, kind: input, shape index: {}]
  %s1 = inlined_call_operand.vmem [shape: bf16[1152,128], index: 1, kind: input, shape index: {}]
  %s2 = inlined_call_operand.vmem [shape: f32[1,128], index: 2, kind: input, shape index: {}]
  %s3 = inlined_call_operand.vmem [shape: bf16[128,128], index: 3, kind: output, shape index: {}]
  %s4 = sld [smem:[#allocation0]]
  $region45: #{repvgg_forward.7} parent=0
    _
  %s6 = ssub.s32 1, %s4
  %s7 = scalar_select 0, %s6, %s4
  loop: start=0, step=1, limit=4
  $region2: #{repvgg_forward.7} parent=0 // loop_pre_header
    _
  $region3: #{repvgg_forward.7} parent=0 // loop_header
    %s9 = sphi 0, %s13
    %p10 = scmp.ge.s32.totalorder %s9, 4
    %s19 = sphi 0, %s21
    %s22 = sphi 0, %s19
    %s23 = sphi 0, %s22
    %s39 = sphi 0, %s23
    %s43 = sphi 0, %s43
    %s45 = sphi 0, %s43
    %s46 = sphi 0, %s45
    %s60 = sphi 0, %s46
    %s64 = sphi 0, %s64
    %s66 = sphi 0, %s64
    %s67 = sphi 0, %s66
    %s81 = sphi 0, %s67
    %s87 = sphi 0, %s89
    %s90 = sphi 0, %s87
    %s91 = sphi 0, %s90
    %s107 = sphi 0, %s91
  $region4: #{repvgg_forward.7} parent=0 // loop_header_branch
    %12 = sbr.rel (%p10) target = $region8
  $region5: #{repvgg_forward.7} parent=0 // loop_body
    %s14 = ssub.s32 %s9, 1
    %s15 = ssub.s32 %s9, 2
    %s16 = sadd.s32 %s9, 1
    %s17 = ssub.s32 %s9, %s16
    %p18 = scmp.eq.s32.totalorder %s17, 0
    %s20 = sadd.s32 %s19, 1
    %s21 = scalar_select %p18, %s19, %s20
    %p24 = pneg %p18
    %p25 = scmp.eq.s32.totalorder %s9, 1
    %p26 = por %p24, %p25
    %p27 = scmp.ne.s32.totalorder %s19, %s22
    %p28 = scmp.eq.s32.totalorder %s9, 0
    %p29 = por %p27, %p28
    %p30 = scmp.ne.s32.totalorder %s19, %s22
    %p31 = scmp.eq.s32.totalorder %s14, 1
    %p32 = por %p30, %p31
    %p33 = scmp.ne.s32.totalorder %s22, %s23
    %p34 = scmp.eq.s32.totalorder %s14, 0
    %p35 = por %p33, %p34
    %p36 = scmp.ne.s32.totalorder %s22, %s23
    %p37 = scmp.eq.s32.totalorder %s15, 1
    %p38 = por %p36, %p37
    %p40 = scmp.ne.s32.totalorder %s23, %s39
    %p41 = scmp.eq.s32.totalorder %s15, 0
    %p42 = por %p40, %p41
    %s44 = sadd.s32 %s43, 1
    %p47 = scmp.eq.s32.totalorder %s9, 1
    %p48 = scmp.ne.s32.totalorder %s43, %s45
    %p49 = scmp.eq.s32.totalorder %s9, 0
    %p50 = por %p48, %p49
    %p51 = scmp.ne.s32.totalorder %s43, %s45
    %p52 = scmp.eq.s32.totalorder %s14, 1
    %p53 = por %p51, %p52
    %p54 = scmp.ne.s32.totalorder %s45, %s46
    %p55 = scmp.eq.s32.totalorder %s14, 0
    %p56 = por %p54, %p55
    %p57 = scmp.ne.s32.totalorder %s45, %s46
    %p58 = scmp.eq.s32.totalorder %s15, 1
    %p59 = por %p57, %p58
    %p61 = scmp.ne.s32.totalorder %s46, %s60
    %p62 = scmp.eq.s32.totalorder %s15, 0
    %p63 = por %p61, %p62
    %s65 = sadd.s32 %s64, 1
    %p68 = scmp.eq.s32.totalorder %s9, 1
    %p69 = scmp.ne.s32.totalorder %s64, %s66
    %p70 = scmp.eq.s32.totalorder %s9, 0
    %p71 = por %p69, %p70
    %p72 = scmp.ne.s32.totalorder %s64, %s66
    %p73 = scmp.eq.s32.totalorder %s14, 1
    %p74 = por %p72, %p73
    %p75 = scmp.ne.s32.totalorder %s66, %s67
    %p76 = scmp.eq.s32.totalorder %s14, 0
    %p77 = por %p75, %p76
    %p78 = scmp.ne.s32.totalorder %s66, %s67
    %p79 = scmp.eq.s32.totalorder %s15, 1
    %p80 = por %p78, %p79
    %p82 = scmp.ne.s32.totalorder %s67, %s81
    %p83 = scmp.eq.s32.totalorder %s15, 0
    %p84 = por %p82, %p83
    %s85 = ssub.s32 %s9, %s16
    %p86 = scmp.eq.s32.totalorder %s85, 0
    %s88 = sadd.s32 %s87, 1
    %s89 = scalar_select %p86, %s87, %s88
    %p92 = pneg %p86
    %p93 = scmp.eq.s32.totalorder %s9, 1
    %p94 = por %p92, %p93
    %p95 = scmp.ne.s32.totalorder %s87, %s90
    %p96 = scmp.eq.s32.totalorder %s9, 0
    %p97 = por %p95, %p96
    %p98 = scmp.ne.s32.totalorder %s87, %s90
    %p99 = scmp.eq.s32.totalorder %s14, 1
    %p100 = por %p98, %p99
    %p101 = scmp.ne.s32.totalorder %s90, %s91
    %p102 = scmp.eq.s32.totalorder %s14, 0
    %p103 = por %p101, %p102
    %p104 = scmp.ne.s32.totalorder %s90, %s91
    %p105 = scmp.eq.s32.totalorder %s15, 1
    %p106 = por %p104, %p105
    %p108 = scmp.ne.s32.totalorder %s91, %s107
    %p109 = scmp.eq.s32.totalorder %s15, 0
    %p110 = por %p108, %p109
    %p111 = scmp.le.s32.totalorder 1, %s9
    %p112 = scmp.lt.s32.totalorder %s9, 3
    %p113 = pnand %p111, %p112
    %p114 = pneg %p113
    // Predicated region
    $region9: #{repvgg_forward.7} parent=5 // pred_check
      _
    $region10: #{repvgg_forward.7} parent=5 // pred_check_branch
      %116 = sbr.rel (%p113) target = $region12
    $region11: #{repvgg_forward.7} parent=5 // pred_region
      %s117 = ssub.s32 %s9, 1
      // Predicated region
      $region13: #{repvgg_forward.7} parent=11 // pred_check
        %p118 = pneg %p56
      $region14: #{repvgg_forward.7} parent=11 // pred_check_branch
        %120 = sbr.rel (%p118) target = $region16
      $region15: #{repvgg_forward.7} parent=11 // pred_region
        _
      $region16: #{repvgg_forward.7} parent=11 // pred_fallthru
        _
      // Predicated region
      $region17: #{repvgg_forward.7} parent=11 // pred_check
        %p121 = pneg %p77
      $region18: #{repvgg_forward.7} parent=11 // pred_check_branch
        %123 = sbr.rel (%p121) target = $region20
      $region19: #{repvgg_forward.7} parent=11 // pred_region
        _
      $region20: #{repvgg_forward.7} parent=11 // pred_fallthru
        _
    $region12: #{repvgg_forward.7} parent=5 // pred_fallthru
      _
    %p124 = scmp.lt.s32.totalorder %s9, 2
    // Predicated region
    $region21: #{repvgg_forward.7} parent=5 // pred_check
      %p125 = pneg %p124
    $region22: #{repvgg_forward.7} parent=5 // pred_check_branch
      %127 = sbr.rel (%p125) target = $region24
    $region23: #{repvgg_forward.7} parent=5 // pred_region
      // Predicated region
      $region25: #{repvgg_forward.7} parent=23 // pred_check
        %p128 = pneg %p29
      $region26: #{repvgg_forward.7} parent=23 // pred_check_branch
        %130 = sbr.rel (%p128) target = $region28
      $region27: #{repvgg_forward.7} parent=23 // pred_region
        %s131 = smul.u32 8, %s9
        %p132 = scmp.lt.s32.totalorder %s131, 15
        %s133 = scalar_select %p132, %s131, 15
        %s134 = smul.addr %s133, 9
        %s135 = smul.addr %s134, 4
        %s136 = scalar_lea.vmem %s0, %s135
        %s137 = smul.u32 8, %s9
      $region28: #{repvgg_forward.7} parent=23 // pred_fallthru
        _
    $region24: #{repvgg_forward.7} parent=5 // pred_fallthru
      _
    %p138 = scmp.le.s32.totalorder 1, %s9
    %p139 = scmp.lt.s32.totalorder %s9, 3
    %p140 = pnand %p138, %p139
    %p141 = pneg %p140
    // Predicated region
    $region29: #{repvgg_forward.7} parent=5 // pred_check
      _
    $region30: #{repvgg_forward.7} parent=5 // pred_check_branch
      %143 = sbr.rel (%p140) target = $region32
    $region31: #{repvgg_forward.7} parent=5 // pred_region
      %s144 = ssub.s32 %s9, 1
      %s145 = smul.u32 8, %s14
      %p146 = scmp.lt.s32.totalorder %s145, 15
      %s147 = scalar_select %p146, %s145, 15
      %s148 = smul.addr %s147, 9
      %s149 = smul.addr %s148, 4
      %s150 = scalar_lea.vmem %s0, %s149
      %p151 = pneg %p35
      %p152 = pneg %p32
      %p153 = pneg %p56
      %p154 = pneg %p53
      %p155 = pneg %p77
      %p156 = pneg %p74
      %p157 = pneg %p103
      %p158 = pneg %p100
      %s159 = smul.u32 8, %s14
      %p160 = scmp.lt.s32.totalorder %s159, 15
      %s161 = scalar_select %p160, %s159, 15
      %s162 = smul.addr %s161, 4
      %s163 = scalar_lea.vmem %s3, %s162
      %s164 = smul.u32 8, %s14
      %p165 = scmp.lt.s32.totalorder %s164, 15
      %s166 = scalar_select %p165, %s164, 15
      %s167 = smul.addr %s166, 9
      %s168 = smul.addr %s167, 4
      %s169 = scalar_lea.vmem %s0, %s168
      %s170 = smul.u32 8, %s14
      %s171 = smul.u32 8, %s14
      %p172 = scmp.lt.s32.totalorder %s171, 15
      %s173 = scalar_select %p172, %s171, 15
      %s174 = smul.addr %s173, 4
      %s175 = scalar_lea.vmem %s3, %s174
      %s176 = smul.u32 8, %s14
      %v178 = vld [vmem:[%s169] sm:$0xff]
      %v179 = vld [vmem:[%s169 + $0x8] sm:$0xff]
      %v180 = vld [vmem:[%s169 + $0x10] sm:$0xff]
      %v181 = vld [vmem:[%s169 + $0x18] sm:$0xff]
      %v182 = vld [vmem:[%s169 + $0x20] sm:$0xf]
      %v183 = vld [vmem:[%s169 + $0x24] sm:$0xff]
      %v184 = vld [vmem:[%s169 + $0x2c] sm:$0xff]
      %v185 = vld [vmem:[%s169 + $0x34] sm:$0xff]
      %v186 = vld [vmem:[%s169 + $0x3c] sm:$0xff]
      %v187 = vld [vmem:[%s169 + $0x44] sm:$0xf]
      %v188 = vld [vmem:[%s169 + $0x48] sm:$0xff]
      %v189 = vld [vmem:[%s169 + $0x50] sm:$0xff]
      %v190 = vld [vmem:[%s169 + $0x58] sm:$0xff]
      %v191 = vld [vmem:[%s169 + $0x60] sm:$0xff]
      %v192 = vld [vmem:[%s169 + $0x68] sm:$0xf]
      %v193 = vld [vmem:[%s169 + $0x6c] sm:$0xff]
      %v194 = vld [vmem:[%s169 + $0x74] sm:$0xff]
      %v195 = vld [vmem:[%s169 + $0x7c] sm:$0xff]
      %v196 = vld [vmem:[%s169 + $0x84] sm:$0xff]
      %v197 = vld [vmem:[%s169 + $0x8c] sm:$0xf]
      %v198 = vld [vmem:[%s169 + $0x90] sm:$0xff]
      %v199 = vld [vmem:[%s169 + $0x98] sm:$0xff]
      %v200 = vld [vmem:[%s169 + $0xa0] sm:$0xff]
      %v201 = vld [vmem:[%s169 + $0xa8] sm:$0xff]
      %v202 = vld [vmem:[%s169 + $0xb0] sm:$0xf]
      %v203 = vld [vmem:[%s169 + $0xb4] sm:$0xff]
      %v204 = vld [vmem:[%s169 + $0xbc] sm:$0xff]
      %v205 = vld [vmem:[%s169 + $0xc4] sm:$0xff]
      %v206 = vld [vmem:[%s169 + $0xcc] sm:$0xff]
      %v207 = vld [vmem:[%s169 + $0xd4] sm:$0xf]
      %v208 = vld [vmem:[%s169 + $0xd8] sm:$0xff]
      %v209 = vld [vmem:[%s169 + $0xe0] sm:$0xff]
      %v210 = vld [vmem:[%s169 + $0xe8] sm:$0xff]
      %v211 = vld [vmem:[%s169 + $0xf0] sm:$0xff]
      %v212 = vld [vmem:[%s169 + $0xf8] sm:$0xf]
      %v213 = vld [vmem:[%s169 + $0xfc] sm:$0xff]
      %v214 = vld [vmem:[%s169 + $0x104] sm:$0xff]
      %v215 = vld [vmem:[%s169 + $0x10c] sm:$0xff]
      %v216 = vld [vmem:[%s169 + $0x114] sm:$0xff]
      %v217 = vld [vmem:[%s169 + $0x11c] sm:$0xf]
      %v218 = vld [vmem:[%s1] sm:$0xf]
      %v219 = vld [vmem:[%s1 + $0x4] sm:$0xf]
      %v220 = vld [vmem:[%s1 + $0x8] sm:$0xf]
      %v221 = vld [vmem:[%s1 + $0xc] sm:$0xf]
      %v222 = vld [vmem:[%s1 + $0x10] sm:$0xf]
      %v223 = vld [vmem:[%s1 + $0x14] sm:$0xf]
      %v224 = vld [vmem:[%s1 + $0x18] sm:$0xf]
      %v225 = vld [vmem:[%s1 + $0x1c] sm:$0xf]
      %v226 = vld [vmem:[%s1 + $0x20] sm:$0xf]
      %v227 = vld [vmem:[%s1 + $0x24] sm:$0xf]
      %v228 = vld [vmem:[%s1 + $0x28] sm:$0xf]
      %v229 = vld [vmem:[%s1 + $0x2c] sm:$0xf]
      %v230 = vld [vmem:[%s1 + $0x30] sm:$0xf]
      %v231 = vld [vmem:[%s1 + $0x34] sm:$0xf]
      %v232 = vld [vmem:[%s1 + $0x38] sm:$0xf]
      %v233 = vld [vmem:[%s1 + $0x3c] sm:$0xf]
      %v234 = vld [vmem:[%s1 + $0x40] sm:$0xf]
      %v235 = vld [vmem:[%s1 + $0x44] sm:$0xf]
      %v236 = vld [vmem:[%s1 + $0x48] sm:$0xf]
      %v237 = vld [vmem:[%s1 + $0x4c] sm:$0xf]
      %v238 = vld [vmem:[%s1 + $0x50] sm:$0xf]
      %v239 = vld [vmem:[%s1 + $0x54] sm:$0xf]
      %v240 = vld [vmem:[%s1 + $0x58] sm:$0xf]
      %v241 = vld [vmem:[%s1 + $0x5c] sm:$0xf]
      %v242 = vld [vmem:[%s1 + $0x60] sm:$0xf]
      %v243 = vld [vmem:[%s1 + $0x64] sm:$0xf]
      %v244 = vld [vmem:[%s1 + $0x68] sm:$0xf]
      %v245 = vld [vmem:[%s1 + $0x6c] sm:$0xf]
      %v246 = vld [vmem:[%s1 + $0x70] sm:$0xf]
      %v247 = vld [vmem:[%s1 + $0x74] sm:$0xf]
      %v248 = vld [vmem:[%s1 + $0x78] sm:$0xf]
      %v249 = vld [vmem:[%s1 + $0x7c] sm:$0xf]
      %v250 = vld [vmem:[%s1 + $0x80] sm:$0xf]
      %v251 = vld [vmem:[%s1 + $0x84] sm:$0xf]
      %v252 = vld [vmem:[%s1 + $0x88] sm:$0xf]
      %v253 = vld [vmem:[%s1 + $0x8c] sm:$0xf]
      %v254 = vld [vmem:[%s1 + $0x90] sm:$0xf]
      %v255 = vld [vmem:[%s1 + $0x94] sm:$0xf]
      %v256 = vld [vmem:[%s1 + $0x98] sm:$0xf]
      %v257 = vld [vmem:[%s1 + $0x9c] sm:$0xf]
      %v258 = vld [vmem:[%s1 + $0xa0] sm:$0xf]
      %v259 = vld [vmem:[%s1 + $0xa4] sm:$0xf]
      %v260 = vld [vmem:[%s1 + $0xa8] sm:$0xf]
      %v261 = vld [vmem:[%s1 + $0xac] sm:$0xf]
      %v262 = vld [vmem:[%s1 + $0xb0] sm:$0xf]
      %v263 = vld [vmem:[%s1 + $0xb4] sm:$0xf]
      %v264 = vld [vmem:[%s1 + $0xb8] sm:$0xf]
      %v265 = vld [vmem:[%s1 + $0xbc] sm:$0xf]
      %v266 = vld [vmem:[%s1 + $0xc0] sm:$0xf]
      %v267 = vld [vmem:[%s1 + $0xc4] sm:$0xf]
      %v268 = vld [vmem:[%s1 + $0xc8] sm:$0xf]
      %v269 = vld [vmem:[%s1 + $0xcc] sm:$0xf]
      %v270 = vld [vmem:[%s1 + $0xd0] sm:$0xf]
      %v271 = vld [vmem:[%s1 + $0xd4] sm:$0xf]
      %v272 = vld [vmem:[%s1 + $0xd8] sm:$0xf]
      %v273 = vld [vmem:[%s1 + $0xdc] sm:$0xf]
      %v274 = vld [vmem:[%s1 + $0xe0] sm:$0xf]
      %v275 = vld [vmem:[%s1 + $0xe4] sm:$0xf]
      %v276 = vld [vmem:[%s1 + $0xe8] sm:$0xf]
      %v277 = vld [vmem:[%s1 + $0xec] sm:$0xf]
      %v278 = vld [vmem:[%s1 + $0xf0] sm:$0xf]
      %v279 = vld [vmem:[%s1 + $0xf4] sm:$0xf]
      %v280 = vld [vmem:[%s1 + $0xf8] sm:$0xf]
      %v281 = vld [vmem:[%s1 + $0xfc] sm:$0xf]
      %v282 = vld [vmem:[%s1 + $0x100] sm:$0xf]
      %v283 = vld [vmem:[%s1 + $0x104] sm:$0xf]
      %v284 = vld [vmem:[%s1 + $0x108] sm:$0xf]
      %v285 = vld [vmem:[%s1 + $0x10c] sm:$0xf]
      %v286 = vld [vmem:[%s1 + $0x110] sm:$0xf]
      %v287 = vld [vmem:[%s1 + $0x114] sm:$0xf]
      %v288 = vld [vmem:[%s1 + $0x118] sm:$0xf]
      %v289 = vld [vmem:[%s1 + $0x11c] sm:$0xf]
      %v290 = vld [vmem:[%s1 + $0x120] sm:$0xf]
      %v291 = vld [vmem:[%s1 + $0x124] sm:$0xf]
      %v292 = vld [vmem:[%s1 + $0x128] sm:$0xf]
      %v293 = vld [vmem:[%s1 + $0x12c] sm:$0xf]
      %v294 = vld [vmem:[%s1 + $0x130] sm:$0xf]
      %v295 = vld [vmem:[%s1 + $0x134] sm:$0xf]
      %v296 = vld [vmem:[%s1 + $0x138] sm:$0xf]
      %v297 = vld [vmem:[%s1 + $0x13c] sm:$0xf]
      %v298 = vld [vmem:[%s1 + $0x140] sm:$0xf]
      %v299 = vld [vmem:[%s1 + $0x144] sm:$0xf]
      %v300 = vld [vmem:[%s1 + $0x148] sm:$0xf]
      %v301 = vld [vmem:[%s1 + $0x14c] sm:$0xf]
      %v302 = vld [vmem:[%s1 + $0x150] sm:$0xf]
      %v303 = vld [vmem:[%s1 + $0x154] sm:$0xf]
      %v304 = vld [vmem:[%s1 + $0x158] sm:$0xf]
      %v305 = vld [vmem:[%s1 + $0x15c] sm:$0xf]
      %v306 = vld [vmem:[%s1 + $0x160] sm:$0xf]
      %v307 = vld [vmem:[%s1 + $0x164] sm:$0xf]
      %v308 = vld [vmem:[%s1 + $0x168] sm:$0xf]
      %v309 = vld [vmem:[%s1 + $0x16c] sm:$0xf]
      %v310 = vld [vmem:[%s1 + $0x170] sm:$0xf]
      %v311 = vld [vmem:[%s1 + $0x174] sm:$0xf]
      %v312 = vld [vmem:[%s1 + $0x178] sm:$0xf]
      %v313 = vld [vmem:[%s1 + $0x17c] sm:$0xf]
      %v314 = vld [vmem:[%s1 + $0x180] sm:$0xf]
      %v315 = vld [vmem:[%s1 + $0x184] sm:$0xf]
      %v316 = vld [vmem:[%s1 + $0x188] sm:$0xf]
      %v317 = vld [vmem:[%s1 + $0x18c] sm:$0xf]
      %v318 = vld [vmem:[%s1 + $0x190] sm:$0xf]
      %v319 = vld [vmem:[%s1 + $0x194] sm:$0xf]
      %v320 = vld [vmem:[%s1 + $0x198] sm:$0xf]
      %v321 = vld [vmem:[%s1 + $0x19c] sm:$0xf]
      %v322 = vld [vmem:[%s1 + $0x1a0] sm:$0xf]
      %v323 = vld [vmem:[%s1 + $0x1a4] sm:$0xf]
      %v324 = vld [vmem:[%s1 + $0x1a8] sm:$0xf]
      %v325 = vld [vmem:[%s1 + $0x1ac] sm:$0xf]
      %v326 = vld [vmem:[%s1 + $0x1b0] sm:$0xf]
      %v327 = vld [vmem:[%s1 + $0x1b4] sm:$0xf]
      %v328 = vld [vmem:[%s1 + $0x1b8] sm:$0xf]
      %v329 = vld [vmem:[%s1 + $0x1bc] sm:$0xf]
      %v330 = vld [vmem:[%s1 + $0x1c0] sm:$0xf]
      %v331 = vld [vmem:[%s1 + $0x1c4] sm:$0xf]
      %v332 = vld [vmem:[%s1 + $0x1c8] sm:$0xf]
      %v333 = vld [vmem:[%s1 + $0x1cc] sm:$0xf]
      %v334 = vld [vmem:[%s1 + $0x1d0] sm:$0xf]
      %v335 = vld [vmem:[%s1 + $0x1d4] sm:$0xf]
      %v336 = vld [vmem:[%s1 + $0x1d8] sm:$0xf]
      %v337 = vld [vmem:[%s1 + $0x1dc] sm:$0xf]
      %v338 = vld [vmem:[%s1 + $0x1e0] sm:$0xf]
      %v339 = vld [vmem:[%s1 + $0x1e4] sm:$0xf]
      %v340 = vld [vmem:[%s1 + $0x1e8] sm:$0xf]
      %v341 = vld [vmem:[%s1 + $0x1ec] sm:$0xf]
      %v342 = vld [vmem:[%s1 + $0x1f0] sm:$0xf]
      %v343 = vld [vmem:[%s1 + $0x1f4] sm:$0xf]
      %v344 = vld [vmem:[%s1 + $0x1f8] sm:$0xf]
      %v345 = vld [vmem:[%s1 + $0x1fc] sm:$0xf]
      %v346 = vld [vmem:[%s1 + $0x200] sm:$0xf]
      %v347 = vld [vmem:[%s1 + $0x204] sm:$0xf]
      %v348 = vld [vmem:[%s1 + $0x208] sm:$0xf]
      %v349 = vld [vmem:[%s1 + $0x20c] sm:$0xf]
      %v350 = vld [vmem:[%s1 + $0x210] sm:$0xf]
      %v351 = vld [vmem:[%s1 + $0x214] sm:$0xf]
      %v352 = vld [vmem:[%s1 + $0x218] sm:$0xf]
      %v353 = vld [vmem:[%s1 + $0x21c] sm:$0xf]
      %v354 = vld [vmem:[%s1 + $0x220] sm:$0xf]
      %v355 = vld [vmem:[%s1 + $0x224] sm:$0xf]
      %v356 = vld [vmem:[%s1 + $0x228] sm:$0xf]
      %v357 = vld [vmem:[%s1 + $0x22c] sm:$0xf]
      %v358 = vld [vmem:[%s1 + $0x230] sm:$0xf]
      %v359 = vld [vmem:[%s1 + $0x234] sm:$0xf]
      %v360 = vld [vmem:[%s1 + $0x238] sm:$0xf]
      %v361 = vld [vmem:[%s1 + $0x23c] sm:$0xf]
      %v362 = vld [vmem:[%s2] sm:$0x1]
      %v364 = vlaneseq
      %v365 = vshrl.u32 %v364, 7
      %v366 = vsub.s32 0, %v365
      %v367 = vrot.slane %v362, %v366
      %v409 = vunpack.c.l.b16 %v178
      %v410 = vunpack.c.h.b16 %v178
      %v411 = vunpack.c.l.b16 %v179
      %v412 = vunpack.c.h.b16 %v179
      %v413 = vunpack.c.l.b16 %v180
      %v414 = vunpack.c.h.b16 %v180
      %v415 = vunpack.c.l.b16 %v181
      %v416 = vunpack.c.h.b16 %v181
      %v417 = vunpack.c.l.b16 %v182
      %v418 = vunpack.c.l.b16 %v183
      %v419 = vunpack.c.h.b16 %v183
      %v420 = vunpack.c.l.b16 %v184
      %v421 = vunpack.c.h.b16 %v184
      %v422 = vunpack.c.l.b16 %v185
      %v423 = vunpack.c.h.b16 %v185
      %v424 = vunpack.c.l.b16 %v186
      %v425 = vunpack.c.h.b16 %v186
      %v426 = vunpack.c.l.b16 %v187
      %v427 = vunpack.c.l.b16 %v188
      %v428 = vunpack.c.h.b16 %v188
      %v429 = vunpack.c.l.b16 %v189
      %v430 = vunpack.c.h.b16 %v189
      %v431 = vunpack.c.l.b16 %v190
      %v432 = vunpack.c.h.b16 %v190
      %v433 = vunpack.c.l.b16 %v191
      %v434 = vunpack.c.h.b16 %v191
      %v435 = vunpack.c.l.b16 %v192
      %v436 = vunpack.c.l.b16 %v193
      %v437 = vunpack.c.h.b16 %v193
      %v438 = vunpack.c.l.b16 %v194
      %v439 = vunpack.c.h.b16 %v194
      %v440 = vunpack.c.l.b16 %v195
      %v441 = vunpack.c.h.b16 %v195
      %v442 = vunpack.c.l.b16 %v196
      %v443 = vunpack.c.h.b16 %v196
      %v444 = vunpack.c.l.b16 %v197
      %v445 = vunpack.c.l.b16 %v198
      %v446 = vunpack.c.h.b16 %v198
      %v447 = vunpack.c.l.b16 %v199
      %v448 = vunpack.c.h.b16 %v199
      %v449 = vunpack.c.l.b16 %v200
      %v450 = vunpack.c.h.b16 %v200
      %v451 = vunpack.c.l.b16 %v201
      %v452 = vunpack.c.h.b16 %v201
      %v453 = vunpack.c.l.b16 %v202
      %v454 = vunpack.c.l.b16 %v203
      %v455 = vunpack.c.h.b16 %v203
      %v456 = vunpack.c.l.b16 %v204
      %v457 = vunpack.c.h.b16 %v204
      %v458 = vunpack.c.l.b16 %v205
      %v459 = vunpack.c.h.b16 %v205
      %v460 = vunpack.c.l.b16 %v206
      %v461 = vunpack.c.h.b16 %v206
      %v462 = vunpack.c.l.b16 %v207
      %v463 = vunpack.c.l.b16 %v208
      %v464 = vunpack.c.h.b16 %v208
      %v465 = vunpack.c.l.b16 %v209
      %v466 = vunpack.c.h.b16 %v209
      %v467 = vunpack.c.l.b16 %v210
      %v468 = vunpack.c.h.b16 %v210
      %v469 = vunpack.c.l.b16 %v211
      %v470 = vunpack.c.h.b16 %v211
      %v471 = vunpack.c.l.b16 %v212
      %v472 = vunpack.c.l.b16 %v213
      %v473 = vunpack.c.h.b16 %v213
      %v474 = vunpack.c.l.b16 %v214
      %v475 = vunpack.c.h.b16 %v214
      %v476 = vunpack.c.l.b16 %v215
      %v477 = vunpack.c.h.b16 %v215
      %v478 = vunpack.c.l.b16 %v216
      %v479 = vunpack.c.h.b16 %v216
      %v480 = vunpack.c.l.b16 %v217
      %v481 = vpack.c.b16 %v418, %v409
      %v482 = vpack.c.b16 %v419, %v410
      %v483 = vpack.c.b16 %v420, %v411
      %v484 = vpack.c.b16 %v421, %v412
      %v485 = vpack.c.b16 %v422, %v413
      %v486 = vpack.c.b16 %v423, %v414
      %v487 = vpack.c.b16 %v424, %v415
      %v488 = vpack.c.b16 %v425, %v416
      %v489 = vpack.c.b16 %v426, %v417
      %v490 = vpack.c.b16 %v436, %v427
      %v491 = vpack.c.b16 %v437, %v428
      %v492 = vpack.c.b16 %v438, %v429
      %v493 = vpack.c.b16 %v439, %v430
      %v494 = vpack.c.b16 %v440, %v431
      %v495 = vpack.c.b16 %v441, %v432
      %v496 = vpack.c.b16 %v442, %v433
      %v497 = vpack.c.b16 %v443, %v434
      %v498 = vpack.c.b16 %v444, %v435
      %v499 = vpack.c.b16 %v454, %v445
      %v500 = vpack.c.b16 %v455, %v446
      %v501 = vpack.c.b16 %v456, %v447
      %v502 = vpack.c.b16 %v457, %v448
      %v503 = vpack.c.b16 %v458, %v449
      %v504 = vpack.c.b16 %v459, %v450
      %v505 = vpack.c.b16 %v460, %v451
      %v506 = vpack.c.b16 %v461, %v452
      %v507 = vpack.c.b16 %v462, %v453
      %v508 = vpack.c.b16 %v472, %v463
      %v509 = vpack.c.b16 %v473, %v464
      %v510 = vpack.c.b16 %v474, %v465
      %v511 = vpack.c.b16 %v475, %v466
      %v512 = vpack.c.b16 %v476, %v467
      %v513 = vpack.c.b16 %v477, %v468
      %v514 = vpack.c.b16 %v478, %v469
      %v515 = vpack.c.b16 %v479, %v470
      %v516 = vpack.c.b16 %v480, %v471
      %v697 = vunpack.c.l.b16 %v218
      %v698 = vunpack.c.l.b16 %v219
      %v699 = vunpack.c.l.b16 %v220
      %v700 = vunpack.c.l.b16 %v221
      %v701 = vunpack.c.l.b16 %v222
      %v702 = vunpack.c.l.b16 %v223
      %v703 = vunpack.c.l.b16 %v224
      %v704 = vunpack.c.l.b16 %v225
      %v705 = vunpack.c.l.b16 %v226
      %v706 = vunpack.c.l.b16 %v227
      %v707 = vunpack.c.l.b16 %v228
      %v708 = vunpack.c.l.b16 %v229
      %v709 = vunpack.c.l.b16 %v230
      %v710 = vunpack.c.l.b16 %v231
      %v711 = vunpack.c.l.b16 %v232
      %v712 = vunpack.c.l.b16 %v233
      %v713 = vunpack.c.l.b16 %v234
      %v714 = vunpack.c.l.b16 %v235
      %v715 = vunpack.c.l.b16 %v236
      %v716 = vunpack.c.l.b16 %v237
      %v717 = vunpack.c.l.b16 %v238
      %v718 = vunpack.c.l.b16 %v239
      %v719 = vunpack.c.l.b16 %v240
      %v720 = vunpack.c.l.b16 %v241
      %v721 = vunpack.c.l.b16 %v242
      %v722 = vunpack.c.l.b16 %v243
      %v723 = vunpack.c.l.b16 %v244
      %v724 = vunpack.c.l.b16 %v245
      %v725 = vunpack.c.l.b16 %v246
      %v726 = vunpack.c.l.b16 %v247
      %v727 = vunpack.c.l.b16 %v248
      %v728 = vunpack.c.l.b16 %v249
      %v729 = vunpack.c.l.b16 %v250
      %v730 = vunpack.c.l.b16 %v251
      %v731 = vunpack.c.l.b16 %v252
      %v732 = vunpack.c.l.b16 %v253
      %v733 = vunpack.c.l.b16 %v254
      %v734 = vunpack.c.l.b16 %v255
      %v735 = vunpack.c.l.b16 %v256
      %v736 = vunpack.c.l.b16 %v257
      %v737 = vunpack.c.l.b16 %v258
      %v738 = vunpack.c.l.b16 %v259
      %v739 = vunpack.c.l.b16 %v260
      %v740 = vunpack.c.l.b16 %v261
      %v741 = vunpack.c.l.b16 %v262
      %v742 = vunpack.c.l.b16 %v263
      %v743 = vunpack.c.l.b16 %v264
      %v744 = vunpack.c.l.b16 %v265
      %v745 = vunpack.c.l.b16 %v266
      %v746 = vunpack.c.l.b16 %v267
      %v747 = vunpack.c.l.b16 %v268
      %v748 = vunpack.c.l.b16 %v269
      %v749 = vunpack.c.l.b16 %v270
      %v750 = vunpack.c.l.b16 %v271
      %v751 = vunpack.c.l.b16 %v272
      %v752 = vunpack.c.l.b16 %v273
      %v753 = vunpack.c.l.b16 %v274
      %v754 = vunpack.c.l.b16 %v275
      %v755 = vunpack.c.l.b16 %v276
      %v756 = vunpack.c.l.b16 %v277
      %v757 = vunpack.c.l.b16 %v278
      %v758 = vunpack.c.l.b16 %v279
      %v759 = vunpack.c.l.b16 %v280
      %v760 = vunpack.c.l.b16 %v281
      %v761 = vunpack.c.l.b16 %v282
      %v762 = vunpack.c.l.b16 %v283
      %v763 = vunpack.c.l.b16 %v284
      %v764 = vunpack.c.l.b16 %v285
      %v765 = vunpack.c.l.b16 %v286
      %v766 = vunpack.c.l.b16 %v287
      %v767 = vunpack.c.l.b16 %v288
      %v768 = vunpack.c.l.b16 %v289
      %v769 = vunpack.c.l.b16 %v290
      %v770 = vunpack.c.l.b16 %v291
      %v771 = vunpack.c.l.b16 %v292
      %v772 = vunpack.c.l.b16 %v293
      %v773 = vunpack.c.l.b16 %v294
      %v774 = vunpack.c.l.b16 %v295
      %v775 = vunpack.c.l.b16 %v296
      %v776 = vunpack.c.l.b16 %v297
      %v777 = vunpack.c.l.b16 %v298
      %v778 = vunpack.c.l.b16 %v299
      %v779 = vunpack.c.l.b16 %v300
      %v780 = vunpack.c.l.b16 %v301
      %v781 = vunpack.c.l.b16 %v302
      %v782 = vunpack.c.l.b16 %v303
      %v783 = vunpack.c.l.b16 %v304
      %v784 = vunpack.c.l.b16 %v305
      %v785 = vunpack.c.l.b16 %v306
      %v786 = vunpack.c.l.b16 %v307
      %v787 = vunpack.c.l.b16 %v308
      %v788 = vunpack.c.l.b16 %v309
      %v789 = vunpack.c.l.b16 %v310
      %v790 = vunpack.c.l.b16 %v311
      %v791 = vunpack.c.l.b16 %v312
      %v792 = vunpack.c.l.b16 %v313
      %v793 = vunpack.c.l.b16 %v314
      %v794 = vunpack.c.l.b16 %v315
      %v795 = vunpack.c.l.b16 %v316
      %v796 = vunpack.c.l.b16 %v317
      %v797 = vunpack.c.l.b16 %v318
      %v798 = vunpack.c.l.b16 %v319
      %v799 = vunpack.c.l.b16 %v320
      %v800 = vunpack.c.l.b16 %v321
      %v801 = vunpack.c.l.b16 %v322
      %v802 = vunpack.c.l.b16 %v323
      %v803 = vunpack.c.l.b16 %v324
      %v804 = vunpack.c.l.b16 %v325
      %v805 = vunpack.c.l.b16 %v326
      %v806 = vunpack.c.l.b16 %v327
      %v807 = vunpack.c.l.b16 %v328
      %v808 = vunpack.c.l.b16 %v329
      %v809 = vunpack.c.l.b16 %v330
      %v810 = vunpack.c.l.b16 %v331
      %v811 = vunpack.c.l.b16 %v332
      %v812 = vunpack.c.l.b16 %v333
      %v813 = vunpack.c.l.b16 %v334
      %v814 = vunpack.c.l.b16 %v335
      %v815 = vunpack.c.l.b16 %v336
      %v816 = vunpack.c.l.b16 %v337
      %v817 = vunpack.c.l.b16 %v338
      %v818 = vunpack.c.l.b16 %v339
      %v819 = vunpack.c.l.b16 %v340
      %v820 = vunpack.c.l.b16 %v341
      %v821 = vunpack.c.l.b16 %v342
      %v822 = vunpack.c.l.b16 %v343
      %v823 = vunpack.c.l.b16 %v344
      %v824 = vunpack.c.l.b16 %v345
      %v825 = vunpack.c.l.b16 %v346
      %v826 = vunpack.c.l.b16 %v347
      %v827 = vunpack.c.l.b16 %v348
      %v828 = vunpack.c.l.b16 %v349
      %v829 = vunpack.c.l.b16 %v350
      %v830 = vunpack.c.l.b16 %v351
      %v831 = vunpack.c.l.b16 %v352
      %v832 = vunpack.c.l.b16 %v353
      %v833 = vunpack.c.l.b16 %v354
      %v834 = vunpack.c.l.b16 %v355
      %v835 = vunpack.c.l.b16 %v356
      %v836 = vunpack.c.l.b16 %v357
      %v837 = vunpack.c.l.b16 %v358
      %v838 = vunpack.c.l.b16 %v359
      %v839 = vunpack.c.l.b16 %v360
      %v840 = vunpack.c.l.b16 %v361
      %v841 = vpack.c.b16 %v698, %v697
      %v842 = vpack.c.b16 %v700, %v699
      %v843 = vpack.c.b16 %v702, %v701
      %v844 = vpack.c.b16 %v704, %v703
      %v845 = vpack.c.b16 %v706, %v705
      %v846 = vpack.c.b16 %v708, %v707
      %v847 = vpack.c.b16 %v710, %v709
      %v848 = vpack.c.b16 %v712, %v711
      %v849 = vpack.c.b16 %v714, %v713
      %v850 = vpack.c.b16 %v716, %v715
      %v851 = vpack.c.b16 %v718, %v717
      %v852 = vpack.c.b16 %v720, %v719
      %v853 = vpack.c.b16 %v722, %v721
      %v854 = vpack.c.b16 %v724, %v723
      %v855 = vpack.c.b16 %v726, %v725
      %v856 = vpack.c.b16 %v728, %v727
      %v857 = vpack.c.b16 %v730, %v729
      %v858 = vpack.c.b16 %v732, %v731
      %v859 = vpack.c.b16 %v734, %v733
      %v860 = vpack.c.b16 %v736, %v735
      %v861 = vpack.c.b16 %v738, %v737
      %v862 = vpack.c.b16 %v740, %v739
      %v863 = vpack.c.b16 %v742, %v741
      %v864 = vpack.c.b16 %v744, %v743
      %v865 = vpack.c.b16 %v746, %v745
      %v866 = vpack.c.b16 %v748, %v747
      %v867 = vpack.c.b16 %v750, %v749
      %v868 = vpack.c.b16 %v752, %v751
      %v869 = vpack.c.b16 %v754, %v753
      %v870 = vpack.c.b16 %v756, %v755
      %v871 = vpack.c.b16 %v758, %v757
      %v872 = vpack.c.b16 %v760, %v759
      %v873 = vpack.c.b16 %v762, %v761
      %v874 = vpack.c.b16 %v764, %v763
      %v875 = vpack.c.b16 %v766, %v765
      %v876 = vpack.c.b16 %v768, %v767
      %v877 = vpack.c.b16 %v770, %v769
      %v878 = vpack.c.b16 %v772, %v771
      %v879 = vpack.c.b16 %v774, %v773
      %v880 = vpack.c.b16 %v776, %v775
      %v881 = vpack.c.b16 %v778, %v777
      %v882 = vpack.c.b16 %v780, %v779
      %v883 = vpack.c.b16 %v782, %v781
      %v884 = vpack.c.b16 %v784, %v783
      %v885 = vpack.c.b16 %v786, %v785
      %v886 = vpack.c.b16 %v788, %v787
      %v887 = vpack.c.b16 %v790, %v789
      %v888 = vpack.c.b16 %v792, %v791
      %v889 = vpack.c.b16 %v794, %v793
      %v890 = vpack.c.b16 %v796, %v795
      %v891 = vpack.c.b16 %v798, %v797
      %v892 = vpack.c.b16 %v800, %v799
      %v893 = vpack.c.b16 %v802, %v801
      %v894 = vpack.c.b16 %v804, %v803
      %v895 = vpack.c.b16 %v806, %v805
      %v896 = vpack.c.b16 %v808, %v807
      %v897 = vpack.c.b16 %v810, %v809
      %v898 = vpack.c.b16 %v812, %v811
      %v899 = vpack.c.b16 %v814, %v813
      %v900 = vpack.c.b16 %v816, %v815
      %v901 = vpack.c.b16 %v818, %v817
      %v902 = vpack.c.b16 %v820, %v819
      %v903 = vpack.c.b16 %v822, %v821
      %v904 = vpack.c.b16 %v824, %v823
      %v905 = vpack.c.b16 %v826, %v825
      %v906 = vpack.c.b16 %v828, %v827
      %v907 = vpack.c.b16 %v830, %v829
      %v908 = vpack.c.b16 %v832, %v831
      %v909 = vpack.c.b16 %v834, %v833
      %v910 = vpack.c.b16 %v836, %v835
      %v911 = vpack.c.b16 %v838, %v837
      %v912 = vpack.c.b16 %v840, %v839
      %985 = vmatprep.subr.bf16.mxu0 0
      %986 = vmatpush1.bf16.msra.mxu0 %v841
      %987 = vmatprep.subr.bf16.mxu0 0
      %988 = vmatpush1.bf16.msra.mxu0 %v842
      %989 = vmatprep.subr.bf16.mxu0 0
      %990 = vmatpush1.bf16.msra.mxu0 %v843
      %991 = vmatprep.subr.bf16.mxu0 0
      %992 = vmatpush1.bf16.msra.mxu0 %v844
      %993 = vmatprep.subr.bf16.mxu0 0
      %994 = vmatpush1.bf16.msra.mxu0 %v845
      %995 = vmatprep.subr.bf16.mxu0 0
      %996 = vmatpush1.bf16.msra.mxu0 %v846
      %997 = vmatprep.subr.bf16.mxu0 0
      %998 = vmatpush1.bf16.msra.mxu0 %v847
      %999 = vmatprep.subr.bf16.mxu0 0
      %1000 = vmatpush1.bf16.msra.mxu0 %v848
      %1001 = vmatprep.subr.bf16.mxu0 0
      %1002 = vmatpush1.bf16.msra.mxu0 %v849
      %1003 = vmatprep.subr.bf16.mxu0 0
      %1004 = vmatpush1.bf16.msra.mxu0 %v850
      %1005 = vmatprep.subr.bf16.mxu0 0
      %1006 = vmatpush1.bf16.msra.mxu0 %v851
      %1007 = vmatprep.subr.bf16.mxu0 0
      %1008 = vmatpush1.bf16.msra.mxu0 %v852
      %1009 = vmatprep.subr.bf16.mxu0 0
      %1010 = vmatpush1.bf16.msra.mxu0 %v853
      %1011 = vmatprep.subr.bf16.mxu0 0
      %1012 = vmatpush1.bf16.msra.mxu0 %v854
      %1013 = vmatprep.subr.bf16.mxu0 0
      %1014 = vmatpush1.bf16.msra.mxu0 %v855
      %1015 = vmatprep.subr.bf16.mxu0 0
      %1016 = vmatpush1.bf16.msra.mxu0 %v856
      %1017 = vmatprep.mubr.bf16.mxu0 %v482
      %1018 = vmatmul.mubr.bf16.gmra.mrb[0].mxu0 %v481
      %v1019 = vpop.f32.mrb[0].mxu0
      %v1020 = vadd.f32 %v367, %v1019
      %v1021 = vpop.f32.mrb[0].mxu0
      %v1022 = vpop.f32.mrb[0].mxu0
      %v1023 = vadd.f32 %v367, %v1022
      %v1024 = vpop.f32.mrb[0].mxu0
      %1025 = vmatprep.mubr.bf16.mxu0 %v491
      %1026 = vmatmul.mubr.bf16.gmra.mrb[0].mxu0 %v490
      %v1027 = vpop.f32.mrb[0].mxu0
      %v1028 = vadd.f32 %v367, %v1027
      %v1029 = vpop.f32.mrb[0].mxu0
      %v1030 = vpop.f32.mrb[0].mxu0
      %v1031 = vadd.f32 %v367, %v1030
      %v1032 = vpop.f32.mrb[0].mxu0
      %1033 = vmatprep.mubr.bf16.mxu0 %v500
      %1034 = vmatmul.mubr.bf16.gmra.mrb[0].mxu0 %v499
      %v1035 = vpop.f32.mrb[0].mxu0
      %v1036 = vadd.f32 %v367, %v1035
      %v1037 = vpop.f32.mrb[0].mxu0
      %v1038 = vpop.f32.mrb[0].mxu0
      %v1039 = vadd.f32 %v367, %v1038
      %v1040 = vpop.f32.mrb[0].mxu0
      %1041 = vmatprep.mubr.bf16.mxu0 %v509
      %1042 = vmatmul.mubr.bf16.gmra.mrb[0].mxu0 %v508
      %v1043 = vpop.f32.mrb[0].mxu0
      %v1044 = vadd.f32 %v367, %v1043
      %v1045 = vpop.f32.mrb[0].mxu0
      %v1046 = vpop.f32.mrb[0].mxu0
      %v1047 = vadd.f32 %v367, %v1046
      %v1048 = vpop.f32.mrb[0].mxu0
      %1049 = vdwg.mxu0
      %1050 = vmatprep.subr.bf16.mxu0 0
      %1051 = vmatpush1.bf16.msra.mxu0 %v857
      %1052 = vmatprep.subr.bf16.mxu0 0
      %1053 = vmatpush1.bf16.msra.mxu0 %v858
      %1054 = vmatprep.subr.bf16.mxu0 0
      %1055 = vmatpush1.bf16.msra.mxu0 %v859
      %1056 = vmatprep.subr.bf16.mxu0 0
      %1057 = vmatpush1.bf16.msra.mxu0 %v860
      %1058 = vmatprep.subr.bf16.mxu0 0
      %1059 = vmatpush1.bf16.msra.mxu0 %v861
      %1060 = vmatprep.subr.bf16.mxu0 0
      %1061 = vmatpush1.bf16.msra.mxu0 %v862
      %1062 = vmatprep.subr.bf16.mxu0 0
      %1063 = vmatpush1.bf16.msra.mxu0 %v863
      %1064 = vmatprep.subr.bf16.mxu0 0
      %1065 = vmatpush1.bf16.msra.mxu0 %v864
      %1066 = vmatprep.subr.bf16.mxu0 0
      %1067 = vmatpush1.bf16.msra.mxu0 %v865
      %1068 = vmatprep.subr.bf16.mxu0 0
      %1069 = vmatpush1.bf16.msra.mxu0 %v866
      %1070 = vmatprep.subr.bf16.mxu0 0
      %1071 = vmatpush1.bf16.msra.mxu0 %v867
      %1072 = vmatprep.subr.bf16.mxu0 0
      %1073 = vmatpush1.bf16.msra.mxu0 %v868
      %1074 = vmatprep.subr.bf16.mxu0 0
      %1075 = vmatpush1.bf16.msra.mxu0 %v869
      %1076 = vmatprep.subr.bf16.mxu0 0
      %1077 = vmatpush1.bf16.msra.mxu0 %v870
      %1078 = vmatprep.subr.bf16.mxu0 0
      %1079 = vmatpush1.bf16.msra.mxu0 %v871
      %1080 = vmatprep.subr.bf16.mxu0 0
      %1081 = vmatpush1.bf16.msra.mxu0 %v872
      %1082 = vmatprep.mubr.bf16.mxu0 %v484
      %1083 = vmatmul.mubr.bf16.gmra.mrb[0].mxu0 %v483
      %v1084 = vpop.f32.mrb[0].mxu0
      %v1085 = vadd.f32 %v1020, %v1084
      %v1086 = vpop.f32.mrb[0].mxu0
      %v1087 = vpop.f32.mrb[0].mxu0
      %v1088 = vadd.f32 %v1023, %v1087
      %v1089 = vpop.f32.mrb[0].mxu0
      %1090 = vmatprep.mubr.bf16.mxu0 %v493
      %1091 = vmatmul.mubr.bf16.gmra.mrb[0].mxu0 %v492
      %v1092 = vpop.f32.mrb[0].mxu0
      %v1093 = vadd.f32 %v1028, %v1092
      %v1094 = vpop.f32.mrb[0].mxu0
      %v1095 = vpop.f32.mrb[0].mxu0
      %v1096 = vadd.f32 %v1031, %v1095
      %v1097 = vpop.f32.mrb[0].mxu0
      %1098 = vmatprep.mubr.bf16.mxu0 %v502
      %1099 = vmatmul.mubr.bf16.gmra.mrb[0].mxu0 %v501
      %v1100 = vpop.f32.mrb[0].mxu0
      %v1101 = vadd.f32 %v1036, %v1100
      %v1102 = vpop.f32.mrb[0].mxu0
      %v1103 = vpop.f32.mrb[0].mxu0
      %v1104 = vadd.f32 %v1039, %v1103
      %v1105 = vpop.f32.mrb[0].mxu0
      %1106 = vmatprep.mubr.bf16.mxu0 %v511
      %1107 = vmatmul.mubr.bf16.gmra.mrb[0].mxu0 %v510
      %v1108 = vpop.f32.mrb[0].mxu0
      %v1109 = vadd.f32 %v1044, %v1108
      %v1110 = vpop.f32.mrb[0].mxu0
      %v1111 = vpop.f32.mrb[0].mxu0
      %v1112 = vadd.f32 %v1047, %v1111
      %v1113 = vpop.f32.mrb[0].mxu0
      %1114 = vdwg.mxu0
      %1115 = vmatprep.subr.bf16.mxu0 0
      %1116 = vmatpush1.bf16.msra.mxu0 %v873
      %1117 = vmatprep.subr.bf16.mxu0 0
      %1118 = vmatpush1.bf16.msra.mxu0 %v874
      %1119 = vmatprep.subr.bf16.mxu0 0
      %1120 = vmatpush1.bf16.msra.mxu0 %v875
      %1121 = vmatprep.subr.bf16.mxu0 0
      %1122 = vmatpush1.bf16.msra.mxu0 %v876
      %1123 = vmatprep.subr.bf16.mxu0 0
      %1124 = vmatpush1.bf16.msra.mxu0 %v877
      %1125 = vmatprep.subr.bf16.mxu0 0
      %1126 = vmatpush1.bf16.msra.mxu0 %v878
      %1127 = vmatprep.subr.bf16.mxu0 0
      %1128 = vmatpush1.bf16.msra.mxu0 %v879
      %1129 = vmatprep.subr.bf16.mxu0 0
      %1130 = vmatpush1.bf16.msra.mxu0 %v880
      %1131 = vmatprep.subr.bf16.mxu0 0
      %1132 = vmatpush1.bf16.msra.mxu0 %v881
      %1133 = vmatprep.subr.bf16.mxu0 0
      %1134 = vmatpush1.bf16.msra.mxu0 %v882
      %1135 = vmatprep.subr.bf16.mxu0 0
      %1136 = vmatpush1.bf16.msra.mxu0 %v883
      %1137 = vmatprep.subr.bf16.mxu0 0
      %1138 = vmatpush1.bf16.msra.mxu0 %v884
      %1139 = vmatprep.subr.bf16.mxu0 0
      %1140 = vmatpush1.bf16.msra.mxu0 %v885
      %1141 = vmatprep.subr.bf16.mxu0 0
      %1142 = vmatpush1.bf16.msra.mxu0 %v886
      %1143 = vmatprep.subr.bf16.mxu0 0
      %1144 = vmatpush1.bf16.msra.mxu0 %v887
      %1145 = vmatprep.subr.bf16.mxu0 0
      %1146 = vmatpush1.bf16.msra.mxu0 %v888
      %1147 = vmatprep.mubr.bf16.mxu0 %v486
      %1148 = vmatmul.mubr.bf16.gmra.mrb[0].mxu0 %v485
      %v1149 = vpop.f32.mrb[0].mxu0
      %v1150 = vadd.f32 %v1085, %v1149
      %v1151 = vpop.f32.mrb[0].mxu0
      %v1152 = vpop.f32.mrb[0].mxu0
      %v1153 = vadd.f32 %v1088, %v1152
      %v1154 = vpop.f32.mrb[0].mxu0
      %1155 = vmatprep.mubr.bf16.mxu0 %v495
      %1156 = vmatmul.mubr.bf16.gmra.mrb[0].mxu0 %v494
      %v1157 = vpop.f32.mrb[0].mxu0
      %v1158 = vadd.f32 %v1093, %v1157
      %v1159 = vpop.f32.mrb[0].mxu0
      %v1160 = vpop.f32.mrb[0].mxu0
      %v1161 = vadd.f32 %v1096, %v1160
      %v1162 = vpop.f32.mrb[0].mxu0
      %1163 = vmatprep.mubr.bf16.mxu0 %v504
      %1164 = vmatmul.mubr.bf16.gmra.mrb[0].mxu0 %v503
      %v1165 = vpop.f32.mrb[0].mxu0
      %v1166 = vadd.f32 %v1101, %v1165
      %v1167 = vpop.f32.mrb[0].mxu0
      %v1168 = vpop.f32.mrb[0].mxu0
      %v1169 = vadd.f32 %v1104, %v1168
      %v1170 = vpop.f32.mrb[0].mxu0
      %1171 = vmatprep.mubr.bf16.mxu0 %v513
      %1172 = vmatmul.mubr.bf16.gmra.mrb[0].mxu0 %v512
      %v1173 = vpop.f32.mrb[0].mxu0
      %v1174 = vadd.f32 %v1109, %v1173
      %v1175 = vpop.f32.mrb[0].mxu0
      %v1176 = vpop.f32.mrb[0].mxu0
      %v1177 = vadd.f32 %v1112, %v1176
      %v1178 = vpop.f32.mrb[0].mxu0
      %1179 = vdwg.mxu0
      %1180 = vmatprep.subr.bf16.mxu0 0
      %1181 = vmatpush1.bf16.msra.mxu0 %v889
      %1182 = vmatprep.subr.bf16.mxu0 0
      %1183 = vmatpush1.bf16.msra.mxu0 %v890
      %1184 = vmatprep.subr.bf16.mxu0 0
      %1185 = vmatpush1.bf16.msra.mxu0 %v891
      %1186 = vmatprep.subr.bf16.mxu0 0
      %1187 = vmatpush1.bf16.msra.mxu0 %v892
      %1188 = vmatprep.subr.bf16.mxu0 0
      %1189 = vmatpush1.bf16.msra.mxu0 %v893
      %1190 = vmatprep.subr.bf16.mxu0 0
      %1191 = vmatpush1.bf16.msra.mxu0 %v894
      %1192 = vmatprep.subr.bf16.mxu0 0
      %1193 = vmatpush1.bf16.msra.mxu0 %v895
      %1194 = vmatprep.subr.bf16.mxu0 0
      %1195 = vmatpush1.bf16.msra.mxu0 %v896
      %1196 = vmatprep.subr.bf16.mxu0 0
      %1197 = vmatpush1.bf16.msra.mxu0 %v897
      %1198 = vmatprep.subr.bf16.mxu0 0
      %1199 = vmatpush1.bf16.msra.mxu0 %v898
      %1200 = vmatprep.subr.bf16.mxu0 0
      %1201 = vmatpush1.bf16.msra.mxu0 %v899
      %1202 = vmatprep.subr.bf16.mxu0 0
      %1203 = vmatpush1.bf16.msra.mxu0 %v900
      %1204 = vmatprep.subr.bf16.mxu0 0
      %1205 = vmatpush1.bf16.msra.mxu0 %v901
      %1206 = vmatprep.subr.bf16.mxu0 0
      %1207 = vmatpush1.bf16.msra.mxu0 %v902
      %1208 = vmatprep.subr.bf16.mxu0 0
      %1209 = vmatpush1.bf16.msra.mxu0 %v903
      %1210 = vmatprep.subr.bf16.mxu0 0
      %1211 = vmatpush1.bf16.msra.mxu0 %v904
      %1212 = vmatprep.mubr.bf16.mxu0 %v488
      %1213 = vmatmul.mubr.bf16.gmra.mrb[0].mxu0 %v487
      %v1214 = vpop.f32.mrb[0].mxu0
      %v1215 = vadd.f32 %v1150, %v1214
      %v1216 = vpop.f32.mrb[0].mxu0
      %v1217 = vpop.f32.mrb[0].mxu0
      %v1218 = vadd.f32 %v1153, %v1217
      %v1219 = vpop.f32.mrb[0].mxu0
      %1220 = vmatprep.mubr.bf16.mxu0 %v497
      %1221 = vmatmul.mubr.bf16.gmra.mrb[0].mxu0 %v496
      %v1222 = vpop.f32.mrb[0].mxu0
      %v1223 = vadd.f32 %v1158, %v1222
      %v1224 = vpop.f32.mrb[0].mxu0
      %v1225 = vpop.f32.mrb[0].mxu0
      %v1226 = vadd.f32 %v1161, %v1225
      %v1227 = vpop.f32.mrb[0].mxu0
      %1228 = vmatprep.mubr.bf16.mxu0 %v506
      %1229 = vmatmul.mubr.bf16.gmra.mrb[0].mxu0 %v505
      %v1230 = vpop.f32.mrb[0].mxu0
      %v1231 = vadd.f32 %v1166, %v1230
      %v1232 = vpop.f32.mrb[0].mxu0
      %v1233 = vpop.f32.mrb[0].mxu0
      %v1234 = vadd.f32 %v1169, %v1233
      %v1235 = vpop.f32.mrb[0].mxu0
      %1236 = vmatprep.mubr.bf16.mxu0 %v515
      %1237 = vmatmul.mubr.bf16.gmra.mrb[0].mxu0 %v514
      %v1238 = vpop.f32.mrb[0].mxu0
      %v1239 = vadd.f32 %v1174, %v1238
      %v1240 = vpop.f32.mrb[0].mxu0
      %v1241 = vpop.f32.mrb[0].mxu0
      %v1242 = vadd.f32 %v1177, %v1241
      %v1243 = vpop.f32.mrb[0].mxu0
      %1244 = vdwg.mxu0
      %1245 = vmatprep.subr.bf16.mxu0 0
      %1246 = vmatpush1.bf16.msra.mxu0 %v905
      %1247 = vmatprep.subr.bf16.mxu0 0
      %1248 = vmatpush1.bf16.msra.mxu0 %v906
      %1249 = vmatprep.subr.bf16.mxu0 0
      %1250 = vmatpush1.bf16.msra.mxu0 %v907
      %1251 = vmatprep.subr.bf16.mxu0 0
      %1252 = vmatpush1.bf16.msra.mxu0 %v908
      %1253 = vmatprep.subr.bf16.mxu0 0
      %1254 = vmatpush1.bf16.msra.mxu0 %v909
      %1255 = vmatprep.subr.bf16.mxu0 0
      %1256 = vmatpush1.bf16.msra.mxu0 %v910
      %1257 = vmatprep.subr.bf16.mxu0 0
      %1258 = vmatpush1.bf16.msra.mxu0 %v911
      %1259 = vmatprep.subr.bf16.mxu0 0
      %1260 = vmatpush1.bf16.msra.mxu0 %v912
      %1261 = vmatprep.subr.bf16.mxu0 0
      %1262 = vmatpush1.bf16.msra.mxu0 0
      %1263 = vmatprep.subr.bf16.mxu0 0
      %1264 = vmatpush1.bf16.msra.mxu0 0
      %1265 = vmatprep.subr.bf16.mxu0 0
      %1266 = vmatpush1.bf16.msra.mxu0 0
      %1267 = vmatprep.subr.bf16.mxu0 0
      %1268 = vmatpush1.bf16.msra.mxu0 0
      %1269 = vmatprep.subr.bf16.mxu0 0
      %1270 = vmatpush1.bf16.msra.mxu0 0
      %1271 = vmatprep.subr.bf16.mxu0 0
      %1272 = vmatpush1.bf16.msra.mxu0 0
      %1273 = vmatprep.subr.bf16.mxu0 0
      %1274 = vmatpush1.bf16.msra.mxu0 0
      %1275 = vmatprep.subr.bf16.mxu0 0
      %1276 = vmatpush1.bf16.msra.mxu0 0
      %1277 = vmatprep.mubr.bf16.mxu0 0
      %1278 = vmatmul.mubr.bf16.gmra.mrb[0].mxu0 %v489
      %v1279 = vpop.f32.mrb[0].mxu0
      %v1280 = vadd.f32 %v1215, %v1279
      %v1281 = vpop.f32.mrb[0].mxu0
      %v1282 = vpop.f32.mrb[0].mxu0
      %v1283 = vadd.f32 %v1218, %v1282
      %v1284 = vpop.f32.mrb[0].mxu0
      %1285 = vmatprep.mubr.bf16.mxu0 0
      %1286 = vmatmul.mubr.bf16.gmra.mrb[0].mxu0 %v498
      %v1287 = vpop.f32.mrb[0].mxu0
      %v1288 = vadd.f32 %v1223, %v1287
      %v1289 = vpop.f32.mrb[0].mxu0
      %v1290 = vpop.f32.mrb[0].mxu0
      %v1291 = vadd.f32 %v1226, %v1290
      %v1292 = vpop.f32.mrb[0].mxu0
      %1293 = vmatprep.mubr.bf16.mxu0 0
      %1294 = vmatmul.mubr.bf16.gmra.mrb[0].mxu0 %v507
      %v1295 = vpop.f32.mrb[0].mxu0
      %v1296 = vadd.f32 %v1231, %v1295
      %v1297 = vpop.f32.mrb[0].mxu0
      %v1298 = vpop.f32.mrb[0].mxu0
      %v1299 = vadd.f32 %v1234, %v1298
      %v1300 = vpop.f32.mrb[0].mxu0
      %1301 = vmatprep.mubr.bf16.mxu0 0
      %1302 = vmatmul.mubr.bf16.gmra.mrb[0].mxu0 %v516
      %v1303 = vpop.f32.mrb[0].mxu0
      %v1304 = vadd.f32 %v1239, %v1303
      %v1305 = vpop.f32.mrb[0].mxu0
      %v1306 = vpop.f32.mrb[0].mxu0
      %v1307 = vadd.f32 %v1242, %v1306
      %v1308 = vpop.f32.mrb[0].mxu0
      %1309 = vdwg.mxu0
      %v1310 = vmax.f32 %v1280, 0.0
      %v1311 = vmax.f32 %v1283, 0.0
      %v1312 = vmax.f32 %v1288, 0.0
      %v1313 = vmax.f32 %v1291, 0.0
      %v1314 = vmax.f32 %v1296, 0.0
      %v1315 = vmax.f32 %v1299, 0.0
      %v1316 = vmax.f32 %v1304, 0.0
      %v1317 = vmax.f32 %v1307, 0.0
      %v1318 = vpack.c.bf16 %v1311, %v1310
      %v1319 = vpack.c.bf16 %v1313, %v1312
      %v1320 = vpack.c.bf16 %v1315, %v1314
      %v1321 = vpack.c.bf16 %v1317, %v1316
      %v1326 = vunpack.c.l.b16 %v1318
      %v1327 = vunpack.c.h.b16 %v1318
      %v1328 = vunpack.c.l.b16 %v1319
      %v1329 = vunpack.c.h.b16 %v1319
      %v1330 = vunpack.c.l.b16 %v1320
      %v1331 = vunpack.c.h.b16 %v1320
      %v1332 = vunpack.c.l.b16 %v1321
      %v1333 = vunpack.c.h.b16 %v1321
      %v1334 = vpack.c.b16 %v1326, %v1326
      %v1335 = vpack.c.b16 %v1327, %v1327
      %v1336 = vpack.c.b16 %v1328, %v1328
      %v1337 = vpack.c.b16 %v1329, %v1329
      %v1338 = vpack.c.b16 %v1330, %v1330
      %v1339 = vpack.c.b16 %v1331, %v1331
      %v1340 = vpack.c.b16 %v1332, %v1332
      %v1341 = vpack.c.b16 %v1333, %v1333
      %1350 = vst [vmem:[%s175] sm:$0xf] %v1334
      %1351 = vst [vmem:[%s175 + $0x4] sm:$0xf] %v1335
      %1352 = vst [vmem:[%s175 + $0x8] sm:$0xf] %v1336
      %1353 = vst [vmem:[%s175 + $0xc] sm:$0xf] %v1337
      %1354 = vst [vmem:[%s175 + $0x10] sm:$0xf] %v1338
      %1355 = vst [vmem:[%s175 + $0x14] sm:$0xf] %v1339
      %1356 = vst [vmem:[%s175 + $0x18] sm:$0xf] %v1340
      %1357 = vst [vmem:[%s175 + $0x1c] sm:$0xf] %v1341
      %s1358 = smul.u32 8, %s14
      %p1359 = scmp.lt.s32.totalorder %s1358, 15
      %s1360 = scalar_select %p1359, %s1358, 15
      %s1361 = smul.addr %s1360, 4
      %s1362 = scalar_lea.vmem %s3, %s1361
      // Predicated region
      $region33: #{repvgg_forward.7} parent=31 // pred_check
        %p1363 = pneg %p100
      $region34: #{repvgg_forward.7} parent=31 // pred_check_branch
        %1365 = sbr.rel (%p1363) target = $region36
      $region35: #{repvgg_forward.7} parent=31 // pred_region
        %s1366 = smul.u32 8, %s14
      $region36: #{repvgg_forward.7} parent=31 // pred_fallthru
        _
    $region32: #{repvgg_forward.7} parent=5 // pred_fallthru
      _
    %p1367 = scmp.le.s32.totalorder 2, %s9
    // Predicated region
    $region37: #{repvgg_forward.7} parent=5 // pred_check
      %p1368 = pneg %p1367
    $region38: #{repvgg_forward.7} parent=5 // pred_check_branch
      %1370 = sbr.rel (%p1368) target = $region40
    $region39: #{repvgg_forward.7} parent=5 // pred_region
      %s1371 = ssub.s32 %s9, 2
      // Predicated region
      $region41: #{repvgg_forward.7} parent=39 // pred_check
        %p1372 = pneg %p106
      $region42: #{repvgg_forward.7} parent=39 // pred_check_branch
        %1374 = sbr.rel (%p1372) target = $region44
      $region43: #{repvgg_forward.7} parent=39 // pred_region
        %s1375 = smul.u32 8, %s15
        %p1376 = scmp.lt.s32.totalorder %s1375, 15
        %s1377 = scalar_select %p1376, %s1375, 15
        %s1378 = smul.addr %s1377, 4
        %s1379 = scalar_lea.vmem %s3, %s1378
      $region44: #{repvgg_forward.7} parent=39 // pred_fallthru
        _
    $region40: #{repvgg_forward.7} parent=5 // pred_fallthru
      _
  $region6: #{repvgg_forward.7} parent=0 // loop_footer
    %s13 = sadd.s32 1, %s9
  $region7: #{repvgg_forward.7} parent=0 // loop_footer_branch
    %8 = sbr.rel target = $region3
  $region8: #{repvgg_forward.7} parent=0 // loop_exit
    _

// kernel: repvgg_forward.6
$region0: #{repvgg_forward.6}
  #allocation0 [shape = 'u32[]', space=smem, size = 0x4, offset = 0x4, fixed_abs, tag = 'smem constant byte address 0x4 - core index']
  #allocation1 [shape = 'u32[144,128]{1,0:T(1,128)}', space=vmem, size = 0x12000, scoped, tag = 'internal scratch']
  %s0 = inlined_call_operand.vmem [shape: bf16[512,1152], index: 0, kind: input, shape index: {}]
  %s1 = inlined_call_operand.vmem [shape: bf16[1152,128], index: 1, kind: input, shape index: {}]
  %s2 = inlined_call_operand.vmem [shape: f32[1,128], index: 2, kind: input, shape index: {}]
  %s3 = inlined_call_operand.vmem [shape: bf16[512,128], index: 3, kind: output, shape index: {}]
  %s4 = sld [smem:[#allocation0]]
  $region45: #{repvgg_forward.6} parent=0
    _
  %s6 = ssub.s32 1, %s4
  %s7 = scalar_select 0, %s6, %s4
  loop: start=0, step=1, limit=4
  $region2: #{repvgg_forward.6} parent=0 // loop_pre_header
    _
  $region3: #{repvgg_forward.6} parent=0 // loop_header
    %s9 = sphi 0, %s13
    %p10 = scmp.ge.s32.totalorder %s9, 4
    %s19 = sphi 0, %s21
    %s22 = sphi 0, %s19
    %s23 = sphi 0, %s22
    %s39 = sphi 0, %s23
    %s43 = sphi 0, %s43
    %s45 = sphi 0, %s43
    %s46 = sphi 0, %s45
    %s60 = sphi 0, %s46
    %s64 = sphi 0, %s64
    %s66 = sphi 0, %s64
    %s67 = sphi 0, %s66
    %s81 = sphi 0, %s67
    %s87 = sphi 0, %s89
    %s90 = sphi 0, %s87
    %s91 = sphi 0, %s90
    %s107 = sphi 0, %s91
  $region4: #{repvgg_forward.6} parent=0 // loop_header_branch
    %12 = sbr.rel (%p10) target = $region8
  $region5: #{repvgg_forward.6} parent=0 // loop_body
    %s14 = ssub.s32 %s9, 1
    %s15 = ssub.s32 %s9, 2
    %s16 = sadd.s32 %s9, 1
    %s17 = ssub.s32 %s9, %s16
    %p18 = scmp.eq.s32.totalorder %s17, 0
    %s20 = sadd.s32 %s19, 1
    %s21 = scalar_select %p18, %s19, %s20
    %p24 = pneg %p18
    %p25 = scmp.eq.s32.totalorder %s9, 1
    %p26 = por %p24, %p25
    %p27 = scmp.ne.s32.totalorder %s19, %s22
    %p28 = scmp.eq.s32.totalorder %s9, 0
    %p29 = por %p27, %p28
    %p30 = scmp.ne.s32.totalorder %s19, %s22
    %p31 = scmp.eq.s32.totalorder %s14, 1
    %p32 = por %p30, %p31
    %p33 = scmp.ne.s32.totalorder %s22, %s23
    %p34 = scmp.eq.s32.totalorder %s14, 0
    %p35 = por %p33, %p34
    %p36 = scmp.ne.s32.totalorder %s22, %s23
    %p37 = scmp.eq.s32.totalorder %s15, 1
    %p38 = por %p36, %p37
    %p40 = scmp.ne.s32.totalorder %s23, %s39
    %p41 = scmp.eq.s32.totalorder %s15, 0
    %p42 = por %p40, %p41
    %s44 = sadd.s32 %s43, 1
    %p47 = scmp.eq.s32.totalorder %s9, 1
    %p48 = scmp.ne.s32.totalorder %s43, %s45
    %p49 = scmp.eq.s32.totalorder %s9, 0
    %p50 = por %p48, %p49
    %p51 = scmp.ne.s32.totalorder %s43, %s45
    %p52 = scmp.eq.s32.totalorder %s14, 1
    %p53 = por %p51, %p52
    %p54 = scmp.ne.s32.totalorder %s45, %s46
    %p55 = scmp.eq.s32.totalorder %s14, 0
    %p56 = por %p54, %p55
    %p57 = scmp.ne.s32.totalorder %s45, %s46
    %p58 = scmp.eq.s32.totalorder %s15, 1
    %p59 = por %p57, %p58
    %p61 = scmp.ne.s32.totalorder %s46, %s60
    %p62 = scmp.eq.s32.totalorder %s15, 0
    %p63 = por %p61, %p62
    %s65 = sadd.s32 %s64, 1
    %p68 = scmp.eq.s32.totalorder %s9, 1
    %p69 = scmp.ne.s32.totalorder %s64, %s66
    %p70 = scmp.eq.s32.totalorder %s9, 0
    %p71 = por %p69, %p70
    %p72 = scmp.ne.s32.totalorder %s64, %s66
    %p73 = scmp.eq.s32.totalorder %s14, 1
    %p74 = por %p72, %p73
    %p75 = scmp.ne.s32.totalorder %s66, %s67
    %p76 = scmp.eq.s32.totalorder %s14, 0
    %p77 = por %p75, %p76
    %p78 = scmp.ne.s32.totalorder %s66, %s67
    %p79 = scmp.eq.s32.totalorder %s15, 1
    %p80 = por %p78, %p79
    %p82 = scmp.ne.s32.totalorder %s67, %s81
    %p83 = scmp.eq.s32.totalorder %s15, 0
    %p84 = por %p82, %p83
    %s85 = ssub.s32 %s9, %s16
    %p86 = scmp.eq.s32.totalorder %s85, 0
    %s88 = sadd.s32 %s87, 1
    %s89 = scalar_select %p86, %s87, %s88
    %p92 = pneg %p86
    %p93 = scmp.eq.s32.totalorder %s9, 1
    %p94 = por %p92, %p93
    %p95 = scmp.ne.s32.totalorder %s87, %s90
    %p96 = scmp.eq.s32.totalorder %s9, 0
    %p97 = por %p95, %p96
    %p98 = scmp.ne.s32.totalorder %s87, %s90
    %p99 = scmp.eq.s32.totalorder %s14, 1
    %p100 = por %p98, %p99
    %p101 = scmp.ne.s32.totalorder %s90, %s91
    %p102 = scmp.eq.s32.totalorder %s14, 0
    %p103 = por %p101, %p102
    %p104 = scmp.ne.s32.totalorder %s90, %s91
    %p105 = scmp.eq.s32.totalorder %s15, 1
    %p106 = por %p104, %p105
    %p108 = scmp.ne.s32.totalorder %s91, %s107
    %p109 = scmp.eq.s32.totalorder %s15, 0
    %p110 = por %p108, %p109
    %p111 = scmp.le.s32.totalorder 1, %s9
    %p112 = scmp.lt.s32.totalorder %s9, 3
    %p113 = pnand %p111, %p112
    %p114 = pneg %p113
    // Predicated region
    $region9: #{repvgg_forward.6} parent=5 // pred_check
      _
    $region10: #{repvgg_forward.6} parent=5 // pred_check_branch
      %116 = sbr.rel (%p113) target = $region12
    $region11: #{repvgg_forward.6} parent=5 // pred_region
      %s117 = ssub.s32 %s9, 1
      // Predicated region
      $region13: #{repvgg_forward.6} parent=11 // pred_check
        %p118 = pneg %p56
      $region14: #{repvgg_forward.6} parent=11 // pred_check_branch
        %120 = sbr.rel (%p118) target = $region16
      $region15: #{repvgg_forward.6} parent=11 // pred_region
        _
      $region16: #{repvgg_forward.6} parent=11 // pred_fallthru
        _
      // Predicated region
      $region17: #{repvgg_forward.6} parent=11 // pred_check
        %p121 = pneg %p77
      $region18: #{repvgg_forward.6} parent=11 // pred_check_branch
        %123 = sbr.rel (%p121) target = $region20
      $region19: #{repvgg_forward.6} parent=11 // pred_region
        _
      $region20: #{repvgg_forward.6} parent=11 // pred_fallthru
        _
    $region12: #{repvgg_forward.6} parent=5 // pred_fallthru
      _
    %p124 = scmp.lt.s32.totalorder %s9, 2
    // Predicated region
    $region21: #{repvgg_forward.6} parent=5 // pred_check
      %p125 = pneg %p124
    $region22: #{repvgg_forward.6} parent=5 // pred_check_branch
      %127 = sbr.rel (%p125) target = $region24
    $region23: #{repvgg_forward.6} parent=5 // pred_region
      // Predicated region
      $region25: #{repvgg_forward.6} parent=23 // pred_check
        %p128 = pneg %p29
      $region26: #{repvgg_forward.6} parent=23 // pred_check_branch
        %130 = sbr.rel (%p128) target = $region28
      $region27: #{repvgg_forward.6} parent=23 // pred_region
        %s131 = smul.u32 32, %s9
        %p132 = scmp.lt.s32.totalorder %s131, 63
        %s133 = scalar_select %p132, %s131, 63
        %s134 = smul.addr %s133, 9
        %s135 = smul.addr %s134, 4
        %s136 = scalar_lea.vmem %s0, %s135
        %s137 = smul.u32 32, %s9
      $region28: #{repvgg_forward.6} parent=23 // pred_fallthru
        _
    $region24: #{repvgg_forward.6} parent=5 // pred_fallthru
      _
    %p138 = scmp.le.s32.totalorder 1, %s9
    %p139 = scmp.lt.s32.totalorder %s9, 3
    %p140 = pnand %p138, %p139
    %p141 = pneg %p140
    // Predicated region
    $region29: #{repvgg_forward.6} parent=5 // pred_check
      _
    $region30: #{repvgg_forward.6} parent=5 // pred_check_branch
      %143 = sbr.rel (%p140) target = $region32
    $region31: #{repvgg_forward.6} parent=5 // pred_region
      %s144 = ssub.s32 %s9, 1
      %s145 = smul.u32 32, %s14
      %p146 = scmp.lt.s32.totalorder %s145, 63
      %s147 = scalar_select %p146, %s145, 63
      %s148 = smul.addr %s147, 9
      %s149 = smul.addr %s148, 4
      %s150 = scalar_lea.vmem %s0, %s149
      %p151 = pneg %p35
      %p152 = pneg %p32
      %p153 = pneg %p56
      %p154 = pneg %p53
      %p155 = pneg %p77
      %p156 = pneg %p74
      %p157 = pneg %p103
      %p158 = pneg %p100
      %s159 = smul.u32 32, %s14
      %p160 = scmp.lt.s32.totalorder %s159, 63
      %s161 = scalar_select %p160, %s159, 63
      %s162 = smul.addr %s161, 4
      %s163 = scalar_lea.vmem %s3, %s162
      %s164 = smul.u32 32, %s14
      %p165 = scmp.lt.s32.totalorder %s164, 63
      %s166 = scalar_select %p165, %s164, 63
      %s167 = smul.addr %s166, 9
      %s168 = smul.addr %s167, 4
      %s169 = scalar_lea.vmem %s0, %s168
      %s170 = smul.u32 32, %s14
      %s171 = smul.u32 32, %s14
      %p172 = scmp.lt.s32.totalorder %s171, 63
      %s173 = scalar_select %p172, %s171, 63
      %s174 = smul.addr %s173, 4
      %s175 = scalar_lea.vmem %s3, %s174
      %s176 = smul.u32 32, %s14
      %v178 = vld [vmem:[%s169] sm:$0xff]
      %v179 = vld [vmem:[%s169 + $0x8] sm:$0xff]
      %v180 = vld [vmem:[%s169 + $0x10] sm:$0xff]
      %v181 = vld [vmem:[%s169 + $0x18] sm:$0xff]
      %v182 = vld [vmem:[%s169 + $0x20] sm:$0xf]
      %v183 = vld [vmem:[%s169 + $0x24] sm:$0xff]
      %v184 = vld [vmem:[%s169 + $0x2c] sm:$0xff]
      %v185 = vld [vmem:[%s169 + $0x34] sm:$0xff]
      %v186 = vld [vmem:[%s169 + $0x3c] sm:$0xff]
      %v187 = vld [vmem:[%s169 + $0x44] sm:$0xf]
      %v188 = vld [vmem:[%s169 + $0x48] sm:$0xff]
      %v189 = vld [vmem:[%s169 + $0x50] sm:$0xff]
      %v190 = vld [vmem:[%s169 + $0x58] sm:$0xff]
      %v191 = vld [vmem:[%s169 + $0x60] sm:$0xff]
      %v192 = vld [vmem:[%s169 + $0x68] sm:$0xf]
      %v193 = vld [vmem:[%s169 + $0x6c] sm:$0xff]
      %v194 = vld [vmem:[%s169 + $0x74] sm:$0xff]
      %v195 = vld [vmem:[%s169 + $0x7c] sm:$0xff]
      %v196 = vld [vmem:[%s169 + $0x84] sm:$0xff]
      %v197 = vld [vmem:[%s169 + $0x8c] sm:$0xf]
      %v198 = vld [vmem:[%s169 + $0x90] sm:$0xff]
      %v199 = vld [vmem:[%s169 + $0x98] sm:$0xff]
      %v200 = vld [vmem:[%s169 + $0xa0] sm:$0xff]
      %v201 = vld [vmem:[%s169 + $0xa8] sm:$0xff]
      %v202 = vld [vmem:[%s169 + $0xb0] sm:$0xf]
      %v203 = vld [vmem:[%s169 + $0xb4] sm:$0xff]
      %v204 = vld [vmem:[%s169 + $0xbc] sm:$0xff]
      %v205 = vld [vmem:[%s169 + $0xc4] sm:$0xff]
      %v206 = vld [vmem:[%s169 + $0xcc] sm:$0xff]
      %v207 = vld [vmem:[%s169 + $0xd4] sm:$0xf]
      %v208 = vld [vmem:[%s169 + $0xd8] sm:$0xff]
      %v209 = vld [vmem:[%s169 + $0xe0] sm:$0xff]
      %v210 = vld [vmem:[%s169 + $0xe8] sm:$0xff]
      %v211 = vld [vmem:[%s169 + $0xf0] sm:$0xff]
      %v212 = vld [vmem:[%s169 + $0xf8] sm:$0xf]
      %v213 = vld [vmem:[%s169 + $0xfc] sm:$0xff]
      %v214 = vld [vmem:[%s169 + $0x104] sm:$0xff]
      %v215 = vld [vmem:[%s169 + $0x10c] sm:$0xff]
      %v216 = vld [vmem:[%s169 + $0x114] sm:$0xff]
      %v217 = vld [vmem:[%s169 + $0x11c] sm:$0xf]
      %v218 = vld [vmem:[%s169 + $0x120] sm:$0xff]
      %v219 = vld [vmem:[%s169 + $0x128] sm:$0xff]
      %v220 = vld [vmem:[%s169 + $0x130] sm:$0xff]
      %v221 = vld [vmem:[%s169 + $0x138] sm:$0xff]
      %v222 = vld [vmem:[%s169 + $0x140] sm:$0xf]
      %v223 = vld [vmem:[%s169 + $0x144] sm:$0xff]
      %v224 = vld [vmem:[%s169 + $0x14c] sm:$0xff]
      %v225 = vld [vmem:[%s169 + $0x154] sm:$0xff]
      %v226 = vld [vmem:[%s169 + $0x15c] sm:$0xff]
      %v227 = vld [vmem:[%s169 + $0x164] sm:$0xf]
      %v228 = vld [vmem:[%s169 + $0x168] sm:$0xff]
      %v229 = vld [vmem:[%s169 + $0x170] sm:$0xff]
      %v230 = vld [vmem:[%s169 + $0x178] sm:$0xff]
      %v231 = vld [vmem:[%s169 + $0x180] sm:$0xff]
      %v232 = vld [vmem:[%s169 + $0x188] sm:$0xf]
      %v233 = vld [vmem:[%s169 + $0x18c] sm:$0xff]
      %v234 = vld [vmem:[%s169 + $0x194] sm:$0xff]
      %v235 = vld [vmem:[%s169 + $0x19c] sm:$0xff]
      %v236 = vld [vmem:[%s169 + $0x1a4] sm:$0xff]
      %v237 = vld [vmem:[%s169 + $0x1ac] sm:$0xf]
      %v238 = vld [vmem:[%s169 + $0x1b0] sm:$0xff]
      %v239 = vld [vmem:[%s169 + $0x1b8] sm:$0xff]
      %v240 = vld [vmem:[%s169 + $0x1c0] sm:$0xff]
      %v241 = vld [vmem:[%s169 + $0x1c8] sm:$0xff]
      %v242 = vld [vmem:[%s169 + $0x1d0] sm:$0xf]
      %v243 = vld [vmem:[%s169 + $0x1d4] sm:$0xff]
      %v244 = vld [vmem:[%s169 + $0x1dc] sm:$0xff]
      %v245 = vld [vmem:[%s169 + $0x1e4] sm:$0xff]
      %v246 = vld [vmem:[%s169 + $0x1ec] sm:$0xff]
      %v247 = vld [vmem:[%s169 + $0x1f4] sm:$0xf]
      %v248 = vld [vmem:[%s169 + $0x1f8] sm:$0xff]
      %v249 = vld [vmem:[%s169 + $0x200] sm:$0xff]
      %v250 = vld [vmem:[%s169 + $0x208] sm:$0xff]
      %v251 = vld [vmem:[%s169 + $0x210] sm:$0xff]
      %v252 = vld [vmem:[%s169 + $0x218] sm:$0xf]
      %v253 = vld [vmem:[%s169 + $0x21c] sm:$0xff]
      %v254 = vld [vmem:[%s169 + $0x224] sm:$0xff]
      %v255 = vld [vmem:[%s169 + $0x22c] sm:$0xff]
      %v256 = vld [vmem:[%s169 + $0x234] sm:$0xff]
      %v257 = vld [vmem:[%s169 + $0x23c] sm:$0xf]
      %v258 = vld [vmem:[%s169 + $0x240] sm:$0xff]
      %v259 = vld [vmem:[%s169 + $0x248] sm:$0xff]
      %v260 = vld [vmem:[%s169 + $0x250] sm:$0xff]
      %v261 = vld [vmem:[%s169 + $0x258] sm:$0xff]
      %v262 = vld [vmem:[%s169 + $0x260] sm:$0xf]
      %v263 = vld [vmem:[%s169 + $0x264] sm:$0xff]
      %v264 = vld [vmem:[%s169 + $0x26c] sm:$0xff]
      %v265 = vld [vmem:[%s169 + $0x274] sm:$0xff]
      %v266 = vld [vmem:[%s169 + $0x27c] sm:$0xff]
      %v267 = vld [vmem:[%s169 + $0x284] sm:$0xf]
      %v268 = vld [vmem:[%s169 + $0x288] sm:$0xff]
      %v269 = vld [vmem:[%s169 + $0x290] sm:$0xff]
      %v270 = vld [vmem:[%s169 + $0x298] sm:$0xff]
      %v271 = vld [vmem:[%s169 + $0x2a0] sm:$0xff]
      %v272 = vld [vmem:[%s169 + $0x2a8] sm:$0xf]
      %v273 = vld [vmem:[%s169 + $0x2ac] sm:$0xff]
      %v274 = vld [vmem:[%s169 + $0x2b4] sm:$0xff]
      %v275 = vld [vmem:[%s169 + $0x2bc] sm:$0xff]
      %v276 = vld [vmem:[%s169 + $0x2c4] sm:$0xff]
      %v277 = vld [vmem:[%s169 + $0x2cc] sm:$0xf]
      %v278 = vld [vmem:[%s169 + $0x2d0] sm:$0xff]
      %v279 = vld [vmem:[%s169 + $0x2d8] sm:$0xff]
      %v280 = vld [vmem:[%s169 + $0x2e0] sm:$0xff]
      %v281 = vld [vmem:[%s169 + $0x2e8] sm:$0xff]
      %v282 = vld [vmem:[%s169 + $0x2f0] sm:$0xf]
      %v283 = vld [vmem:[%s169 + $0x2f4] sm:$0xff]
      %v284 = vld [vmem:[%s169 + $0x2fc] sm:$0xff]
      %v285 = vld [vmem:[%s169 + $0x304] sm:$0xff]
      %v286 = vld [vmem:[%s169 + $0x30c] sm:$0xff]
      %v287 = vld [vmem:[%s169 + $0x314] sm:$0xf]
      %v288 = vld [vmem:[%s169 + $0x318] sm:$0xff]
      %v289 = vld [vmem:[%s169 + $0x320] sm:$0xff]
      %v290 = vld [vmem:[%s169 + $0x328] sm:$0xff]
      %v291 = vld [vmem:[%s169 + $0x330] sm:$0xff]
      %v292 = vld [vmem:[%s169 + $0x338] sm:$0xf]
      %v293 = vld [vmem:[%s169 + $0x33c] sm:$0xff]
      %v294 = vld [vmem:[%s169 + $0x344] sm:$0xff]
      %v295 = vld [vmem:[%s169 + $0x34c] sm:$0xff]
      %v296 = vld [vmem:[%s169 + $0x354] sm:$0xff]
      %v297 = vld [vmem:[%s169 + $0x35c] sm:$0xf]
      %v298 = vld [vmem:[%s169 + $0x360] sm:$0xff]
      %v299 = vld [vmem:[%s169 + $0x368] sm:$0xff]
      %v300 = vld [vmem:[%s169 + $0x370] sm:$0xff]
      %v301 = vld [vmem:[%s169 + $0x378] sm:$0xff]
      %v302 = vld [vmem:[%s169 + $0x380] sm:$0xf]
      %v303 = vld [vmem:[%s169 + $0x384] sm:$0xff]
      %v304 = vld [vmem:[%s169 + $0x38c] sm:$0xff]
      %v305 = vld [vmem:[%s169 + $0x394] sm:$0xff]
      %v306 = vld [vmem:[%s169 + $0x39c] sm:$0xff]
      %v307 = vld [vmem:[%s169 + $0x3a4] sm:$0xf]
      %v308 = vld [vmem:[%s169 + $0x3a8] sm:$0xff]
      %v309 = vld [vmem:[%s169 + $0x3b0] sm:$0xff]
      %v310 = vld [vmem:[%s169 + $0x3b8] sm:$0xff]
      %v311 = vld [vmem:[%s169 + $0x3c0] sm:$0xff]
      %v312 = vld [vmem:[%s169 + $0x3c8] sm:$0xf]
      %v313 = vld [vmem:[%s169 + $0x3cc] sm:$0xff]
      %v314 = vld [vmem:[%s169 + $0x3d4] sm:$0xff]
      %v315 = vld [vmem:[%s169 + $0x3dc] sm:$0xff]
      %v316 = vld [vmem:[%s169 + $0x3e4] sm:$0xff]
      %v317 = vld [vmem:[%s169 + $0x3ec] sm:$0xf]
      %v318 = vld [vmem:[%s169 + $0x3f0] sm:$0xff]
      %v319 = vld [vmem:[%s169 + $0x3f8] sm:$0xff]
      %v320 = vld [vmem:[%s169 + $0x400] sm:$0xff]
      %v321 = vld [vmem:[%s169 + $0x408] sm:$0xff]
      %v322 = vld [vmem:[%s169 + $0x410] sm:$0xf]
      %v323 = vld [vmem:[%s169 + $0x414] sm:$0xff]
      %v324 = vld [vmem:[%s169 + $0x41c] sm:$0xff]
      %v325 = vld [vmem:[%s169 + $0x424] sm:$0xff]
      %v326 = vld [vmem:[%s169 + $0x42c] sm:$0xff]
      %v327 = vld [vmem:[%s169 + $0x434] sm:$0xf]
      %v328 = vld [vmem:[%s169 + $0x438] sm:$0xff]
      %v329 = vld [vmem:[%s169 + $0x440] sm:$0xff]
      %v330 = vld [vmem:[%s169 + $0x448] sm:$0xff]
      %v331 = vld [vmem:[%s169 + $0x450] sm:$0xff]
      %v332 = vld [vmem:[%s169 + $0x458] sm:$0xf]
      %v333 = vld [vmem:[%s169 + $0x45c] sm:$0xff]
      %v334 = vld [vmem:[%s169 + $0x464] sm:$0xff]
      %v335 = vld [vmem:[%s169 + $0x46c] sm:$0xff]
      %v336 = vld [vmem:[%s169 + $0x474] sm:$0xff]
      %v337 = vld [vmem:[%s169 + $0x47c] sm:$0xf]
      %v338 = vld [vmem:[%s1] sm:$0xf]
      %v339 = vld [vmem:[%s1 + $0x4] sm:$0xf]
      %v340 = vld [vmem:[%s1 + $0x8] sm:$0xf]
      %v341 = vld [vmem:[%s1 + $0xc] sm:$0xf]
      %v342 = vld [vmem:[%s1 + $0x10] sm:$0xf]
      %v343 = vld [vmem:[%s1 + $0x14] sm:$0xf]
      %v344 = vld [vmem:[%s1 + $0x18] sm:$0xf]
      %v345 = vld [vmem:[%s1 + $0x1c] sm:$0xf]
      %v346 = vld [vmem:[%s1 + $0x20] sm:$0xf]
      %v347 = vld [vmem:[%s1 + $0x24] sm:$0xf]
      %v348 = vld [vmem:[%s1 + $0x28] sm:$0xf]
      %v349 = vld [vmem:[%s1 + $0x2c] sm:$0xf]
      %v350 = vld [vmem:[%s1 + $0x30] sm:$0xf]
      %v351 = vld [vmem:[%s1 + $0x34] sm:$0xf]
      %v352 = vld [vmem:[%s1 + $0x38] sm:$0xf]
      %v353 = vld [vmem:[%s1 + $0x3c] sm:$0xf]
      %v354 = vld [vmem:[%s1 + $0x40] sm:$0xf]
      %v355 = vld [vmem:[%s1 + $0x44] sm:$0xf]
      %v356 = vld [vmem:[%s1 + $0x48] sm:$0xf]
      %v357 = vld [vmem:[%s1 + $0x4c] sm:$0xf]
      %v358 = vld [vmem:[%s1 + $0x50] sm:$0xf]
      %v359 = vld [vmem:[%s1 + $0x54] sm:$0xf]
      %v360 = vld [vmem:[%s1 + $0x58] sm:$0xf]
      %v361 = vld [vmem:[%s1 + $0x5c] sm:$0xf]
      %v362 = vld [vmem:[%s1 + $0x60] sm:$0xf]
      %v363 = vld [vmem:[%s1 + $0x64] sm:$0xf]
      %v364 = vld [vmem:[%s1 + $0x68] sm:$0xf]
      %v365 = vld [vmem:[%s1 + $0x6c] sm:$0xf]
      %v366 = vld [vmem:[%s1 + $0x70] sm:$0xf]
      %v367 = vld [vmem:[%s1 + $0x74] sm:$0xf]
      %v368 = vld [vmem:[%s1 + $0x78] sm:$0xf]
      %v369 = vld [vmem:[%s1 + $0x7c] sm:$0xf]
      %v370 = vld [vmem:[%s1 + $0x80] sm:$0xf]
      %v371 = vld [vmem:[%s1 + $0x84] sm:$0xf]
      %v372 = vld [vmem:[%s1 + $0x88] sm:$0xf]
      %v373 = vld [vmem:[%s1 + $0x8c] sm:$0xf]
      %v374 = vld [vmem:[%s1 + $0x90] sm:$0xf]
      %v375 = vld [vmem:[%s1 + $0x94] sm:$0xf]
      %v376 = vld [vmem:[%s1 + $0x98] sm:$0xf]
      %v377 = vld [vmem:[%s1 + $0x9c] sm:$0xf]
      %v378 = vld [vmem:[%s1 + $0xa0] sm:$0xf]
      %v379 = vld [vmem:[%s1 + $0xa4] sm:$0xf]
      %v380 = vld [vmem:[%s1 + $0xa8] sm:$0xf]
      %v381 = vld [vmem:[%s1 + $0xac] sm:$0xf]
      %v382 = vld [vmem:[%s1 + $0xb0] sm:$0xf]
      %v383 = vld [vmem:[%s1 + $0xb4] sm:$0xf]
      %v384 = vld [vmem:[%s1 + $0xb8] sm:$0xf]
      %v385 = vld [vmem:[%s1 + $0xbc] sm:$0xf]
      %v386 = vld [vmem:[%s1 + $0xc0] sm:$0xf]
      %v387 = vld [vmem:[%s1 + $0xc4] sm:$0xf]
      %v388 = vld [vmem:[%s1 + $0xc8] sm:$0xf]
      %v389 = vld [vmem:[%s1 + $0xcc] sm:$0xf]
      %v390 = vld [vmem:[%s1 + $0xd0] sm:$0xf]
      %v391 = vld [vmem:[%s1 + $0xd4] sm:$0xf]
      %v392 = vld [vmem:[%s1 + $0xd8] sm:$0xf]
      %v393 = vld [vmem:[%s1 + $0xdc] sm:$0xf]
      %v394 = vld [vmem:[%s1 + $0xe0] sm:$0xf]
      %v395 = vld [vmem:[%s1 + $0xe4] sm:$0xf]
      %v396 = vld [vmem:[%s1 + $0xe8] sm:$0xf]
      %v397 = vld [vmem:[%s1 + $0xec] sm:$0xf]
      %v398 = vld [vmem:[%s1 + $0xf0] sm:$0xf]
      %v399 = vld [vmem:[%s1 + $0xf4] sm:$0xf]
      %v400 = vld [vmem:[%s1 + $0xf8] sm:$0xf]
      %v401 = vld [vmem:[%s1 + $0xfc] sm:$0xf]
      %v402 = vld [vmem:[%s1 + $0x100] sm:$0xf]
      %v403 = vld [vmem:[%s1 + $0x104] sm:$0xf]
      %v404 = vld [vmem:[%s1 + $0x108] sm:$0xf]
      %v405 = vld [vmem:[%s1 + $0x10c] sm:$0xf]
      %v406 = vld [vmem:[%s1 + $0x110] sm:$0xf]
      %v407 = vld [vmem:[%s1 + $0x114] sm:$0xf]
      %v408 = vld [vmem:[%s1 + $0x118] sm:$0xf]
      %v409 = vld [vmem:[%s1 + $0x11c] sm:$0xf]
      %v410 = vld [vmem:[%s1 + $0x120] sm:$0xf]
      %v411 = vld [vmem:[%s1 + $0x124] sm:$0xf]
      %v412 = vld [vmem:[%s1 + $0x128] sm:$0xf]
      %v413 = vld [vmem:[%s1 + $0x12c] sm:$0xf]
      %v414 = vld [vmem:[%s1 + $0x130] sm:$0xf]
      %v415 = vld [vmem:[%s1 + $0x134] sm:$0xf]
      %v416 = vld [vmem:[%s1 + $0x138] sm:$0xf]
      %v417 = vld [vmem:[%s1 + $0x13c] sm:$0xf]
      %v418 = vld [vmem:[%s1 + $0x140] sm:$0xf]
      %v419 = vld [vmem:[%s1 + $0x144] sm:$0xf]
      %v420 = vld [vmem:[%s1 + $0x148] sm:$0xf]
      %v421 = vld [vmem:[%s1 + $0x14c] sm:$0xf]
      %v422 = vld [vmem:[%s1 + $0x150] sm:$0xf]
      %v423 = vld [vmem:[%s1 + $0x154] sm:$0xf]
      %v424 = vld [vmem:[%s1 + $0x158] sm:$0xf]
      %v425 = vld [vmem:[%s1 + $0x15c] sm:$0xf]
      %v426 = vld [vmem:[%s1 + $0x160] sm:$0xf]
      %v427 = vld [vmem:[%s1 + $0x164] sm:$0xf]
      %v428 = vld [vmem:[%s1 + $0x168] sm:$0xf]
      %v429 = vld [vmem:[%s1 + $0x16c] sm:$0xf]
      %v430 = vld [vmem:[%s1 + $0x170] sm:$0xf]
      %v431 = vld [vmem:[%s1 + $0x174] sm:$0xf]
      %v432 = vld [vmem:[%s1 + $0x178] sm:$0xf]
      %v433 = vld [vmem:[%s1 + $0x17c] sm:$0xf]
      %v434 = vld [vmem:[%s1 + $0x180] sm:$0xf]
      %v435 = vld [vmem:[%s1 + $0x184] sm:$0xf]
      %v436 = vld [vmem:[%s1 + $0x188] sm:$0xf]
      %v437 = vld [vmem:[%s1 + $0x18c] sm:$0xf]
      %v438 = vld [vmem:[%s1 + $0x190] sm:$0xf]
      %v439 = vld [vmem:[%s1 + $0x194] sm:$0xf]
      %v440 = vld [vmem:[%s1 + $0x198] sm:$0xf]
      %v441 = vld [vmem:[%s1 + $0x19c] sm:$0xf]
      %v442 = vld [vmem:[%s1 + $0x1a0] sm:$0xf]
      %v443 = vld [vmem:[%s1 + $0x1a4] sm:$0xf]
      %v444 = vld [vmem:[%s1 + $0x1a8] sm:$0xf]
      %v445 = vld [vmem:[%s1 + $0x1ac] sm:$0xf]
      %v446 = vld [vmem:[%s1 + $0x1b0] sm:$0xf]
      %v447 = vld [vmem:[%s1 + $0x1b4] sm:$0xf]
      %v448 = vld [vmem:[%s1 + $0x1b8] sm:$0xf]
      %v449 = vld [vmem:[%s1 + $0x1bc] sm:$0xf]
      %v450 = vld [vmem:[%s1 + $0x1c0] sm:$0xf]
      %v451 = vld [vmem:[%s1 + $0x1c4] sm:$0xf]
      %v452 = vld [vmem:[%s1 + $0x1c8] sm:$0xf]
      %v453 = vld [vmem:[%s1 + $0x1cc] sm:$0xf]
      %v454 = vld [vmem:[%s1 + $0x1d0] sm:$0xf]
      %v455 = vld [vmem:[%s1 + $0x1d4] sm:$0xf]
      %v456 = vld [vmem:[%s1 + $0x1d8] sm:$0xf]
      %v457 = vld [vmem:[%s1 + $0x1dc] sm:$0xf]
      %v458 = vld [vmem:[%s1 + $0x1e0] sm:$0xf]
      %v459 = vld [vmem:[%s1 + $0x1e4] sm:$0xf]
      %v460 = vld [vmem:[%s1 + $0x1e8] sm:$0xf]
      %v461 = vld [vmem:[%s1 + $0x1ec] sm:$0xf]
      %v462 = vld [vmem:[%s1 + $0x1f0] sm:$0xf]
      %v463 = vld [vmem:[%s1 + $0x1f4] sm:$0xf]
      %v464 = vld [vmem:[%s1 + $0x1f8] sm:$0xf]
      %v465 = vld [vmem:[%s1 + $0x1fc] sm:$0xf]
      %v466 = vld [vmem:[%s1 + $0x200] sm:$0xf]
      %v467 = vld [vmem:[%s1 + $0x204] sm:$0xf]
      %v468 = vld [vmem:[%s1 + $0x208] sm:$0xf]
      %v469 = vld [vmem:[%s1 + $0x20c] sm:$0xf]
      %v470 = vld [vmem:[%s1 + $0x210] sm:$0xf]
      %v471 = vld [vmem:[%s1 + $0x214] sm:$0xf]
      %v472 = vld [vmem:[%s1 + $0x218] sm:$0xf]
      %v473 = vld [vmem:[%s1 + $0x21c] sm:$0xf]
      %v474 = vld [vmem:[%s1 + $0x220] sm:$0xf]
      %v475 = vld [vmem:[%s1 + $0x224] sm:$0xf]
      %v476 = vld [vmem:[%s1 + $0x228] sm:$0xf]
      %v477 = vld [vmem:[%s1 + $0x22c] sm:$0xf]
      %v478 = vld [vmem:[%s1 + $0x230] sm:$0xf]
      %v479 = vld [vmem:[%s1 + $0x234] sm:$0xf]
      %v480 = vld [vmem:[%s1 + $0x238] sm:$0xf]
      %v481 = vld [vmem:[%s1 + $0x23c] sm:$0xf]
      %v482 = vld [vmem:[%s2] sm:$0x1]
      %v484 = vlaneseq
      %v485 = vshrl.u32 %v484, 7
      %v486 = vsub.s32 0, %v485
      %v487 = vrot.slane %v482, %v486
      %v649 = vunpack.c.l.b16 %v178
      %v650 = vunpack.c.h.b16 %v178
      %v651 = vunpack.c.l.b16 %v179
      %v652 = vunpack.c.h.b16 %v179
      %v653 = vunpack.c.l.b16 %v180
      %v654 = vunpack.c.h.b16 %v180
      %v655 = vunpack.c.l.b16 %v181
      %v656 = vunpack.c.h.b16 %v181
      %v657 = vunpack.c.l.b16 %v182
      %v658 = vunpack.c.l.b16 %v183
      %v659 = vunpack.c.h.b16 %v183
      %v660 = vunpack.c.l.b16 %v184
      %v661 = vunpack.c.h.b16 %v184
      %v662 = vunpack.c.l.b16 %v185
      %v663 = vunpack.c.h.b16 %v185
      %v664 = vunpack.c.l.b16 %v186
      %v665 = vunpack.c.h.b16 %v186
      %v666 = vunpack.c.l.b16 %v187
      %v667 = vunpack.c.l.b16 %v188
      %v668 = vunpack.c.h.b16 %v188
      %v669 = vunpack.c.l.b16 %v189
      %v670 = vunpack.c.h.b16 %v189
      %v671 = vunpack.c.l.b16 %v190
      %v672 = vunpack.c.h.b16 %v190
      %v673 = vunpack.c.l.b16 %v191
      %v674 = vunpack.c.h.b16 %v191
      %v675 = vunpack.c.l.b16 %v192
      %v676 = vunpack.c.l.b16 %v193
      %v677 = vunpack.c.h.b16 %v193
      %v678 = vunpack.c.l.b16 %v194
      %v679 = vunpack.c.h.b16 %v194
      %v680 = vunpack.c.l.b16 %v195
      %v681 = vunpack.c.h.b16 %v195
      %v682 = vunpack.c.l.b16 %v196
      %v683 = vunpack.c.h.b16 %v196
      %v684 = vunpack.c.l.b16 %v197
      %v685 = vunpack.c.l.b16 %v198
      %v686 = vunpack.c.h.b16 %v198
      %v687 = vunpack.c.l.b16 %v199
      %v688 = vunpack.c.h.b16 %v199
      %v689 = vunpack.c.l.b16 %v200
      %v690 = vunpack.c.h.b16 %v200
      %v691 = vunpack.c.l.b16 %v201
      %v692 = vunpack.c.h.b16 %v201
      %v693 = vunpack.c.l.b16 %v202
      %v694 = vunpack.c.l.b16 %v203
      %v695 = vunpack.c.h.b16 %v203
      %v696 = vunpack.c.l.b16 %v204
      %v697 = vunpack.c.h.b16 %v204
      %v698 = vunpack.c.l.b16 %v205
      %v699 = vunpack.c.h.b16 %v205
      %v700 = vunpack.c.l.b16 %v206
      %v701 = vunpack.c.h.b16 %v206
      %v702 = vunpack.c.l.b16 %v207
      %v703 = vunpack.c.l.b16 %v208
      %v704 = vunpack.c.h.b16 %v208
      %v705 = vunpack.c.l.b16 %v209
      %v706 = vunpack.c.h.b16 %v209
      %v707 = vunpack.c.l.b16 %v210
      %v708 = vunpack.c.h.b16 %v210
      %v709 = vunpack.c.l.b16 %v211
      %v710 = vunpack.c.h.b16 %v211
      %v711 = vunpack.c.l.b16 %v212
      %v712 = vunpack.c.l.b16 %v213
      %v713 = vunpack.c.h.b16 %v213
      %v714 = vunpack.c.l.b16 %v214
      %v715 = vunpack.c.h.b16 %v214
      %v716 = vunpack.c.l.b16 %v215
      %v717 = vunpack.c.h.b16 %v215
      %v718 = vunpack.c.l.b16 %v216
      %v719 = vunpack.c.h.b16 %v216
      %v720 = vunpack.c.l.b16 %v217
      %v721 = vunpack.c.l.b16 %v218
      %v722 = vunpack.c.h.b16 %v218
      %v723 = vunpack.c.l.b16 %v219
      %v724 = vunpack.c.h.b16 %v219
      %v725 = vunpack.c.l.b16 %v220
      %v726 = vunpack.c.h.b16 %v220
      %v727 = vunpack.c.l.b16 %v221
      %v728 = vunpack.c.h.b16 %v221
      %v729 = vunpack.c.l.b16 %v222
      %v730 = vunpack.c.l.b16 %v223
      %v731 = vunpack.c.h.b16 %v223
      %v732 = vunpack.c.l.b16 %v224
      %v733 = vunpack.c.h.b16 %v224
      %v734 = vunpack.c.l.b16 %v225
      %v735 = vunpack.c.h.b16 %v225
      %v736 = vunpack.c.l.b16 %v226
      %v737 = vunpack.c.h.b16 %v226
      %v738 = vunpack.c.l.b16 %v227
      %v739 = vunpack.c.l.b16 %v228
      %v740 = vunpack.c.h.b16 %v228
      %v741 = vunpack.c.l.b16 %v229
      %v742 = vunpack.c.h.b16 %v229
      %v743 = vunpack.c.l.b16 %v230
      %v744 = vunpack.c.h.b16 %v230
      %v745 = vunpack.c.l.b16 %v231
      %v746 = vunpack.c.h.b16 %v231
      %v747 = vunpack.c.l.b16 %v232
      %v748 = vunpack.c.l.b16 %v233
      %v749 = vunpack.c.h.b16 %v233
      %v750 = vunpack.c.l.b16 %v234
      %v751 = vunpack.c.h.b16 %v234
      %v752 = vunpack.c.l.b16 %v235
      %v753 = vunpack.c.h.b16 %v235
      %v754 = vunpack.c.l.b16 %v236
      %v755 = vunpack.c.h.b16 %v236
      %v756 = vunpack.c.l.b16 %v237
      %v757 = vunpack.c.l.b16 %v238
      %v758 = vunpack.c.h.b16 %v238
      %v759 = vunpack.c.l.b16 %v239
      %v760 = vunpack.c.h.b16 %v239
      %v761 = vunpack.c.l.b16 %v240
      %v762 = vunpack.c.h.b16 %v240
      %v763 = vunpack.c.l.b16 %v241
      %v764 = vunpack.c.h.b16 %v241
      %v765 = vunpack.c.l.b16 %v242
      %v766 = vunpack.c.l.b16 %v243
      %v767 = vunpack.c.h.b16 %v243
      %v768 = vunpack.c.l.b16 %v244
      %v769 = vunpack.c.h.b16 %v244
      %v770 = vunpack.c.l.b16 %v245
      %v771 = vunpack.c.h.b16 %v245
      %v772 = vunpack.c.l.b16 %v246
      %v773 = vunpack.c.h.b16 %v246
      %v774 = vunpack.c.l.b16 %v247
      %v775 = vunpack.c.l.b16 %v248
      %v776 = vunpack.c.h.b16 %v248
      %v777 = vunpack.c.l.b16 %v249
      %v778 = vunpack.c.h.b16 %v249
      %v779 = vunpack.c.l.b16 %v250
      %v780 = vunpack.c.h.b16 %v250
      %v781 = vunpack.c.l.b16 %v251
      %v782 = vunpack.c.h.b16 %v251
      %v783 = vunpack.c.l.b16 %v252
      %v784 = vunpack.c.l.b16 %v253
      %v785 = vunpack.c.h.b16 %v253
      %v786 = vunpack.c.l.b16 %v254
      %v787 = vunpack.c.h.b16 %v254
      %v788 = vunpack.c.l.b16 %v255
      %v789 = vunpack.c.h.b16 %v255
      %v790 = vunpack.c.l.b16 %v256
      %v791 = vunpack.c.h.b16 %v256
      %v792 = vunpack.c.l.b16 %v257
      %v793 = vunpack.c.l.b16 %v258
      %v794 = vunpack.c.h.b16 %v258
      %v795 = vunpack.c.l.b16 %v259
      %v796 = vunpack.c.h.b16 %v259
      %v797 = vunpack.c.l.b16 %v260
      %v798 = vunpack.c.h.b16 %v260
      %v799 = vunpack.c.l.b16 %v261
      %v800 = vunpack.c.h.b16 %v261
      %v801 = vunpack.c.l.b16 %v262
      %v802 = vunpack.c.l.b16 %v263
      %v803 = vunpack.c.h.b16 %v263
      %v804 = vunpack.c.l.b16 %v264
      %v805 = vunpack.c.h.b16 %v264
      %v806 = vunpack.c.l.b16 %v265
      %v807 = vunpack.c.h.b16 %v265
      %v808 = vunpack.c.l.b16 %v266
      %v809 = vunpack.c.h.b16 %v266
      %v810 = vunpack.c.l.b16 %v267
      %v811 = vunpack.c.l.b16 %v268
      %v812 = vunpack.c.h.b16 %v268
      %v813 = vunpack.c.l.b16 %v269
      %v814 = vunpack.c.h.b16 %v269
      %v815 = vunpack.c.l.b16 %v270
      %v816 = vunpack.c.h.b16 %v270
      %v817 = vunpack.c.l.b16 %v271
      %v818 = vunpack.c.h.b16 %v271
      %v819 = vunpack.c.l.b16 %v272
      %v820 = vunpack.c.l.b16 %v273
      %v821 = vunpack.c.h.b16 %v273
      %v822 = vunpack.c.l.b16 %v274
      %v823 = vunpack.c.h.b16 %v274
      %v824 = vunpack.c.l.b16 %v275
      %v825 = vunpack.c.h.b16 %v275
      %v826 = vunpack.c.l.b16 %v276
      %v827 = vunpack.c.h.b16 %v276
      %v828 = vunpack.c.l.b16 %v277
      %v829 = vunpack.c.l.b16 %v278
      %v830 = vunpack.c.h.b16 %v278
      %v831 = vunpack.c.l.b16 %v279
      %v832 = vunpack.c.h.b16 %v279
      %v833 = vunpack.c.l.b16 %v280
      %v834 = vunpack.c.h.b16 %v280
      %v835 = vunpack.c.l.b16 %v281
      %v836 = vunpack.c.h.b16 %v281
      %v837 = vunpack.c.l.b16 %v282
      %v838 = vunpack.c.l.b16 %v283
      %v839 = vunpack.c.h.b16 %v283
      %v840 = vunpack.c.l.b16 %v284
      %v841 = vunpack.c.h.b16 %v284
      %v842 = vunpack.c.l.b16 %v285
      %v843 = vunpack.c.h.b16 %v285
      %v844 = vunpack.c.l.b16 %v286
      %v845 = vunpack.c.h.b16 %v286
      %v846 = vunpack.c.l.b16 %v287
      %v847 = vunpack.c.l.b16 %v288
      %v848 = vunpack.c.h.b16 %v288
      %v849 = vunpack.c.l.b16 %v289
      %v850 = vunpack.c.h.b16 %v289
      %v851 = vunpack.c.l.b16 %v290
      %v852 = vunpack.c.h.b16 %v290
      %v853 = vunpack.c.l.b16 %v291
      %v854 = vunpack.c.h.b16 %v291
      %v855 = vunpack.c.l.b16 %v292
      %v856 = vunpack.c.l.b16 %v293
      %v857 = vunpack.c.h.b16 %v293
      %v858 = vunpack.c.l.b16 %v294
      %v859 = vunpack.c.h.b16 %v294
      %v860 = vunpack.c.l.b16 %v295
      %v861 = vunpack.c.h.b16 %v295
      %v862 = vunpack.c.l.b16 %v296
      %v863 = vunpack.c.h.b16 %v296
      %v864 = vunpack.c.l.b16 %v297
      %v865 = vunpack.c.l.b16 %v298
      %v866 = vunpack.c.h.b16 %v298
      %v867 = vunpack.c.l.b16 %v299
      %v868 = vunpack.c.h.b16 %v299
      %v869 = vunpack.c.l.b16 %v300
      %v870 = vunpack.c.h.b16 %v300
      %v871 = vunpack.c.l.b16 %v301
      %v872 = vunpack.c.h.b16 %v301
      %v873 = vunpack.c.l.b16 %v302
      %v874 = vunpack.c.l.b16 %v303
      %v875 = vunpack.c.h.b16 %v303
      %v876 = vunpack.c.l.b16 %v304
      %v877 = vunpack.c.h.b16 %v304
      %v878 = vunpack.c.l.b16 %v305
      %v879 = vunpack.c.h.b16 %v305
      %v880 = vunpack.c.l.b16 %v306
      %v881 = vunpack.c.h.b16 %v306
      %v882 = vunpack.c.l.b16 %v307
      %v883 = vunpack.c.l.b16 %v308
      %v884 = vunpack.c.h.b16 %v308
      %v885 = vunpack.c.l.b16 %v309
      %v886 = vunpack.c.h.b16 %v309
      %v887 = vunpack.c.l.b16 %v310
      %v888 = vunpack.c.h.b16 %v310
      %v889 = vunpack.c.l.b16 %v311
      %v890 = vunpack.c.h.b16 %v311
      %v891 = vunpack.c.l.b16 %v312
      %v892 = vunpack.c.l.b16 %v313
      %v893 = vunpack.c.h.b16 %v313
      %v894 = vunpack.c.l.b16 %v314
      %v895 = vunpack.c.h.b16 %v314
      %v896 = vunpack.c.l.b16 %v315
      %v897 = vunpack.c.h.b16 %v315
      %v898 = vunpack.c.l.b16 %v316
      %v899 = vunpack.c.h.b16 %v316
      %v900 = vunpack.c.l.b16 %v317
      %v901 = vunpack.c.l.b16 %v318
      %v902 = vunpack.c.h.b16 %v318
      %v903 = vunpack.c.l.b16 %v319
      %v904 = vunpack.c.h.b16 %v319
      %v905 = vunpack.c.l.b16 %v320
      %v906 = vunpack.c.h.b16 %v320
      %v907 = vunpack.c.l.b16 %v321
      %v908 = vunpack.c.h.b16 %v321
      %v909 = vunpack.c.l.b16 %v322
      %v910 = vunpack.c.l.b16 %v323
      %v911 = vunpack.c.h.b16 %v323
      %v912 = vunpack.c.l.b16 %v324
      %v913 = vunpack.c.h.b16 %v324
      %v914 = vunpack.c.l.b16 %v325
      %v915 = vunpack.c.h.b16 %v325
      %v916 = vunpack.c.l.b16 %v326
      %v917 = vunpack.c.h.b16 %v326
      %v918 = vunpack.c.l.b16 %v327
      %v919 = vunpack.c.l.b16 %v328
      %v920 = vunpack.c.h.b16 %v328
      %v921 = vunpack.c.l.b16 %v329
      %v922 = vunpack.c.h.b16 %v329
      %v923 = vunpack.c.l.b16 %v330
      %v924 = vunpack.c.h.b16 %v330
      %v925 = vunpack.c.l.b16 %v331
      %v926 = vunpack.c.h.b16 %v331
      %v927 = vunpack.c.l.b16 %v332
      %v928 = vunpack.c.l.b16 %v333
      %v929 = vunpack.c.h.b16 %v333
      %v930 = vunpack.c.l.b16 %v334
      %v931 = vunpack.c.h.b16 %v334
      %v932 = vunpack.c.l.b16 %v335
      %v933 = vunpack.c.h.b16 %v335
      %v934 = vunpack.c.l.b16 %v336
      %v935 = vunpack.c.h.b16 %v336
      %v936 = vunpack.c.l.b16 %v337
      %v937 = vpack.c.b16 %v658, %v649
      %v938 = vpack.c.b16 %v659, %v650
      %v939 = vpack.c.b16 %v660, %v651
      %v940 = vpack.c.b16 %v661, %v652
      %v941 = vpack.c.b16 %v662, %v653
      %v942 = vpack.c.b16 %v663, %v654
      %v943 = vpack.c.b16 %v664, %v655
      %v944 = vpack.c.b16 %v665, %v656
      %v945 = vpack.c.b16 %v666, %v657
      %v946 = vpack.c.b16 %v676, %v667
      %v947 = vpack.c.b16 %v677, %v668
      %v948 = vpack.c.b16 %v678, %v669
      %v949 = vpack.c.b16 %v679, %v670
      %v950 = vpack.c.b16 %v680, %v671
      %v951 = vpack.c.b16 %v681, %v672
      %v952 = vpack.c.b16 %v682, %v673
      %v953 = vpack.c.b16 %v683, %v674
      %v954 = vpack.c.b16 %v684, %v675
      %v955 = vpack.c.b16 %v694, %v685
      %v956 = vpack.c.b16 %v695, %v686
      %v957 = vpack.c.b16 %v696, %v687
      %v958 = vpack.c.b16 %v697, %v688
      %v959 = vpack.c.b16 %v698, %v689
      %v960 = vpack.c.b16 %v699, %v690
      %v961 = vpack.c.b16 %v700, %v691
      %v962 = vpack.c.b16 %v701, %v692
      %v963 = vpack.c.b16 %v702, %v693
      %v964 = vpack.c.b16 %v712, %v703
      %v965 = vpack.c.b16 %v713, %v704
      %v966 = vpack.c.b16 %v714, %v705
      %v967 = vpack.c.b16 %v715, %v706
      %v968 = vpack.c.b16 %v716, %v707
      %v969 = vpack.c.b16 %v717, %v708
      %v970 = vpack.c.b16 %v718, %v709
      %v971 = vpack.c.b16 %v719, %v710
      %v972 = vpack.c.b16 %v720, %v711
      %v973 = vpack.c.b16 %v730, %v721
      %v974 = vpack.c.b16 %v731, %v722
      %v975 = vpack.c.b16 %v732, %v723
      %v976 = vpack.c.b16 %v733, %v724
      %v977 = vpack.c.b16 %v734, %v725
      %v978 = vpack.c.b16 %v735, %v726
      %v979 = vpack.c.b16 %v736, %v727
      %v980 = vpack.c.b16 %v737, %v728
      %v981 = vpack.c.b16 %v738, %v729
      %v982 = vpack.c.b16 %v748, %v739
      %v983 = vpack.c.b16 %v749, %v740
      %v984 = vpack.c.b16 %v750, %v741
      %v985 = vpack.c.b16 %v751, %v742
      %v986 = vpack.c.b16 %v752, %v743
      %v987 = vpack.c.b16 %v753, %v744
      %v988 = vpack.c.b16 %v754, %v745
      %v989 = vpack.c.b16 %v755, %v746
      %v990 = vpack.c.b16 %v756, %v747
      %v991 = vpack.c.b16 %v766, %v757
      %v992 = vpack.c.b16 %v767, %v758
      %v993 = vpack.c.b16 %v768, %v759
      %v994 = vpack.c.b16 %v769, %v760
      %v995 = vpack.c.b16 %v770, %v761
      %v996 = vpack.c.b16 %v771, %v762
      %v997 = vpack.c.b16 %v772, %v763
      %v998 = vpack.c.b16 %v773, %v764
      %v999 = vpack.c.b16 %v774, %v765
      %v1000 = vpack.c.b16 %v784, %v775
      %v1001 = vpack.c.b16 %v785, %v776
      %v1002 = vpack.c.b16 %v786, %v777
      %v1003 = vpack.c.b16 %v787, %v778
      %v1004 = vpack.c.b16 %v788, %v779
      %v1005 = vpack.c.b16 %v789, %v780
      %v1006 = vpack.c.b16 %v790, %v781
      %v1007 = vpack.c.b16 %v791, %v782
      %v1008 = vpack.c.b16 %v792, %v783
      %v1009 = vpack.c.b16 %v802, %v793
      %v1010 = vpack.c.b16 %v803, %v794
      %v1011 = vpack.c.b16 %v804, %v795
      %v1012 = vpack.c.b16 %v805, %v796
      %v1013 = vpack.c.b16 %v806, %v797
      %v1014 = vpack.c.b16 %v807, %v798
      %v1015 = vpack.c.b16 %v808, %v799
      %v1016 = vpack.c.b16 %v809, %v800
      %v1017 = vpack.c.b16 %v810, %v801
      %v1018 = vpack.c.b16 %v820, %v811
      %v1019 = vpack.c.b16 %v821, %v812
      %v1020 = vpack.c.b16 %v822, %v813
      %v1021 = vpack.c.b16 %v823, %v814
      %v1022 = vpack.c.b16 %v824, %v815
      %v1023 = vpack.c.b16 %v825, %v816
      %v1024 = vpack.c.b16 %v826, %v817
      %v1025 = vpack.c.b16 %v827, %v818
      %v1026 = vpack.c.b16 %v828, %v819
      %v1027 = vpack.c.b16 %v838, %v829
      %v1028 = vpack.c.b16 %v839, %v830
      %v1029 = vpack.c.b16 %v840, %v831
      %v1030 = vpack.c.b16 %v841, %v832
      %v1031 = vpack.c.b16 %v842, %v833
      %v1032 = vpack.c.b16 %v843, %v834
      %v1033 = vpack.c.b16 %v844, %v835
      %v1034 = vpack.c.b16 %v845, %v836
      %v1035 = vpack.c.b16 %v846, %v837
      %v1036 = vpack.c.b16 %v856, %v847
      %v1037 = vpack.c.b16 %v857, %v848
      %v1038 = vpack.c.b16 %v858, %v849
      %v1039 = vpack.c.b16 %v859, %v850
      %v1040 = vpack.c.b16 %v860, %v851
      %v1041 = vpack.c.b16 %v861, %v852
      %v1042 = vpack.c.b16 %v862, %v853
      %v1043 = vpack.c.b16 %v863, %v854
      %v1044 = vpack.c.b16 %v864, %v855
      %v1045 = vpack.c.b16 %v874, %v865
      %v1046 = vpack.c.b16 %v875, %v866
      %v1047 = vpack.c.b16 %v876, %v867
      %v1048 = vpack.c.b16 %v877, %v868
      %v1049 = vpack.c.b16 %v878, %v869
      %v1050 = vpack.c.b16 %v879, %v870
      %v1051 = vpack.c.b16 %v880, %v871
      %v1052 = vpack.c.b16 %v881, %v872
      %v1053 = vpack.c.b16 %v882, %v873
      %v1054 = vpack.c.b16 %v892, %v883
      %v1055 = vpack.c.b16 %v893, %v884
      %v1056 = vpack.c.b16 %v894, %v885
      %v1057 = vpack.c.b16 %v895, %v886
      %v1058 = vpack.c.b16 %v896, %v887
      %v1059 = vpack.c.b16 %v897, %v888
      %v1060 = vpack.c.b16 %v898, %v889
      %v1061 = vpack.c.b16 %v899, %v890
      %v1062 = vpack.c.b16 %v900, %v891
      %v1063 = vpack.c.b16 %v910, %v901
      %v1064 = vpack.c.b16 %v911, %v902
      %v1065 = vpack.c.b16 %v912, %v903
      %v1066 = vpack.c.b16 %v913, %v904
      %v1067 = vpack.c.b16 %v914, %v905
      %v1068 = vpack.c.b16 %v915, %v906
      %v1069 = vpack.c.b16 %v916, %v907
      %v1070 = vpack.c.b16 %v917, %v908
      %v1071 = vpack.c.b16 %v918, %v909
      %v1072 = vpack.c.b16 %v928, %v919
      %v1073 = vpack.c.b16 %v929, %v920
      %v1074 = vpack.c.b16 %v930, %v921
      %v1075 = vpack.c.b16 %v931, %v922
      %v1076 = vpack.c.b16 %v932, %v923
      %v1077 = vpack.c.b16 %v933, %v924
      %v1078 = vpack.c.b16 %v934, %v925
      %v1079 = vpack.c.b16 %v935, %v926
      %v1080 = vpack.c.b16 %v936, %v927
      %v1369 = vunpack.c.l.b16 %v338
      %v1370 = vunpack.c.l.b16 %v339
      %v1371 = vunpack.c.l.b16 %v340
      %v1372 = vunpack.c.l.b16 %v341
      %v1373 = vunpack.c.l.b16 %v342
      %v1374 = vunpack.c.l.b16 %v343
      %v1375 = vunpack.c.l.b16 %v344
      %v1376 = vunpack.c.l.b16 %v345
      %v1377 = vunpack.c.l.b16 %v346
      %v1378 = vunpack.c.l.b16 %v347
      %v1379 = vunpack.c.l.b16 %v348
      %v1380 = vunpack.c.l.b16 %v349
      %v1381 = vunpack.c.l.b16 %v350
      %v1382 = vunpack.c.l.b16 %v351
      %v1383 = vunpack.c.l.b16 %v352
      %v1384 = vunpack.c.l.b16 %v353
      %v1385 = vunpack.c.l.b16 %v354
      %v1386 = vunpack.c.l.b16 %v355
      %v1387 = vunpack.c.l.b16 %v356
      %v1388 = vunpack.c.l.b16 %v357
      %v1389 = vunpack.c.l.b16 %v358
      %v1390 = vunpack.c.l.b16 %v359
      %v1391 = vunpack.c.l.b16 %v360
      %v1392 = vunpack.c.l.b16 %v361
      %v1393 = vunpack.c.l.b16 %v362
      %v1394 = vunpack.c.l.b16 %v363
      %v1395 = vunpack.c.l.b16 %v364
      %v1396 = vunpack.c.l.b16 %v365
      %v1397 = vunpack.c.l.b16 %v366
      %v1398 = vunpack.c.l.b16 %v367
      %v1399 = vunpack.c.l.b16 %v368
      %v1400 = vunpack.c.l.b16 %v369
      %v1401 = vunpack.c.l.b16 %v370
      %v1402 = vunpack.c.l.b16 %v371
      %v1403 = vunpack.c.l.b16 %v372
      %v1404 = vunpack.c.l.b16 %v373
      %v1405 = vunpack.c.l.b16 %v374
      %v1406 = vunpack.c.l.b16 %v375
      %v1407 = vunpack.c.l.b16 %v376
      %v1408 = vunpack.c.l.b16 %v377
      %v1409 = vunpack.c.l.b16 %v378
      %v1410 = vunpack.c.l.b16 %v379
      %v1411 = vunpack.c.l.b16 %v380
      %v1412 = vunpack.c.l.b16 %v381
      %v1413 = vunpack.c.l.b16 %v382
      %v1414 = vunpack.c.l.b16 %v383
      %v1415 = vunpack.c.l.b16 %v384
      %v1416 = vunpack.c.l.b16 %v385
      %v1417 = vunpack.c.l.b16 %v386
      %v1418 = vunpack.c.l.b16 %v387
      %v1419 = vunpack.c.l.b16 %v388
      %v1420 = vunpack.c.l.b16 %v389
      %v1421 = vunpack.c.l.b16 %v390
      %v1422 = vunpack.c.l.b16 %v391
      %v1423 = vunpack.c.l.b16 %v392
      %v1424 = vunpack.c.l.b16 %v393
      %v1425 = vunpack.c.l.b16 %v394
      %v1426 = vunpack.c.l.b16 %v395
      %v1427 = vunpack.c.l.b16 %v396
      %v1428 = vunpack.c.l.b16 %v397
      %v1429 = vunpack.c.l.b16 %v398
      %v1430 = vunpack.c.l.b16 %v399
      %v1431 = vunpack.c.l.b16 %v400
      %v1432 = vunpack.c.l.b16 %v401
      %v1433 = vunpack.c.l.b16 %v402
      %v1434 = vunpack.c.l.b16 %v403
      %v1435 = vunpack.c.l.b16 %v404
      %v1436 = vunpack.c.l.b16 %v405
      %v1437 = vunpack.c.l.b16 %v406
      %v1438 = vunpack.c.l.b16 %v407
      %v1439 = vunpack.c.l.b16 %v408
      %v1440 = vunpack.c.l.b16 %v409
      %v1441 = vunpack.c.l.b16 %v410
      %v1442 = vunpack.c.l.b16 %v411
      %v1443 = vunpack.c.l.b16 %v412
      %v1444 = vunpack.c.l.b16 %v413
      %v1445 = vunpack.c.l.b16 %v414
      %v1446 = vunpack.c.l.b16 %v415
      %v1447 = vunpack.c.l.b16 %v416
      %v1448 = vunpack.c.l.b16 %v417
      %v1449 = vunpack.c.l.b16 %v418
      %v1450 = vunpack.c.l.b16 %v419
      %v1451 = vunpack.c.l.b16 %v420
      %v1452 = vunpack.c.l.b16 %v421
      %v1453 = vunpack.c.l.b16 %v422
      %v1454 = vunpack.c.l.b16 %v423
      %v1455 = vunpack.c.l.b16 %v424
      %v1456 = vunpack.c.l.b16 %v425
      %v1457 = vunpack.c.l.b16 %v426
      %v1458 = vunpack.c.l.b16 %v427
      %v1459 = vunpack.c.l.b16 %v428
      %v1460 = vunpack.c.l.b16 %v429
      %v1461 = vunpack.c.l.b16 %v430
      %v1462 = vunpack.c.l.b16 %v431
      %v1463 = vunpack.c.l.b16 %v432
      %v1464 = vunpack.c.l.b16 %v433
      %v1465 = vunpack.c.l.b16 %v434
      %v1466 = vunpack.c.l.b16 %v435
      %v1467 = vunpack.c.l.b16 %v436
      %v1468 = vunpack.c.l.b16 %v437
      %v1469 = vunpack.c.l.b16 %v438
      %v1470 = vunpack.c.l.b16 %v439
      %v1471 = vunpack.c.l.b16 %v440
      %v1472 = vunpack.c.l.b16 %v441
      %v1473 = vunpack.c.l.b16 %v442
      %v1474 = vunpack.c.l.b16 %v443
      %v1475 = vunpack.c.l.b16 %v444
      %v1476 = vunpack.c.l.b16 %v445
      %v1477 = vunpack.c.l.b16 %v446
      %v1478 = vunpack.c.l.b16 %v447
      %v1479 = vunpack.c.l.b16 %v448
      %v1480 = vunpack.c.l.b16 %v449
      %v1481 = vunpack.c.l.b16 %v450
      %v1482 = vunpack.c.l.b16 %v451
      %v1483 = vunpack.c.l.b16 %v452
      %v1484 = vunpack.c.l.b16 %v453
      %v1485 = vunpack.c.l.b16 %v454
      %v1486 = vunpack.c.l.b16 %v455
      %v1487 = vunpack.c.l.b16 %v456
      %v1488 = vunpack.c.l.b16 %v457
      %v1489 = vunpack.c.l.b16 %v458
      %v1490 = vunpack.c.l.b16 %v459
      %v1491 = vunpack.c.l.b16 %v460
      %v1492 = vunpack.c.l.b16 %v461
      %v1493 = vunpack.c.l.b16 %v462
      %v1494 = vunpack.c.l.b16 %v463
      %v1495 = vunpack.c.l.b16 %v464
      %v1496 = vunpack.c.l.b16 %v465
      %v1497 = vunpack.c.l.b16 %v466
      %v1498 = vunpack.c.l.b16 %v467
      %v1499 = vunpack.c.l.b16 %v468
      %v1500 = vunpack.c.l.b16 %v469
      %v1501 = vunpack.c.l.b16 %v470
      %v1502 = vunpack.c.l.b16 %v471
      %v1503 = vunpack.c.l.b16 %v472
      %v1504 = vunpack.c.l.b16 %v473
      %v1505 = vunpack.c.l.b16 %v474
      %v1506 = vunpack.c.l.b16 %v475
      %v1507 = vunpack.c.l.b16 %v476
      %v1508 = vunpack.c.l.b16 %v477
      %v1509 = vunpack.c.l.b16 %v478
      %v1510 = vunpack.c.l.b16 %v479
      %v1511 = vunpack.c.l.b16 %v480
      %v1512 = vunpack.c.l.b16 %v481
      %v1513 = vpack.c.b16 %v1370, %v1369
      %v1514 = vpack.c.b16 %v1372, %v1371
      %v1515 = vpack.c.b16 %v1374, %v1373
      %v1516 = vpack.c.b16 %v1376, %v1375
      %v1517 = vpack.c.b16 %v1378, %v1377
      %v1518 = vpack.c.b16 %v1380, %v1379
      %v1519 = vpack.c.b16 %v1382, %v1381
      %v1520 = vpack.c.b16 %v1384, %v1383
      %v1521 = vpack.c.b16 %v1386, %v1385
      %v1522 = vpack.c.b16 %v1388, %v1387
      %v1523 = vpack.c.b16 %v1390, %v1389
      %v1524 = vpack.c.b16 %v1392, %v1391
      %v1525 = vpack.c.b16 %v1394, %v1393
      %v1526 = vpack.c.b16 %v1396, %v1395
      %v1527 = vpack.c.b16 %v1398, %v1397
      %v1528 = vpack.c.b16 %v1400, %v1399
      %v1529 = vpack.c.b16 %v1402, %v1401
      %v1530 = vpack.c.b16 %v1404, %v1403
      %v1531 = vpack.c.b16 %v1406, %v1405
      %v1532 = vpack.c.b16 %v1408, %v1407
      %v1533 = vpack.c.b16 %v1410, %v1409
      %v1534 = vpack.c.b16 %v1412, %v1411
      %v1535 = vpack.c.b16 %v1414, %v1413
      %v1536 = vpack.c.b16 %v1416, %v1415
      %v1537 = vpack.c.b16 %v1418, %v1417
      %v1538 = vpack.c.b16 %v1420, %v1419
      %v1539 = vpack.c.b16 %v1422, %v1421
      %v1540 = vpack.c.b16 %v1424, %v1423
      %v1541 = vpack.c.b16 %v1426, %v1425
      %v1542 = vpack.c.b16 %v1428, %v1427
      %v1543 = vpack.c.b16 %v1430, %v1429
      %v1544 = vpack.c.b16 %v1432, %v1431
      %v1545 = vpack.c.b16 %v1434, %v1433
      %v1546 = vpack.c.b16 %v1436, %v1435
      %v1547 = vpack.c.b16 %v1438, %v1437
      %v1548 = vpack.c.b16 %v1440, %v1439
      %v1549 = vpack.c.b16 %v1442, %v1441
      %v1550 = vpack.c.b16 %v1444, %v1443
      %v1551 = vpack.c.b16 %v1446, %v1445
      %v1552 = vpack.c.b16 %v1448, %v1447
      %v1553 = vpack.c.b16 %v1450, %v1449
      %v1554 = vpack.c.b16 %v1452, %v1451
      %v1555 = vpack.c.b16 %v1454, %v1453
      %v1556 = vpack.c.b16 %v1456, %v1455
      %v1557 = vpack.c.b16 %v1458, %v1457
      %v1558 = vpack.c.b16 %v1460, %v1459
      %v1559 = vpack.c.b16 %v1462, %v1461
      %v1560 = vpack.c.b16 %v1464, %v1463
      %v1561 = vpack.c.b16 %v1466, %v1465
      %v1562 = vpack.c.b16 %v1468, %v1467
      %v1563 = vpack.c.b16 %v1470, %v1469
      %v1564 = vpack.c.b16 %v1472, %v1471
      %v1565 = vpack.c.b16 %v1474, %v1473
      %v1566 = vpack.c.b16 %v1476, %v1475
      %v1567 = vpack.c.b16 %v1478, %v1477
      %v1568 = vpack.c.b16 %v1480, %v1479
      %v1569 = vpack.c.b16 %v1482, %v1481
      %v1570 = vpack.c.b16 %v1484, %v1483
      %v1571 = vpack.c.b16 %v1486, %v1485
      %v1572 = vpack.c.b16 %v1488, %v1487
      %v1573 = vpack.c.b16 %v1490, %v1489
      %v1574 = vpack.c.b16 %v1492, %v1491
      %v1575 = vpack.c.b16 %v1494, %v1493
      %v1576 = vpack.c.b16 %v1496, %v1495
      %v1577 = vpack.c.b16 %v1498, %v1497
      %v1578 = vpack.c.b16 %v1500, %v1499
      %v1579 = vpack.c.b16 %v1502, %v1501
      %v1580 = vpack.c.b16 %v1504, %v1503
      %v1581 = vpack.c.b16 %v1506, %v1505
      %v1582 = vpack.c.b16 %v1508, %v1507
      %v1583 = vpack.c.b16 %v1510, %v1509
      %v1584 = vpack.c.b16 %v1512, %v1511
      %1657 = vmatprep.subr.bf16.mxu0 0
      %1658 = vmatpush1.bf16.msra.mxu0 %v1513
      %1659 = vmatprep.subr.bf16.mxu0 0
      %1660 = vmatpush1.bf16.msra.mxu0 %v1514
      %1661 = vmatprep.subr.bf16.mxu0 0
      %1662 = vmatpush1.bf16.msra.mxu0 %v1515
      %1663 = vmatprep.subr.bf16.mxu0 0
      %1664 = vmatpush1.bf16.msra.mxu0 %v1516
      %1665 = vmatprep.subr.bf16.mxu0 0
      %1666 = vmatpush1.bf16.msra.mxu0 %v1517
      %1667 = vmatprep.subr.bf16.mxu0 0
      %1668 = vmatpush1.bf16.msra.mxu0 %v1518
      %1669 = vmatprep.subr.bf16.mxu0 0
      %1670 = vmatpush1.bf16.msra.mxu0 %v1519
      %1671 = vmatprep.subr.bf16.mxu0 0
      %1672 = vmatpush1.bf16.msra.mxu0 %v1520
      %1673 = vmatprep.subr.bf16.mxu0 0
      %1674 = vmatpush1.bf16.msra.mxu0 %v1521
      %1675 = vmatprep.subr.bf16.mxu0 0
      %1676 = vmatpush1.bf16.msra.mxu0 %v1522
      %1677 = vmatprep.subr.bf16.mxu0 0
      %1678 = vmatpush1.bf16.msra.mxu0 %v1523
      %1679 = vmatprep.subr.bf16.mxu0 0
      %1680 = vmatpush1.bf16.msra.mxu0 %v1524
      %1681 = vmatprep.subr.bf16.mxu0 0
      %1682 = vmatpush1.bf16.msra.mxu0 %v1525
      %1683 = vmatprep.subr.bf16.mxu0 0
      %1684 = vmatpush1.bf16.msra.mxu0 %v1526
      %1685 = vmatprep.subr.bf16.mxu0 0
      %1686 = vmatpush1.bf16.msra.mxu0 %v1527
      %1687 = vmatprep.subr.bf16.mxu0 0
      %1688 = vmatpush1.bf16.msra.mxu0 %v1528
      %1689 = vmatprep.mubr.bf16.mxu0 %v938
      %1690 = vmatmul.mubr.bf16.gmra.mrb[0].mxu0 %v937
      %v1691 = vpop.f32.mrb[0].mxu0
      %v1692 = vadd.f32 %v487, %v1691
      %v1693 = vpop.f32.mrb[0].mxu0
      %v1694 = vpop.f32.mrb[0].mxu0
      %v1695 = vadd.f32 %v487, %v1694
      %v1696 = vpop.f32.mrb[0].mxu0
      %1697 = vmatprep.mubr.bf16.mxu0 %v947
      %1698 = vmatmul.mubr.bf16.gmra.mrb[0].mxu0 %v946
      %v1699 = vpop.f32.mrb[0].mxu0
      %v1700 = vadd.f32 %v487, %v1699
      %v1701 = vpop.f32.mrb[0].mxu0
      %v1702 = vpop.f32.mrb[0].mxu0
      %v1703 = vadd.f32 %v487, %v1702
      %v1704 = vpop.f32.mrb[0].mxu0
      %1705 = vmatprep.mubr.bf16.mxu0 %v956
      %1706 = vmatmul.mubr.bf16.gmra.mrb[0].mxu0 %v955
      %v1707 = vpop.f32.mrb[0].mxu0
      %v1708 = vadd.f32 %v487, %v1707
      %v1709 = vpop.f32.mrb[0].mxu0
      %v1710 = vpop.f32.mrb[0].mxu0
      %v1711 = vadd.f32 %v487, %v1710
      %v1712 = vpop.f32.mrb[0].mxu0
      %1713 = vmatprep.mubr.bf16.mxu0 %v965
      %1714 = vmatmul.mubr.bf16.gmra.mrb[0].mxu0 %v964
      %v1715 = vpop.f32.mrb[0].mxu0
      %v1716 = vadd.f32 %v487, %v1715
      %v1717 = vpop.f32.mrb[0].mxu0
      %v1718 = vpop.f32.mrb[0].mxu0
      %v1719 = vadd.f32 %v487, %v1718
      %v1720 = vpop.f32.mrb[0].mxu0
      %1721 = vmatprep.mubr.bf16.mxu0 %v974
      %1722 = vmatmul.mubr.bf16.gmra.mrb[0].mxu0 %v973
      %v1723 = vpop.f32.mrb[0].mxu0
      %v1724 = vadd.f32 %v487, %v1723
      %v1725 = vpop.f32.mrb[0].mxu0
      %v1726 = vpop.f32.mrb[0].mxu0
      %v1727 = vadd.f32 %v487, %v1726
      %v1728 = vpop.f32.mrb[0].mxu0
      %1729 = vmatprep.mubr.bf16.mxu0 %v983
      %1730 = vmatmul.mubr.bf16.gmra.mrb[0].mxu0 %v982
      %v1731 = vpop.f32.mrb[0].mxu0
      %v1732 = vadd.f32 %v487, %v1731
      %v1733 = vpop.f32.mrb[0].mxu0
      %v1734 = vpop.f32.mrb[0].mxu0
      %v1735 = vadd.f32 %v487, %v1734
      %v1736 = vpop.f32.mrb[0].mxu0
      %1737 = vmatprep.mubr.bf16.mxu0 %v992
      %1738 = vmatmul.mubr.bf16.gmra.mrb[0].mxu0 %v991
      %v1739 = vpop.f32.mrb[0].mxu0
      %v1740 = vadd.f32 %v487, %v1739
      %v1741 = vpop.f32.mrb[0].mxu0
      %v1742 = vpop.f32.mrb[0].mxu0
      %v1743 = vadd.f32 %v487, %v1742
      %v1744 = vpop.f32.mrb[0].mxu0
      %1745 = vmatprep.mubr.bf16.mxu0 %v1001
      %1746 = vmatmul.mubr.bf16.gmra.mrb[0].mxu0 %v1000
      %v1747 = vpop.f32.mrb[0].mxu0
      %v1748 = vadd.f32 %v487, %v1747
      %v1749 = vpop.f32.mrb[0].mxu0
      %v1750 = vpop.f32.mrb[0].mxu0
      %v1751 = vadd.f32 %v487, %v1750
      %v1752 = vpop.f32.mrb[0].mxu0
      %1753 = vmatprep.mubr.bf16.mxu0 %v1010
      %1754 = vmatmul.mubr.bf16.gmra.mrb[0].mxu0 %v1009
      %v1755 = vpop.f32.mrb[0].mxu0
      %v1756 = vadd.f32 %v487, %v1755
      %v1757 = vpop.f32.mrb[0].mxu0
      %v1758 = vpop.f32.mrb[0].mxu0
      %v1759 = vadd.f32 %v487, %v1758
      %v1760 = vpop.f32.mrb[0].mxu0
      %1761 = vmatprep.mubr.bf16.mxu0 %v1019
      %1762 = vmatmul.mubr.bf16.gmra.mrb[0].mxu0 %v1018
      %v1763 = vpop.f32.mrb[0].mxu0
      %v1764 = vadd.f32 %v487, %v1763
      %v1765 = vpop.f32.mrb[0].mxu0
      %v1766 = vpop.f32.mrb[0].mxu0
      %v1767 = vadd.f32 %v487, %v1766
      %v1768 = vpop.f32.mrb[0].mxu0
      %1769 = vmatprep.mubr.bf16.mxu0 %v1028
      %1770 = vmatmul.mubr.bf16.gmra.mrb[0].mxu0 %v1027
      %v1771 = vpop.f32.mrb[0].mxu0
      %v1772 = vadd.f32 %v487, %v1771
      %v1773 = vpop.f32.mrb[0].mxu0
      %v1774 = vpop.f32.mrb[0].mxu0
      %v1775 = vadd.f32 %v487, %v1774
      %v1776 = vpop.f32.mrb[0].mxu0
      %1777 = vmatprep.mubr.bf16.mxu0 %v1037
      %1778 = vmatmul.mubr.bf16.gmra.mrb[0].mxu0 %v1036
      %v1779 = vpop.f32.mrb[0].mxu0
      %v1780 = vadd.f32 %v487, %v1779
      %v1781 = vpop.f32.mrb[0].mxu0
      %v1782 = vpop.f32.mrb[0].mxu0
      %v1783 = vadd.f32 %v487, %v1782
      %v1784 = vpop.f32.mrb[0].mxu0
      %1785 = vmatprep.mubr.bf16.mxu0 %v1046
      %1786 = vmatmul.mubr.bf16.gmra.mrb[0].mxu0 %v1045
      %v1787 = vpop.f32.mrb[0].mxu0
      %v1788 = vadd.f32 %v487, %v1787
      %v1789 = vpop.f32.mrb[0].mxu0
      %v1790 = vpop.f32.mrb[0].mxu0
      %v1791 = vadd.f32 %v487, %v1790
      %v1792 = vpop.f32.mrb[0].mxu0
      %1793 = vmatprep.mubr.bf16.mxu0 %v1055
      %1794 = vmatmul.mubr.bf16.gmra.mrb[0].mxu0 %v1054
      %v1795 = vpop.f32.mrb[0].mxu0
      %v1796 = vadd.f32 %v487, %v1795
      %v1797 = vpop.f32.mrb[0].mxu0
      %v1798 = vpop.f32.mrb[0].mxu0
      %v1799 = vadd.f32 %v487, %v1798
      %v1800 = vpop.f32.mrb[0].mxu0
      %1801 = vmatprep.mubr.bf16.mxu0 %v1064
      %1802 = vmatmul.mubr.bf16.gmra.mrb[0].mxu0 %v1063
      %v1803 = vpop.f32.mrb[0].mxu0
      %v1804 = vadd.f32 %v487, %v1803
      %v1805 = vpop.f32.mrb[0].mxu0
      %v1806 = vpop.f32.mrb[0].mxu0
      %v1807 = vadd.f32 %v487, %v1806
      %v1808 = vpop.f32.mrb[0].mxu0
      %1809 = vmatprep.mubr.bf16.mxu0 %v1073
      %1810 = vmatmul.mubr.bf16.gmra.mrb[0].mxu0 %v1072
      %v1811 = vpop.f32.mrb[0].mxu0
      %v1812 = vadd.f32 %v487, %v1811
      %v1813 = vpop.f32.mrb[0].mxu0
      %v1814 = vpop.f32.mrb[0].mxu0
      %v1815 = vadd.f32 %v487, %v1814
      %v1816 = vpop.f32.mrb[0].mxu0
      %1817 = vdwg.mxu0
      %1818 = vmatprep.subr.bf16.mxu0 0
      %1819 = vmatpush1.bf16.msra.mxu0 %v1529
      %1820 = vmatprep.subr.bf16.mxu0 0
      %1821 = vmatpush1.bf16.msra.mxu0 %v1530
      %1822 = vmatprep.subr.bf16.mxu0 0
      %1823 = vmatpush1.bf16.msra.mxu0 %v1531
      %1824 = vmatprep.subr.bf16.mxu0 0
      %1825 = vmatpush1.bf16.msra.mxu0 %v1532
      %1826 = vmatprep.subr.bf16.mxu0 0
      %1827 = vmatpush1.bf16.msra.mxu0 %v1533
      %1828 = vmatprep.subr.bf16.mxu0 0
      %1829 = vmatpush1.bf16.msra.mxu0 %v1534
      %1830 = vmatprep.subr.bf16.mxu0 0
      %1831 = vmatpush1.bf16.msra.mxu0 %v1535
      %1832 = vmatprep.subr.bf16.mxu0 0
      %1833 = vmatpush1.bf16.msra.mxu0 %v1536
      %1834 = vmatprep.subr.bf16.mxu0 0
      %1835 = vmatpush1.bf16.msra.mxu0 %v1537
      %1836 = vmatprep.subr.bf16.mxu0 0
      %1837 = vmatpush1.bf16.msra.mxu0 %v1538
      %1838 = vmatprep.subr.bf16.mxu0 0
      %1839 = vmatpush1.bf16.msra.mxu0 %v1539
      %1840 = vmatprep.subr.bf16.mxu0 0
      %1841 = vmatpush1.bf16.msra.mxu0 %v1540
      %1842 = vmatprep.subr.bf16.mxu0 0
      %1843 = vmatpush1.bf16.msra.mxu0 %v1541
      %1844 = vmatprep.subr.bf16.mxu0 0
      %1845 = vmatpush1.bf16.msra.mxu0 %v1542
      %1846 = vmatprep.subr.bf16.mxu0 0
      %1847 = vmatpush1.bf16.msra.mxu0 %v1543
      %1848 = vmatprep.subr.bf16.mxu0 0
      %1849 = vmatpush1.bf16.msra.mxu0 %v1544
      %1850 = vmatprep.mubr.bf16.mxu0 %v940
      %1851 = vmatmul.mubr.bf16.gmra.mrb[0].mxu0 %v939
      %v1852 = vpop.f32.mrb[0].mxu0
      %v1853 = vadd.f32 %v1692, %v1852
      %v1854 = vpop.f32.mrb[0].mxu0
      %v1855 = vpop.f32.mrb[0].mxu0
      %v1856 = vadd.f32 %v1695, %v1855
      %v1857 = vpop.f32.mrb[0].mxu0
      %1858 = vmatprep.mubr.bf16.mxu0 %v949
      %1859 = vmatmul.mubr.bf16.gmra.mrb[0].mxu0 %v948
      %v1860 = vpop.f32.mrb[0].mxu0
      %v1861 = vadd.f32 %v1700, %v1860
      %v1862 = vpop.f32.mrb[0].mxu0
      %v1863 = vpop.f32.mrb[0].mxu0
      %v1864 = vadd.f32 %v1703, %v1863
      %v1865 = vpop.f32.mrb[0].mxu0
      %1866 = vmatprep.mubr.bf16.mxu0 %v958
      %1867 = vmatmul.mubr.bf16.gmra.mrb[0].mxu0 %v957
      %v1868 = vpop.f32.mrb[0].mxu0
      %v1869 = vadd.f32 %v1708, %v1868
      %v1870 = vpop.f32.mrb[0].mxu0
      %v1871 = vpop.f32.mrb[0].mxu0
      %v1872 = vadd.f32 %v1711, %v1871
      %v1873 = vpop.f32.mrb[0].mxu0
      %1874 = vmatprep.mubr.bf16.mxu0 %v967
      %1875 = vmatmul.mubr.bf16.gmra.mrb[0].mxu0 %v966
      %v1876 = vpop.f32.mrb[0].mxu0
      %v1877 = vadd.f32 %v1716, %v1876
      %v1878 = vpop.f32.mrb[0].mxu0
      %v1879 = vpop.f32.mrb[0].mxu0
      %v1880 = vadd.f32 %v1719, %v1879
      %v1881 = vpop.f32.mrb[0].mxu0
      %1882 = vmatprep.mubr.bf16.mxu0 %v976
      %1883 = vmatmul.mubr.bf16.gmra.mrb[0].mxu0 %v975
      %v1884 = vpop.f32.mrb[0].mxu0
      %v1885 = vadd.f32 %v1724, %v1884
      %v1886 = vpop.f32.mrb[0].mxu0
      %v1887 = vpop.f32.mrb[0].mxu0
      %v1888 = vadd.f32 %v1727, %v1887
      %v1889 = vpop.f32.mrb[0].mxu0
      %1890 = vmatprep.mubr.bf16.mxu0 %v985
      %1891 = vmatmul.mubr.bf16.gmra.mrb[0].mxu0 %v984
      %v1892 = vpop.f32.mrb[0].mxu0
      %v1893 = vadd.f32 %v1732, %v1892
      %v1894 = vpop.f32.mrb[0].mxu0
      %v1895 = vpop.f32.mrb[0].mxu0
      %v1896 = vadd.f32 %v1735, %v1895
      %v1897 = vpop.f32.mrb[0].mxu0
      %1898 = vmatprep.mubr.bf16.mxu0 %v994
      %1899 = vmatmul.mubr.bf16.gmra.mrb[0].mxu0 %v993
      %v1900 = vpop.f32.mrb[0].mxu0
      %v1901 = vadd.f32 %v1740, %v1900
      %v1902 = vpop.f32.mrb[0].mxu0
      %v1903 = vpop.f32.mrb[0].mxu0
      %v1904 = vadd.f32 %v1743, %v1903
      %v1905 = vpop.f32.mrb[0].mxu0
      %1906 = vmatprep.mubr.bf16.mxu0 %v1003
      %1907 = vmatmul.mubr.bf16.gmra.mrb[0].mxu0 %v1002
      %v1908 = vpop.f32.mrb[0].mxu0
      %v1909 = vadd.f32 %v1748, %v1908
      %v1910 = vpop.f32.mrb[0].mxu0
      %v1911 = vpop.f32.mrb[0].mxu0
      %v1912 = vadd.f32 %v1751, %v1911
      %v1913 = vpop.f32.mrb[0].mxu0
      %1914 = vmatprep.mubr.bf16.mxu0 %v1012
      %1915 = vmatmul.mubr.bf16.gmra.mrb[0].mxu0 %v1011
      %v1916 = vpop.f32.mrb[0].mxu0
      %v1917 = vadd.f32 %v1756, %v1916
      %v1918 = vpop.f32.mrb[0].mxu0
      %v1919 = vpop.f32.mrb[0].mxu0
      %v1920 = vadd.f32 %v1759, %v1919
      %v1921 = vpop.f32.mrb[0].mxu0
      %1922 = vmatprep.mubr.bf16.mxu0 %v1021
      %1923 = vmatmul.mubr.bf16.gmra.mrb[0].mxu0 %v1020
      %v1924 = vpop.f32.mrb[0].mxu0
      %v1925 = vadd.f32 %v1764, %v1924
      %v1926 = vpop.f32.mrb[0].mxu0
      %v1927 = vpop.f32.mrb[0].mxu0
      %v1928 = vadd.f32 %v1767, %v1927
      %v1929 = vpop.f32.mrb[0].mxu0
      %1930 = vmatprep.mubr.bf16.mxu0 %v1030
      %1931 = vmatmul.mubr.bf16.gmra.mrb[0].mxu0 %v1029
      %v1932 = vpop.f32.mrb[0].mxu0
      %v1933 = vadd.f32 %v1772, %v1932
      %v1934 = vpop.f32.mrb[0].mxu0
      %v1935 = vpop.f32.mrb[0].mxu0
      %v1936 = vadd.f32 %v1775, %v1935
      %v1937 = vpop.f32.mrb[0].mxu0
      %1938 = vmatprep.mubr.bf16.mxu0 %v1039
      %1939 = vmatmul.mubr.bf16.gmra.mrb[0].mxu0 %v1038
      %v1940 = vpop.f32.mrb[0].mxu0
      %v1941 = vadd.f32 %v1780, %v1940
      %v1942 = vpop.f32.mrb[0].mxu0
      %v1943 = vpop.f32.mrb[0].mxu0
      %v1944 = vadd.f32 %v1783, %v1943
      %v1945 = vpop.f32.mrb[0].mxu0
      %1946 = vmatprep.mubr.bf16.mxu0 %v1048
      %1947 = vmatmul.mubr.bf16.gmra.mrb[0].mxu0 %v1047
      %v1948 = vpop.f32.mrb[0].mxu0
      %v1949 = vadd.f32 %v1788, %v1948
      %v1950 = vpop.f32.mrb[0].mxu0
      %v1951 = vpop.f32.mrb[0].mxu0
      %v1952 = vadd.f32 %v1791, %v1951
      %v1953 = vpop.f32.mrb[0].mxu0
      %1954 = vmatprep.mubr.bf16.mxu0 %v1057
      %1955 = vmatmul.mubr.bf16.gmra.mrb[0].mxu0 %v1056
      %v1956 = vpop.f32.mrb[0].mxu0
      %v1957 = vadd.f32 %v1796, %v1956
      %v1958 = vpop.f32.mrb[0].mxu0
      %v1959 = vpop.f32.mrb[0].mxu0
      %v1960 = vadd.f32 %v1799, %v1959
      %v1961 = vpop.f32.mrb[0].mxu0
      %1962 = vmatprep.mubr.bf16.mxu0 %v1066
      %1963 = vmatmul.mubr.bf16.gmra.mrb[0].mxu0 %v1065
      %v1964 = vpop.f32.mrb[0].mxu0
      %v1965 = vadd.f32 %v1804, %v1964
      %v1966 = vpop.f32.mrb[0].mxu0
      %v1967 = vpop.f32.mrb[0].mxu0
      %v1968 = vadd.f32 %v1807, %v1967
      %v1969 = vpop.f32.mrb[0].mxu0
      %1970 = vmatprep.mubr.bf16.mxu0 %v1075
      %1971 = vmatmul.mubr.bf16.gmra.mrb[0].mxu0 %v1074
      %v1972 = vpop.f32.mrb[0].mxu0
      %v1973 = vadd.f32 %v1812, %v1972
      %v1974 = vpop.f32.mrb[0].mxu0
      %v1975 = vpop.f32.mrb[0].mxu0
      %v1976 = vadd.f32 %v1815, %v1975
      %v1977 = vpop.f32.mrb[0].mxu0
      %1978 = vdwg.mxu0
      %1979 = vmatprep.subr.bf16.mxu0 0
      %1980 = vmatpush1.bf16.msra.mxu0 %v1545
      %1981 = vmatprep.subr.bf16.mxu0 0
      %1982 = vmatpush1.bf16.msra.mxu0 %v1546
      %1983 = vmatprep.subr.bf16.mxu0 0
      %1984 = vmatpush1.bf16.msra.mxu0 %v1547
      %1985 = vmatprep.subr.bf16.mxu0 0
      %1986 = vmatpush1.bf16.msra.mxu0 %v1548
      %1987 = vmatprep.subr.bf16.mxu0 0
      %1988 = vmatpush1.bf16.msra.mxu0 %v1549
      %1989 = vmatprep.subr.bf16.mxu0 0
      %1990 = vmatpush1.bf16.msra.mxu0 %v1550
      %1991 = vmatprep.subr.bf16.mxu0 0
      %1992 = vmatpush1.bf16.msra.mxu0 %v1551
      %1993 = vmatprep.subr.bf16.mxu0 0
      %1994 = vmatpush1.bf16.msra.mxu0 %v1552
      %1995 = vmatprep.subr.bf16.mxu0 0
      %1996 = vmatpush1.bf16.msra.mxu0 %v1553
      %1997 = vmatprep.subr.bf16.mxu0 0
      %1998 = vmatpush1.bf16.msra.mxu0 %v1554
      %1999 = vmatprep.subr.bf16.mxu0 0
      %2000 = vmatpush1.bf16.msra.mxu0 %v1555
      %2001 = vmatprep.subr.bf16.mxu0 0
      %2002 = vmatpush1.bf16.msra.mxu0 %v1556
      %2003 = vmatprep.subr.bf16.mxu0 0
      %2004 = vmatpush1.bf16.msra.mxu0 %v1557
      %2005 = vmatprep.subr.bf16.mxu0 0
      %2006 = vmatpush1.bf16.msra.mxu0 %v1558
      %2007 = vmatprep.subr.bf16.mxu0 0
      %2008 = vmatpush1.bf16.msra.mxu0 %v1559
      %2009 = vmatprep.subr.bf16.mxu0 0
      %2010 = vmatpush1.bf16.msra.mxu0 %v1560
      %2011 = vmatprep.mubr.bf16.mxu0 %v942
      %2012 = vmatmul.mubr.bf16.gmra.mrb[0].mxu0 %v941
      %v2013 = vpop.f32.mrb[0].mxu0
      %v2014 = vadd.f32 %v1853, %v2013
      %v2015 = vpop.f32.mrb[0].mxu0
      %v2016 = vpop.f32.mrb[0].mxu0
      %v2017 = vadd.f32 %v1856, %v2016
      %v2018 = vpop.f32.mrb[0].mxu0
      %2019 = vmatprep.mubr.bf16.mxu0 %v951
      %2020 = vmatmul.mubr.bf16.gmra.mrb[0].mxu0 %v950
      %v2021 = vpop.f32.mrb[0].mxu0
      %v2022 = vadd.f32 %v1861, %v2021
      %v2023 = vpop.f32.mrb[0].mxu0
      %v2024 = vpop.f32.mrb[0].mxu0
      %v2025 = vadd.f32 %v1864, %v2024
      %v2026 = vpop.f32.mrb[0].mxu0
      %2027 = vmatprep.mubr.bf16.mxu0 %v960
      %2028 = vmatmul.mubr.bf16.gmra.mrb[0].mxu0 %v959
      %v2029 = vpop.f32.mrb[0].mxu0
      %v2030 = vadd.f32 %v1869, %v2029
      %v2031 = vpop.f32.mrb[0].mxu0
      %v2032 = vpop.f32.mrb[0].mxu0
      %v2033 = vadd.f32 %v1872, %v2032
      %v2034 = vpop.f32.mrb[0].mxu0
      %2035 = vmatprep.mubr.bf16.mxu0 %v969
      %2036 = vmatmul.mubr.bf16.gmra.mrb[0].mxu0 %v968
      %v2037 = vpop.f32.mrb[0].mxu0
      %v2038 = vadd.f32 %v1877, %v2037
      %v2039 = vpop.f32.mrb[0].mxu0
      %v2040 = vpop.f32.mrb[0].mxu0
      %v2041 = vadd.f32 %v1880, %v2040
      %v2042 = vpop.f32.mrb[0].mxu0
      %2043 = vmatprep.mubr.bf16.mxu0 %v978
      %2044 = vmatmul.mubr.bf16.gmra.mrb[0].mxu0 %v977
      %v2045 = vpop.f32.mrb[0].mxu0
      %v2046 = vadd.f32 %v1885, %v2045
      %v2047 = vpop.f32.mrb[0].mxu0
      %v2048 = vpop.f32.mrb[0].mxu0
      %v2049 = vadd.f32 %v1888, %v2048
      %v2050 = vpop.f32.mrb[0].mxu0
      %2051 = vmatprep.mubr.bf16.mxu0 %v987
      %2052 = vmatmul.mubr.bf16.gmra.mrb[0].mxu0 %v986
      %v2053 = vpop.f32.mrb[0].mxu0
      %v2054 = vadd.f32 %v1893, %v2053
      %v2055 = vpop.f32.mrb[0].mxu0
      %v2056 = vpop.f32.mrb[0].mxu0
      %v2057 = vadd.f32 %v1896, %v2056
      %v2058 = vpop.f32.mrb[0].mxu0
      %2059 = vmatprep.mubr.bf16.mxu0 %v996
      %2060 = vmatmul.mubr.bf16.gmra.mrb[0].mxu0 %v995
      %v2061 = vpop.f32.mrb[0].mxu0
      %v2062 = vadd.f32 %v1901, %v2061
      %v2063 = vpop.f32.mrb[0].mxu0
      %v2064 = vpop.f32.mrb[0].mxu0
      %v2065 = vadd.f32 %v1904, %v2064
      %v2066 = vpop.f32.mrb[0].mxu0
      %2067 = vmatprep.mubr.bf16.mxu0 %v1005
      %2068 = vmatmul.mubr.bf16.gmra.mrb[0].mxu0 %v1004
      %v2069 = vpop.f32.mrb[0].mxu0
      %v2070 = vadd.f32 %v1909, %v2069
      %v2071 = vpop.f32.mrb[0].mxu0
      %v2072 = vpop.f32.mrb[0].mxu0
      %v2073 = vadd.f32 %v1912, %v2072
      %v2074 = vpop.f32.mrb[0].mxu0
      %2075 = vmatprep.mubr.bf16.mxu0 %v1014
      %2076 = vmatmul.mubr.bf16.gmra.mrb[0].mxu0 %v1013
      %v2077 = vpop.f32.mrb[0].mxu0
      %v2078 = vadd.f32 %v1917, %v2077
      %v2079 = vpop.f32.mrb[0].mxu0
      %v2080 = vpop.f32.mrb[0].mxu0
      %v2081 = vadd.f32 %v1920, %v2080
      %v2082 = vpop.f32.mrb[0].mxu0
      %2083 = vmatprep.mubr.bf16.mxu0 %v1023
      %2084 = vmatmul.mubr.bf16.gmra.mrb[0].mxu0 %v1022
      %v2085 = vpop.f32.mrb[0].mxu0
      %v2086 = vadd.f32 %v1925, %v2085
      %v2087 = vpop.f32.mrb[0].mxu0
      %v2088 = vpop.f32.mrb[0].mxu0
      %v2089 = vadd.f32 %v1928, %v2088
      %v2090 = vpop.f32.mrb[0].mxu0
      %2091 = vmatprep.mubr.bf16.mxu0 %v1032
      %2092 = vmatmul.mubr.bf16.gmra.mrb[0].mxu0 %v1031
      %v2093 = vpop.f32.mrb[0].mxu0
      %v2094 = vadd.f32 %v1933, %v2093
      %v2095 = vpop.f32.mrb[0].mxu0
      %v2096 = vpop.f32.mrb[0].mxu0
      %v2097 = vadd.f32 %v1936, %v2096
      %v2098 = vpop.f32.mrb[0].mxu0
      %2099 = vmatprep.mubr.bf16.mxu0 %v1041
      %2100 = vmatmul.mubr.bf16.gmra.mrb[0].mxu0 %v1040
      %v2101 = vpop.f32.mrb[0].mxu0
      %v2102 = vadd.f32 %v1941, %v2101
      %v2103 = vpop.f32.mrb[0].mxu0
      %v2104 = vpop.f32.mrb[0].mxu0
      %v2105 = vadd.f32 %v1944, %v2104
      %v2106 = vpop.f32.mrb[0].mxu0
      %2107 = vmatprep.mubr.bf16.mxu0 %v1050
      %2108 = vmatmul.mubr.bf16.gmra.mrb[0].mxu0 %v1049
      %v2109 = vpop.f32.mrb[0].mxu0
      %v2110 = vadd.f32 %v1949, %v2109
      %v2111 = vpop.f32.mrb[0].mxu0
      %v2112 = vpop.f32.mrb[0].mxu0
      %v2113 = vadd.f32 %v1952, %v2112
      %v2114 = vpop.f32.mrb[0].mxu0
      %2115 = vmatprep.mubr.bf16.mxu0 %v1059
      %2116 = vmatmul.mubr.bf16.gmra.mrb[0].mxu0 %v1058
      %v2117 = vpop.f32.mrb[0].mxu0
      %v2118 = vadd.f32 %v1957, %v2117
      %v2119 = vpop.f32.mrb[0].mxu0
      %v2120 = vpop.f32.mrb[0].mxu0
      %v2121 = vadd.f32 %v1960, %v2120
      %v2122 = vpop.f32.mrb[0].mxu0
      %2123 = vmatprep.mubr.bf16.mxu0 %v1068
      %2124 = vmatmul.mubr.bf16.gmra.mrb[0].mxu0 %v1067
      %v2125 = vpop.f32.mrb[0].mxu0
      %v2126 = vadd.f32 %v1965, %v2125
      %v2127 = vpop.f32.mrb[0].mxu0
      %v2128 = vpop.f32.mrb[0].mxu0
      %v2129 = vadd.f32 %v1968, %v2128
      %v2130 = vpop.f32.mrb[0].mxu0
      %2131 = vmatprep.mubr.bf16.mxu0 %v1077
      %2132 = vmatmul.mubr.bf16.gmra.mrb[0].mxu0 %v1076
      %v2133 = vpop.f32.mrb[0].mxu0
      %v2134 = vadd.f32 %v1973, %v2133
      %v2135 = vpop.f32.mrb[0].mxu0
      %v2136 = vpop.f32.mrb[0].mxu0
      %v2137 = vadd.f32 %v1976, %v2136
      %v2138 = vpop.f32.mrb[0].mxu0
      %2139 = vdwg.mxu0
      %2140 = vmatprep.subr.bf16.mxu0 0
      %2141 = vmatpush1.bf16.msra.mxu0 %v1561
      %2142 = vmatprep.subr.bf16.mxu0 0
      %2143 = vmatpush1.bf16.msra.mxu0 %v1562
      %2144 = vmatprep.subr.bf16.mxu0 0
      %2145 = vmatpush1.bf16.msra.mxu0 %v1563
      %2146 = vmatprep.subr.bf16.mxu0 0
      %2147 = vmatpush1.bf16.msra.mxu0 %v1564
      %2148 = vmatprep.subr.bf16.mxu0 0
      %2149 = vmatpush1.bf16.msra.mxu0 %v1565
      %2150 = vmatprep.subr.bf16.mxu0 0
      %2151 = vmatpush1.bf16.msra.mxu0 %v1566
      %2152 = vmatprep.subr.bf16.mxu0 0
      %2153 = vmatpush1.bf16.msra.mxu0 %v1567
      %2154 = vmatprep.subr.bf16.mxu0 0
      %2155 = vmatpush1.bf16.msra.mxu0 %v1568
      %2156 = vmatprep.subr.bf16.mxu0 0
      %2157 = vmatpush1.bf16.msra.mxu0 %v1569
      %2158 = vmatprep.subr.bf16.mxu0 0
      %2159 = vmatpush1.bf16.msra.mxu0 %v1570
      %2160 = vmatprep.subr.bf16.mxu0 0
      %2161 = vmatpush1.bf16.msra.mxu0 %v1571
      %2162 = vmatprep.subr.bf16.mxu0 0
      %2163 = vmatpush1.bf16.msra.mxu0 %v1572
      %2164 = vmatprep.subr.bf16.mxu0 0
      %2165 = vmatpush1.bf16.msra.mxu0 %v1573
      %2166 = vmatprep.subr.bf16.mxu0 0
      %2167 = vmatpush1.bf16.msra.mxu0 %v1574
      %2168 = vmatprep.subr.bf16.mxu0 0
      %2169 = vmatpush1.bf16.msra.mxu0 %v1575
      %2170 = vmatprep.subr.bf16.mxu0 0
      %2171 = vmatpush1.bf16.msra.mxu0 %v1576
      %2172 = vmatprep.mubr.bf16.mxu0 %v944
      %2173 = vmatmul.mubr.bf16.gmra.mrb[0].mxu0 %v943
      %v2174 = vpop.f32.mrb[0].mxu0
      %v2175 = vadd.f32 %v2014, %v2174
      %v2176 = vpop.f32.mrb[0].mxu0
      %v2177 = vpop.f32.mrb[0].mxu0
      %v2178 = vadd.f32 %v2017, %v2177
      %v2179 = vpop.f32.mrb[0].mxu0
      %2180 = vmatprep.mubr.bf16.mxu0 %v953
      %2181 = vmatmul.mubr.bf16.gmra.mrb[0].mxu0 %v952
      %v2182 = vpop.f32.mrb[0].mxu0
      %v2183 = vadd.f32 %v2022, %v2182
      %v2184 = vpop.f32.mrb[0].mxu0
      %v2185 = vpop.f32.mrb[0].mxu0
      %v2186 = vadd.f32 %v2025, %v2185
      %v2187 = vpop.f32.mrb[0].mxu0
      %2188 = vmatprep.mubr.bf16.mxu0 %v962
      %2189 = vmatmul.mubr.bf16.gmra.mrb[0].mxu0 %v961
      %v2190 = vpop.f32.mrb[0].mxu0
      %v2191 = vadd.f32 %v2030, %v2190
      %v2192 = vpop.f32.mrb[0].mxu0
      %v2193 = vpop.f32.mrb[0].mxu0
      %v2194 = vadd.f32 %v2033, %v2193
      %v2195 = vpop.f32.mrb[0].mxu0
      %2196 = vmatprep.mubr.bf16.mxu0 %v971
      %2197 = vmatmul.mubr.bf16.gmra.mrb[0].mxu0 %v970
      %v2198 = vpop.f32.mrb[0].mxu0
      %v2199 = vadd.f32 %v2038, %v2198
      %v2200 = vpop.f32.mrb[0].mxu0
      %v2201 = vpop.f32.mrb[0].mxu0
      %v2202 = vadd.f32 %v2041, %v2201
      %v2203 = vpop.f32.mrb[0].mxu0
      %2204 = vmatprep.mubr.bf16.mxu0 %v980
      %2205 = vmatmul.mubr.bf16.gmra.mrb[0].mxu0 %v979
      %v2206 = vpop.f32.mrb[0].mxu0
      %v2207 = vadd.f32 %v2046, %v2206
      %v2208 = vpop.f32.mrb[0].mxu0
      %v2209 = vpop.f32.mrb[0].mxu0
      %v2210 = vadd.f32 %v2049, %v2209
      %v2211 = vpop.f32.mrb[0].mxu0
      %2212 = vmatprep.mubr.bf16.mxu0 %v989
      %2213 = vmatmul.mubr.bf16.gmra.mrb[0].mxu0 %v988
      %v2214 = vpop.f32.mrb[0].mxu0
      %v2215 = vadd.f32 %v2054, %v2214
      %v2216 = vpop.f32.mrb[0].mxu0
      %v2217 = vpop.f32.mrb[0].mxu0
      %v2218 = vadd.f32 %v2057, %v2217
      %v2219 = vpop.f32.mrb[0].mxu0
      %2220 = vmatprep.mubr.bf16.mxu0 %v998
      %2221 = vmatmul.mubr.bf16.gmra.mrb[0].mxu0 %v997
      %v2222 = vpop.f32.mrb[0].mxu0
      %v2223 = vadd.f32 %v2062, %v2222
      %v2224 = vpop.f32.mrb[0].mxu0
      %v2225 = vpop.f32.mrb[0].mxu0
      %v2226 = vadd.f32 %v2065, %v2225
      %v2227 = vpop.f32.mrb[0].mxu0
      %2228 = vmatprep.mubr.bf16.mxu0 %v1007
      %2229 = vmatmul.mubr.bf16.gmra.mrb[0].mxu0 %v1006
      %v2230 = vpop.f32.mrb[0].mxu0
      %v2231 = vadd.f32 %v2070, %v2230
      %v2232 = vpop.f32.mrb[0].mxu0
      %v2233 = vpop.f32.mrb[0].mxu0
      %v2234 = vadd.f32 %v2073, %v2233
      %v2235 = vpop.f32.mrb[0].mxu0
      %2236 = vmatprep.mubr.bf16.mxu0 %v1016
      %2237 = vmatmul.mubr.bf16.gmra.mrb[0].mxu0 %v1015
      %v2238 = vpop.f32.mrb[0].mxu0
      %v2239 = vadd.f32 %v2078, %v2238
      %v2240 = vpop.f32.mrb[0].mxu0
      %v2241 = vpop.f32.mrb[0].mxu0
      %v2242 = vadd.f32 %v2081, %v2241
      %v2243 = vpop.f32.mrb[0].mxu0
      %2244 = vmatprep.mubr.bf16.mxu0 %v1025
      %2245 = vmatmul.mubr.bf16.gmra.mrb[0].mxu0 %v1024
      %v2246 = vpop.f32.mrb[0].mxu0
      %v2247 = vadd.f32 %v2086, %v2246
      %v2248 = vpop.f32.mrb[0].mxu0
      %v2249 = vpop.f32.mrb[0].mxu0
      %v2250 = vadd.f32 %v2089, %v2249
      %v2251 = vpop.f32.mrb[0].mxu0
      %2252 = vmatprep.mubr.bf16.mxu0 %v1034
      %2253 = vmatmul.mubr.bf16.gmra.mrb[0].mxu0 %v1033
      %v2254 = vpop.f32.mrb[0].mxu0
      %v2255 = vadd.f32 %v2094, %v2254
      %v2256 = vpop.f32.mrb[0].mxu0
      %v2257 = vpop.f32.mrb[0].mxu0
      %v2258 = vadd.f32 %v2097, %v2257
      %v2259 = vpop.f32.mrb[0].mxu0
      %2260 = vmatprep.mubr.bf16.mxu0 %v1043
      %2261 = vmatmul.mubr.bf16.gmra.mrb[0].mxu0 %v1042
      %v2262 = vpop.f32.mrb[0].mxu0
      %v2263 = vadd.f32 %v2102, %v2262
      %v2264 = vpop.f32.mrb[0].mxu0
      %v2265 = vpop.f32.mrb[0].mxu0
      %v2266 = vadd.f32 %v2105, %v2265
      %v2267 = vpop.f32.mrb[0].mxu0
      %2268 = vmatprep.mubr.bf16.mxu0 %v1052
      %2269 = vmatmul.mubr.bf16.gmra.mrb[0].mxu0 %v1051
      %v2270 = vpop.f32.mrb[0].mxu0
      %v2271 = vadd.f32 %v2110, %v2270
      %v2272 = vpop.f32.mrb[0].mxu0
      %v2273 = vpop.f32.mrb[0].mxu0
      %v2274 = vadd.f32 %v2113, %v2273
      %v2275 = vpop.f32.mrb[0].mxu0
      %2276 = vmatprep.mubr.bf16.mxu0 %v1061
      %2277 = vmatmul.mubr.bf16.gmra.mrb[0].mxu0 %v1060
      %v2278 = vpop.f32.mrb[0].mxu0
      %v2279 = vadd.f32 %v2118, %v2278
      %v2280 = vpop.f32.mrb[0].mxu0
      %v2281 = vpop.f32.mrb[0].mxu0
      %v2282 = vadd.f32 %v2121, %v2281
      %v2283 = vpop.f32.mrb[0].mxu0
      %2284 = vmatprep.mubr.bf16.mxu0 %v1070
      %2285 = vmatmul.mubr.bf16.gmra.mrb[0].mxu0 %v1069
      %v2286 = vpop.f32.mrb[0].mxu0
      %v2287 = vadd.f32 %v2126, %v2286
      %v2288 = vpop.f32.mrb[0].mxu0
      %v2289 = vpop.f32.mrb[0].mxu0
      %v2290 = vadd.f32 %v2129, %v2289
      %v2291 = vpop.f32.mrb[0].mxu0
      %2292 = vmatprep.mubr.bf16.mxu0 %v1079
      %2293 = vmatmul.mubr.bf16.gmra.mrb[0].mxu0 %v1078
      %v2294 = vpop.f32.mrb[0].mxu0
      %v2295 = vadd.f32 %v2134, %v2294
      %v2296 = vpop.f32.mrb[0].mxu0
      %v2297 = vpop.f32.mrb[0].mxu0
      %v2298 = vadd.f32 %v2137, %v2297
      %v2299 = vpop.f32.mrb[0].mxu0
      %2300 = vdwg.mxu0
      %2301 = vmatprep.subr.bf16.mxu0 0
      %2302 = vmatpush1.bf16.msra.mxu0 %v1577
      %2303 = vmatprep.subr.bf16.mxu0 0
      %2304 = vmatpush1.bf16.msra.mxu0 %v1578
      %2305 = vmatprep.subr.bf16.mxu0 0
      %2306 = vmatpush1.bf16.msra.mxu0 %v1579
      %2307 = vmatprep.subr.bf16.mxu0 0
      %2308 = vmatpush1.bf16.msra.mxu0 %v1580
      %2309 = vmatprep.subr.bf16.mxu0 0
      %2310 = vmatpush1.bf16.msra.mxu0 %v1581
      %2311 = vmatprep.subr.bf16.mxu0 0
      %2312 = vmatpush1.bf16.msra.mxu0 %v1582
      %2313 = vmatprep.subr.bf16.mxu0 0
      %2314 = vmatpush1.bf16.msra.mxu0 %v1583
      %2315 = vmatprep.subr.bf16.mxu0 0
      %2316 = vmatpush1.bf16.msra.mxu0 %v1584
      %2317 = vmatprep.subr.bf16.mxu0 0
      %2318 = vmatpush1.bf16.msra.mxu0 0
      %2319 = vmatprep.subr.bf16.mxu0 0
      %2320 = vmatpush1.bf16.msra.mxu0 0
      %2321 = vmatprep.subr.bf16.mxu0 0
      %2322 = vmatpush1.bf16.msra.mxu0 0
      %2323 = vmatprep.subr.bf16.mxu0 0
      %2324 = vmatpush1.bf16.msra.mxu0 0
      %2325 = vmatprep.subr.bf16.mxu0 0
      %2326 = vmatpush1.bf16.msra.mxu0 0
      %2327 = vmatprep.subr.bf16.mxu0 0
      %2328 = vmatpush1.bf16.msra.mxu0 0
      %2329 = vmatprep.subr.bf16.mxu0 0
      %2330 = vmatpush1.bf16.msra.mxu0 0
      %2331 = vmatprep.subr.bf16.mxu0 0
      %2332 = vmatpush1.bf16.msra.mxu0 0
      %2333 = vmatprep.mubr.bf16.mxu0 0
      %2334 = vmatmul.mubr.bf16.gmra.mrb[0].mxu0 %v945
      %v2335 = vpop.f32.mrb[0].mxu0
      %v2336 = vadd.f32 %v2175, %v2335
      %v2337 = vpop.f32.mrb[0].mxu0
      %v2338 = vpop.f32.mrb[0].mxu0
      %v2339 = vadd.f32 %v2178, %v2338
      %v2340 = vpop.f32.mrb[0].mxu0
      %2341 = vmatprep.mubr.bf16.mxu0 0
      %2342 = vmatmul.mubr.bf16.gmra.mrb[0].mxu0 %v954
      %v2343 = vpop.f32.mrb[0].mxu0
      %v2344 = vadd.f32 %v2183, %v2343
      %v2345 = vpop.f32.mrb[0].mxu0
      %v2346 = vpop.f32.mrb[0].mxu0
      %v2347 = vadd.f32 %v2186, %v2346
      %v2348 = vpop.f32.mrb[0].mxu0
      %2349 = vmatprep.mubr.bf16.mxu0 0
      %2350 = vmatmul.mubr.bf16.gmra.mrb[0].mxu0 %v963
      %v2351 = vpop.f32.mrb[0].mxu0
      %v2352 = vadd.f32 %v2191, %v2351
      %v2353 = vpop.f32.mrb[0].mxu0
      %v2354 = vpop.f32.mrb[0].mxu0
      %v2355 = vadd.f32 %v2194, %v2354
      %v2356 = vpop.f32.mrb[0].mxu0
      %2357 = vmatprep.mubr.bf16.mxu0 0
      %2358 = vmatmul.mubr.bf16.gmra.mrb[0].mxu0 %v972
      %v2359 = vpop.f32.mrb[0].mxu0
      %v2360 = vadd.f32 %v2199, %v2359
      %v2361 = vpop.f32.mrb[0].mxu0
      %v2362 = vpop.f32.mrb[0].mxu0
      %v2363 = vadd.f32 %v2202, %v2362
      %v2364 = vpop.f32.mrb[0].mxu0
      %2365 = vmatprep.mubr.bf16.mxu0 0
      %2366 = vmatmul.mubr.bf16.gmra.mrb[0].mxu0 %v981
      %v2367 = vpop.f32.mrb[0].mxu0
      %v2368 = vadd.f32 %v2207, %v2367
      %v2369 = vpop.f32.mrb[0].mxu0
      %v2370 = vpop.f32.mrb[0].mxu0
      %v2371 = vadd.f32 %v2210, %v2370
      %v2372 = vpop.f32.mrb[0].mxu0
      %2373 = vmatprep.mubr.bf16.mxu0 0
      %2374 = vmatmul.mubr.bf16.gmra.mrb[0].mxu0 %v990
      %v2375 = vpop.f32.mrb[0].mxu0
      %v2376 = vadd.f32 %v2215, %v2375
      %v2377 = vpop.f32.mrb[0].mxu0
      %v2378 = vpop.f32.mrb[0].mxu0
      %v2379 = vadd.f32 %v2218, %v2378
      %v2380 = vpop.f32.mrb[0].mxu0
      %2381 = vmatprep.mubr.bf16.mxu0 0
      %2382 = vmatmul.mubr.bf16.gmra.mrb[0].mxu0 %v999
      %v2383 = vpop.f32.mrb[0].mxu0
      %v2384 = vadd.f32 %v2223, %v2383
      %v2385 = vpop.f32.mrb[0].mxu0
      %v2386 = vpop.f32.mrb[0].mxu0
      %v2387 = vadd.f32 %v2226, %v2386
      %v2388 = vpop.f32.mrb[0].mxu0
      %2389 = vmatprep.mubr.bf16.mxu0 0
      %2390 = vmatmul.mubr.bf16.gmra.mrb[0].mxu0 %v1008
      %v2391 = vpop.f32.mrb[0].mxu0
      %v2392 = vadd.f32 %v2231, %v2391
      %v2393 = vpop.f32.mrb[0].mxu0
      %v2394 = vpop.f32.mrb[0].mxu0
      %v2395 = vadd.f32 %v2234, %v2394
      %v2396 = vpop.f32.mrb[0].mxu0
      %2397 = vmatprep.mubr.bf16.mxu0 0
      %2398 = vmatmul.mubr.bf16.gmra.mrb[0].mxu0 %v1017
      %v2399 = vpop.f32.mrb[0].mxu0
      %v2400 = vadd.f32 %v2239, %v2399
      %v2401 = vpop.f32.mrb[0].mxu0
      %v2402 = vpop.f32.mrb[0].mxu0
      %v2403 = vadd.f32 %v2242, %v2402
      %v2404 = vpop.f32.mrb[0].mxu0
      %2405 = vmatprep.mubr.bf16.mxu0 0
      %2406 = vmatmul.mubr.bf16.gmra.mrb[0].mxu0 %v1026
      %v2407 = vpop.f32.mrb[0].mxu0
      %v2408 = vadd.f32 %v2247, %v2407
      %v2409 = vpop.f32.mrb[0].mxu0
      %v2410 = vpop.f32.mrb[0].mxu0
      %v2411 = vadd.f32 %v2250, %v2410
      %v2412 = vpop.f32.mrb[0].mxu0
      %2413 = vmatprep.mubr.bf16.mxu0 0
      %2414 = vmatmul.mubr.bf16.gmra.mrb[0].mxu0 %v1035
      %v2415 = vpop.f32.mrb[0].mxu0
      %v2416 = vadd.f32 %v2255, %v2415
      %v2417 = vpop.f32.mrb[0].mxu0
      %v2418 = vpop.f32.mrb[0].mxu0
      %v2419 = vadd.f32 %v2258, %v2418
      %v2420 = vpop.f32.mrb[0].mxu0
      %2421 = vmatprep.mubr.bf16.mxu0 0
      %2422 = vmatmul.mubr.bf16.gmra.mrb[0].mxu0 %v1044
      %v2423 = vpop.f32.mrb[0].mxu0
      %v2424 = vadd.f32 %v2263, %v2423
      %v2425 = vpop.f32.mrb[0].mxu0
      %v2426 = vpop.f32.mrb[0].mxu0
      %v2427 = vadd.f32 %v2266, %v2426
      %v2428 = vpop.f32.mrb[0].mxu0
      %2429 = vmatprep.mubr.bf16.mxu0 0
      %2430 = vmatmul.mubr.bf16.gmra.mrb[0].mxu0 %v1053
      %v2431 = vpop.f32.mrb[0].mxu0
      %v2432 = vadd.f32 %v2271, %v2431
      %v2433 = vpop.f32.mrb[0].mxu0
      %v2434 = vpop.f32.mrb[0].mxu0
      %v2435 = vadd.f32 %v2274, %v2434
      %v2436 = vpop.f32.mrb[0].mxu0
      %2437 = vmatprep.mubr.bf16.mxu0 0
      %2438 = vmatmul.mubr.bf16.gmra.mrb[0].mxu0 %v1062
      %v2439 = vpop.f32.mrb[0].mxu0
      %v2440 = vadd.f32 %v2279, %v2439
      %v2441 = vpop.f32.mrb[0].mxu0
      %v2442 = vpop.f32.mrb[0].mxu0
      %v2443 = vadd.f32 %v2282, %v2442
      %v2444 = vpop.f32.mrb[0].mxu0
      %2445 = vmatprep.mubr.bf16.mxu0 0
      %2446 = vmatmul.mubr.bf16.gmra.mrb[0].mxu0 %v1071
      %v2447 = vpop.f32.mrb[0].mxu0
      %v2448 = vadd.f32 %v2287, %v2447
      %v2449 = vpop.f32.mrb[0].mxu0
      %v2450 = vpop.f32.mrb[0].mxu0
      %v2451 = vadd.f32 %v2290, %v2450
      %v2452 = vpop.f32.mrb[0].mxu0
      %2453 = vmatprep.mubr.bf16.mxu0 0
      %2454 = vmatmul.mubr.bf16.gmra.mrb[0].mxu0 %v1080
      %v2455 = vpop.f32.mrb[0].mxu0
      %v2456 = vadd.f32 %v2295, %v2455
      %v2457 = vpop.f32.mrb[0].mxu0
      %v2458 = vpop.f32.mrb[0].mxu0
      %v2459 = vadd.f32 %v2298, %v2458
      %v2460 = vpop.f32.mrb[0].mxu0
      %2461 = vdwg.mxu0
      %v2462 = vmax.f32 %v2336, 0.0
      %v2463 = vmax.f32 %v2339, 0.0
      %v2464 = vmax.f32 %v2344, 0.0
      %v2465 = vmax.f32 %v2347, 0.0
      %v2466 = vmax.f32 %v2352, 0.0
      %v2467 = vmax.f32 %v2355, 0.0
      %v2468 = vmax.f32 %v2360, 0.0
      %v2469 = vmax.f32 %v2363, 0.0
      %v2470 = vmax.f32 %v2368, 0.0
      %v2471 = vmax.f32 %v2371, 0.0
      %v2472 = vmax.f32 %v2376, 0.0
      %v2473 = vmax.f32 %v2379, 0.0
      %v2474 = vmax.f32 %v2384, 0.0
      %v2475 = vmax.f32 %v2387, 0.0
      %v2476 = vmax.f32 %v2392, 0.0
      %v2477 = vmax.f32 %v2395, 0.0
      %v2478 = vmax.f32 %v2400, 0.0
      %v2479 = vmax.f32 %v2403, 0.0
      %v2480 = vmax.f32 %v2408, 0.0
      %v2481 = vmax.f32 %v2411, 0.0
      %v2482 = vmax.f32 %v2416, 0.0
      %v2483 = vmax.f32 %v2419, 0.0
      %v2484 = vmax.f32 %v2424, 0.0
      %v2485 = vmax.f32 %v2427, 0.0
      %v2486 = vmax.f32 %v2432, 0.0
      %v2487 = vmax.f32 %v2435, 0.0
      %v2488 = vmax.f32 %v2440, 0.0
      %v2489 = vmax.f32 %v2443, 0.0
      %v2490 = vmax.f32 %v2448, 0.0
      %v2491 = vmax.f32 %v2451, 0.0
      %v2492 = vmax.f32 %v2456, 0.0
      %v2493 = vmax.f32 %v2459, 0.0
      %v2494 = vpack.c.bf16 %v2463, %v2462
      %v2495 = vpack.c.bf16 %v2465, %v2464
      %v2496 = vpack.c.bf16 %v2467, %v2466
      %v2497 = vpack.c.bf16 %v2469, %v2468
      %v2498 = vpack.c.bf16 %v2471, %v2470
      %v2499 = vpack.c.bf16 %v2473, %v2472
      %v2500 = vpack.c.bf16 %v2475, %v2474
      %v2501 = vpack.c.bf16 %v2477, %v2476
      %v2502 = vpack.c.bf16 %v2479, %v2478
      %v2503 = vpack.c.bf16 %v2481, %v2480
      %v2504 = vpack.c.bf16 %v2483, %v2482
      %v2505 = vpack.c.bf16 %v2485, %v2484
      %v2506 = vpack.c.bf16 %v2487, %v2486
      %v2507 = vpack.c.bf16 %v2489, %v2488
      %v2508 = vpack.c.bf16 %v2491, %v2490
      %v2509 = vpack.c.bf16 %v2493, %v2492
      %v2526 = vunpack.c.l.b16 %v2494
      %v2527 = vunpack.c.h.b16 %v2494
      %v2528 = vunpack.c.l.b16 %v2495
      %v2529 = vunpack.c.h.b16 %v2495
      %v2530 = vunpack.c.l.b16 %v2496
      %v2531 = vunpack.c.h.b16 %v2496
      %v2532 = vunpack.c.l.b16 %v2497
      %v2533 = vunpack.c.h.b16 %v2497
      %v2534 = vunpack.c.l.b16 %v2498
      %v2535 = vunpack.c.h.b16 %v2498
      %v2536 = vunpack.c.l.b16 %v2499
      %v2537 = vunpack.c.h.b16 %v2499
      %v2538 = vunpack.c.l.b16 %v2500
      %v2539 = vunpack.c.h.b16 %v2500
      %v2540 = vunpack.c.l.b16 %v2501
      %v2541 = vunpack.c.h.b16 %v2501
      %v2542 = vunpack.c.l.b16 %v2502
      %v2543 = vunpack.c.h.b16 %v2502
      %v2544 = vunpack.c.l.b16 %v2503
      %v2545 = vunpack.c.h.b16 %v2503
      %v2546 = vunpack.c.l.b16 %v2504
      %v2547 = vunpack.c.h.b16 %v2504
      %v2548 = vunpack.c.l.b16 %v2505
      %v2549 = vunpack.c.h.b16 %v2505
      %v2550 = vunpack.c.l.b16 %v2506
      %v2551 = vunpack.c.h.b16 %v2506
      %v2552 = vunpack.c.l.b16 %v2507
      %v2553 = vunpack.c.h.b16 %v2507
      %v2554 = vunpack.c.l.b16 %v2508
      %v2555 = vunpack.c.h.b16 %v2508
      %v2556 = vunpack.c.l.b16 %v2509
      %v2557 = vunpack.c.h.b16 %v2509
      %v2558 = vpack.c.b16 %v2526, %v2526
      %v2559 = vpack.c.b16 %v2527, %v2527
      %v2560 = vpack.c.b16 %v2528, %v2528
      %v2561 = vpack.c.b16 %v2529, %v2529
      %v2562 = vpack.c.b16 %v2530, %v2530
      %v2563 = vpack.c.b16 %v2531, %v2531
      %v2564 = vpack.c.b16 %v2532, %v2532
      %v2565 = vpack.c.b16 %v2533, %v2533
      %v2566 = vpack.c.b16 %v2534, %v2534
      %v2567 = vpack.c.b16 %v2535, %v2535
      %v2568 = vpack.c.b16 %v2536, %v2536
      %v2569 = vpack.c.b16 %v2537, %v2537
      %v2570 = vpack.c.b16 %v2538, %v2538
      %v2571 = vpack.c.b16 %v2539, %v2539
      %v2572 = vpack.c.b16 %v2540, %v2540
      %v2573 = vpack.c.b16 %v2541, %v2541
      %v2574 = vpack.c.b16 %v2542, %v2542
      %v2575 = vpack.c.b16 %v2543, %v2543
      %v2576 = vpack.c.b16 %v2544, %v2544
      %v2577 = vpack.c.b16 %v2545, %v2545
      %v2578 = vpack.c.b16 %v2546, %v2546
      %v2579 = vpack.c.b16 %v2547, %v2547
      %v2580 = vpack.c.b16 %v2548, %v2548
      %v2581 = vpack.c.b16 %v2549, %v2549
      %v2582 = vpack.c.b16 %v2550, %v2550
      %v2583 = vpack.c.b16 %v2551, %v2551
      %v2584 = vpack.c.b16 %v2552, %v2552
      %v2585 = vpack.c.b16 %v2553, %v2553
      %v2586 = vpack.c.b16 %v2554, %v2554
      %v2587 = vpack.c.b16 %v2555, %v2555
      %v2588 = vpack.c.b16 %v2556, %v2556
      %v2589 = vpack.c.b16 %v2557, %v2557
      %2622 = vst [vmem:[%s175] sm:$0xf] %v2558
      %2623 = vst [vmem:[%s175 + $0x4] sm:$0xf] %v2559
      %2624 = vst [vmem:[%s175 + $0x8] sm:$0xf] %v2560
      %2625 = vst [vmem:[%s175 + $0xc] sm:$0xf] %v2561
      %2626 = vst [vmem:[%s175 + $0x10] sm:$0xf] %v2562
      %2627 = vst [vmem:[%s175 + $0x14] sm:$0xf] %v2563
      %2628 = vst [vmem:[%s175 + $0x18] sm:$0xf] %v2564
      %2629 = vst [vmem:[%s175 + $0x1c] sm:$0xf] %v2565
      %2630 = vst [vmem:[%s175 + $0x20] sm:$0xf] %v2566
      %2631 = vst [vmem:[%s175 + $0x24] sm:$0xf] %v2567
      %2632 = vst [vmem:[%s175 + $0x28] sm:$0xf] %v2568
      %2633 = vst [vmem:[%s175 + $0x2c] sm:$0xf] %v2569
      %2634 = vst [vmem:[%s175 + $0x30] sm:$0xf] %v2570
      %2635 = vst [vmem:[%s175 + $0x34] sm:$0xf] %v2571
      %2636 = vst [vmem:[%s175 + $0x38] sm:$0xf] %v2572
      %2637 = vst [vmem:[%s175 + $0x3c] sm:$0xf] %v2573
      %2638 = vst [vmem:[%s175 + $0x40] sm:$0xf] %v2574
      %2639 = vst [vmem:[%s175 + $0x44] sm:$0xf] %v2575
      %2640 = vst [vmem:[%s175 + $0x48] sm:$0xf] %v2576
      %2641 = vst [vmem:[%s175 + $0x4c] sm:$0xf] %v2577
      %2642 = vst [vmem:[%s175 + $0x50] sm:$0xf] %v2578
      %2643 = vst [vmem:[%s175 + $0x54] sm:$0xf] %v2579
      %2644 = vst [vmem:[%s175 + $0x58] sm:$0xf] %v2580
      %2645 = vst [vmem:[%s175 + $0x5c] sm:$0xf] %v2581
      %2646 = vst [vmem:[%s175 + $0x60] sm:$0xf] %v2582
      %2647 = vst [vmem:[%s175 + $0x64] sm:$0xf] %v2583
      %2648 = vst [vmem:[%s175 + $0x68] sm:$0xf] %v2584
      %2649 = vst [vmem:[%s175 + $0x6c] sm:$0xf] %v2585
      %2650 = vst [vmem:[%s175 + $0x70] sm:$0xf] %v2586
      %2651 = vst [vmem:[%s175 + $0x74] sm:$0xf] %v2587
      %2652 = vst [vmem:[%s175 + $0x78] sm:$0xf] %v2588
      %2653 = vst [vmem:[%s175 + $0x7c] sm:$0xf] %v2589
      %s2654 = smul.u32 32, %s14
      %p2655 = scmp.lt.s32.totalorder %s2654, 63
      %s2656 = scalar_select %p2655, %s2654, 63
      %s2657 = smul.addr %s2656, 4
      %s2658 = scalar_lea.vmem %s3, %s2657
      // Predicated region
      $region33: #{repvgg_forward.6} parent=31 // pred_check
        %p2659 = pneg %p100
      $region34: #{repvgg_forward.6} parent=31 // pred_check_branch
        %2661 = sbr.rel (%p2659) target = $region36
      $region35: #{repvgg_forward.6} parent=31 // pred_region
        %s2662 = smul.u32 32, %s14
      $region36: #{repvgg_forward.6} parent=31 // pred_fallthru
        _
    $region32: #{repvgg_forward.6} parent=5 // pred_fallthru
      _
    %p2663 = scmp.le.s32.totalorder 2, %s9
    // Predicated region
    $region37: #{repvgg_forward.6} parent=5 // pred_check
      %p2664 = pneg %p2663
    $region38: #{repvgg_forward.6} parent=5 // pred_check_branch
      %2666 = sbr.rel (%p2664) target = $region40
    $region39: #{repvgg_forward.6} parent=5 // pred_region
      %s2667 = ssub.s32 %s9, 2
      // Predicated region
      $region41: #{repvgg_forward.6} parent=39 // pred_check
        %p2668 = pneg %p106
      $region42: #{repvgg_forward.6} parent=39 // pred_check_branch
        %2670 = sbr.rel (%p2668) target = $region44
      $region43: #{repvgg_forward.6} parent=39 // pred_region
        %s2671 = smul.u32 32, %s15
        %p2672 = scmp.lt.s32.totalorder %s2671, 63
        %s2673 = scalar_select %p2672, %s2671, 63
        %s2674 = smul.addr %s2673, 4
        %s2675 = scalar_lea.vmem %s3, %s2674
      $region44: #{repvgg_forward.6} parent=39 // pred_fallthru
        _
    $region40: #{repvgg_forward.6} parent=5 // pred_fallthru
      _
  $region6: #{repvgg_forward.6} parent=0 // loop_footer
    %s13 = sadd.s32 1, %s9
  $region7: #{repvgg_forward.6} parent=0 // loop_footer_branch
    %8 = sbr.rel target = $region3
  $region8: #{repvgg_forward.6} parent=0 // loop_exit
    _

// kernel: repvgg_forward.9
$region0: #{repvgg_forward.9}
  #allocation0 [shape = 'u32[]', space=smem, size = 0x4, offset = 0x4, fixed_abs, tag = 'smem constant byte address 0x4 - core index']
  #allocation1 [shape = 'u32[144,128]{1,0:T(1,128)}', space=vmem, size = 0x12000, scoped, tag = 'internal scratch']
  %s0 = inlined_call_operand.vmem [shape: bf16[32,1152], index: 0, kind: input, shape index: {}]
  %s1 = inlined_call_operand.vmem [shape: bf16[1152,128], index: 1, kind: input, shape index: {}]
  %s2 = inlined_call_operand.vmem [shape: f32[1,128], index: 2, kind: input, shape index: {}]
  %s3 = inlined_call_operand.vmem [shape: bf16[32,128], index: 3, kind: output, shape index: {}]
  %s4 = sld [smem:[#allocation0]]
  $region45: #{repvgg_forward.9} parent=0
    _
  %s6 = ssub.s32 1, %s4
  %s7 = scalar_select 0, %s6, %s4
  loop: start=0, step=1, limit=4
  $region2: #{repvgg_forward.9} parent=0 // loop_pre_header
    _
  $region3: #{repvgg_forward.9} parent=0 // loop_header
    %s9 = sphi 0, %s13
    %p10 = scmp.ge.s32.totalorder %s9, 4
    %s19 = sphi 0, %s21
    %s22 = sphi 0, %s19
    %s23 = sphi 0, %s22
    %s39 = sphi 0, %s23
    %s43 = sphi 0, %s43
    %s45 = sphi 0, %s43
    %s46 = sphi 0, %s45
    %s60 = sphi 0, %s46
    %s64 = sphi 0, %s64
    %s66 = sphi 0, %s64
    %s67 = sphi 0, %s66
    %s81 = sphi 0, %s67
    %s87 = sphi 0, %s89
    %s90 = sphi 0, %s87
    %s91 = sphi 0, %s90
    %s107 = sphi 0, %s91
  $region4: #{repvgg_forward.9} parent=0 // loop_header_branch
    %12 = sbr.rel (%p10) target = $region8
  $region5: #{repvgg_forward.9} parent=0 // loop_body
    %s14 = ssub.s32 %s9, 1
    %s15 = ssub.s32 %s9, 2
    %s16 = sadd.s32 %s9, 1
    %s17 = ssub.s32 %s9, %s16
    %p18 = scmp.eq.s32.totalorder %s17, 0
    %s20 = sadd.s32 %s19, 1
    %s21 = scalar_select %p18, %s19, %s20
    %p24 = pneg %p18
    %p25 = scmp.eq.s32.totalorder %s9, 1
    %p26 = por %p24, %p25
    %p27 = scmp.ne.s32.totalorder %s19, %s22
    %p28 = scmp.eq.s32.totalorder %s9, 0
    %p29 = por %p27, %p28
    %p30 = scmp.ne.s32.totalorder %s19, %s22
    %p31 = scmp.eq.s32.totalorder %s14, 1
    %p32 = por %p30, %p31
    %p33 = scmp.ne.s32.totalorder %s22, %s23
    %p34 = scmp.eq.s32.totalorder %s14, 0
    %p35 = por %p33, %p34
    %p36 = scmp.ne.s32.totalorder %s22, %s23
    %p37 = scmp.eq.s32.totalorder %s15, 1
    %p38 = por %p36, %p37
    %p40 = scmp.ne.s32.totalorder %s23, %s39
    %p41 = scmp.eq.s32.totalorder %s15, 0
    %p42 = por %p40, %p41
    %s44 = sadd.s32 %s43, 1
    %p47 = scmp.eq.s32.totalorder %s9, 1
    %p48 = scmp.ne.s32.totalorder %s43, %s45
    %p49 = scmp.eq.s32.totalorder %s9, 0
    %p50 = por %p48, %p49
    %p51 = scmp.ne.s32.totalorder %s43, %s45
    %p52 = scmp.eq.s32.totalorder %s14, 1
    %p53 = por %p51, %p52
    %p54 = scmp.ne.s32.totalorder %s45, %s46
    %p55 = scmp.eq.s32.totalorder %s14, 0
    %p56 = por %p54, %p55
    %p57 = scmp.ne.s32.totalorder %s45, %s46
    %p58 = scmp.eq.s32.totalorder %s15, 1
    %p59 = por %p57, %p58
    %p61 = scmp.ne.s32.totalorder %s46, %s60
    %p62 = scmp.eq.s32.totalorder %s15, 0
    %p63 = por %p61, %p62
    %s65 = sadd.s32 %s64, 1
    %p68 = scmp.eq.s32.totalorder %s9, 1
    %p69 = scmp.ne.s32.totalorder %s64, %s66
    %p70 = scmp.eq.s32.totalorder %s9, 0
    %p71 = por %p69, %p70
    %p72 = scmp.ne.s32.totalorder %s64, %s66
    %p73 = scmp.eq.s32.totalorder %s14, 1
    %p74 = por %p72, %p73
    %p75 = scmp.ne.s32.totalorder %s66, %s67
    %p76 = scmp.eq.s32.totalorder %s14, 0
    %p77 = por %p75, %p76
    %p78 = scmp.ne.s32.totalorder %s66, %s67
    %p79 = scmp.eq.s32.totalorder %s15, 1
    %p80 = por %p78, %p79
    %p82 = scmp.ne.s32.totalorder %s67, %s81
    %p83 = scmp.eq.s32.totalorder %s15, 0
    %p84 = por %p82, %p83
    %s85 = ssub.s32 %s9, %s16
    %p86 = scmp.eq.s32.totalorder %s85, 0
    %s88 = sadd.s32 %s87, 1
    %s89 = scalar_select %p86, %s87, %s88
    %p92 = pneg %p86
    %p93 = scmp.eq.s32.totalorder %s9, 1
    %p94 = por %p92, %p93
    %p95 = scmp.ne.s32.totalorder %s87, %s90
    %p96 = scmp.eq.s32.totalorder %s9, 0
    %p97 = por %p95, %p96
    %p98 = scmp.ne.s32.totalorder %s87, %s90
    %p99 = scmp.eq.s32.totalorder %s14, 1
    %p100 = por %p98, %p99
    %p101 = scmp.ne.s32.totalorder %s90, %s91
    %p102 = scmp.eq.s32.totalorder %s14, 0
    %p103 = por %p101, %p102
    %p104 = scmp.ne.s32.totalorder %s90, %s91
    %p105 = scmp.eq.s32.totalorder %s15, 1
    %p106 = por %p104, %p105
    %p108 = scmp.ne.s32.totalorder %s91, %s107
    %p109 = scmp.eq.s32.totalorder %s15, 0
    %p110 = por %p108, %p109
    %p111 = scmp.le.s32.totalorder 1, %s9
    %p112 = scmp.lt.s32.totalorder %s9, 3
    %p113 = pnand %p111, %p112
    %p114 = pneg %p113
    // Predicated region
    $region9: #{repvgg_forward.9} parent=5 // pred_check
      _
    $region10: #{repvgg_forward.9} parent=5 // pred_check_branch
      %116 = sbr.rel (%p113) target = $region12
    $region11: #{repvgg_forward.9} parent=5 // pred_region
      %s117 = ssub.s32 %s9, 1
      // Predicated region
      $region13: #{repvgg_forward.9} parent=11 // pred_check
        %p118 = pneg %p56
      $region14: #{repvgg_forward.9} parent=11 // pred_check_branch
        %120 = sbr.rel (%p118) target = $region16
      $region15: #{repvgg_forward.9} parent=11 // pred_region
        _
      $region16: #{repvgg_forward.9} parent=11 // pred_fallthru
        _
      // Predicated region
      $region17: #{repvgg_forward.9} parent=11 // pred_check
        %p121 = pneg %p77
      $region18: #{repvgg_forward.9} parent=11 // pred_check_branch
        %123 = sbr.rel (%p121) target = $region20
      $region19: #{repvgg_forward.9} parent=11 // pred_region
        _
      $region20: #{repvgg_forward.9} parent=11 // pred_fallthru
        _
    $region12: #{repvgg_forward.9} parent=5 // pred_fallthru
      _
    %p124 = scmp.lt.s32.totalorder %s9, 2
    // Predicated region
    $region21: #{repvgg_forward.9} parent=5 // pred_check
      %p125 = pneg %p124
    $region22: #{repvgg_forward.9} parent=5 // pred_check_branch
      %127 = sbr.rel (%p125) target = $region24
    $region23: #{repvgg_forward.9} parent=5 // pred_region
      // Predicated region
      $region25: #{repvgg_forward.9} parent=23 // pred_check
        %p128 = pneg %p29
      $region26: #{repvgg_forward.9} parent=23 // pred_check_branch
        %130 = sbr.rel (%p128) target = $region28
      $region27: #{repvgg_forward.9} parent=23 // pred_region
        %s131 = smul.u32 2, %s9
        %p132 = scmp.lt.s32.totalorder %s131, 3
        %s133 = scalar_select %p132, %s131, 3
        %s134 = smul.addr %s133, 9
        %s135 = smul.addr %s134, 4
        %s136 = scalar_lea.vmem %s0, %s135
        %s137 = smul.u32 2, %s9
      $region28: #{repvgg_forward.9} parent=23 // pred_fallthru
        _
    $region24: #{repvgg_forward.9} parent=5 // pred_fallthru
      _
    %p138 = scmp.le.s32.totalorder 1, %s9
    %p139 = scmp.lt.s32.totalorder %s9, 3
    %p140 = pnand %p138, %p139
    %p141 = pneg %p140
    // Predicated region
    $region29: #{repvgg_forward.9} parent=5 // pred_check
      _
    $region30: #{repvgg_forward.9} parent=5 // pred_check_branch
      %143 = sbr.rel (%p140) target = $region32
    $region31: #{repvgg_forward.9} parent=5 // pred_region
      %s144 = ssub.s32 %s9, 1
      %s145 = smul.u32 2, %s14
      %p146 = scmp.lt.s32.totalorder %s145, 3
      %s147 = scalar_select %p146, %s145, 3
      %s148 = smul.addr %s147, 9
      %s149 = smul.addr %s148, 4
      %s150 = scalar_lea.vmem %s0, %s149
      %p151 = pneg %p35
      %p152 = pneg %p32
      %p153 = pneg %p56
      %p154 = pneg %p53
      %p155 = pneg %p77
      %p156 = pneg %p74
      %p157 = pneg %p103
      %p158 = pneg %p100
      %s159 = smul.u32 2, %s14
      %p160 = scmp.lt.s32.totalorder %s159, 3
      %s161 = scalar_select %p160, %s159, 3
      %s162 = smul.addr %s161, 4
      %s163 = scalar_lea.vmem %s3, %s162
      %s164 = smul.u32 2, %s14
      %p165 = scmp.lt.s32.totalorder %s164, 3
      %s166 = scalar_select %p165, %s164, 3
      %s167 = smul.addr %s166, 9
      %s168 = smul.addr %s167, 4
      %s169 = scalar_lea.vmem %s0, %s168
      %s170 = smul.u32 2, %s14
      %s171 = smul.u32 2, %s14
      %p172 = scmp.lt.s32.totalorder %s171, 3
      %s173 = scalar_select %p172, %s171, 3
      %s174 = smul.addr %s173, 4
      %s175 = scalar_lea.vmem %s3, %s174
      %s176 = smul.u32 2, %s14
      %v178 = vld [vmem:[%s169] sm:$0xff]
      %v179 = vld [vmem:[%s169 + $0x8] sm:$0xff]
      %v180 = vld [vmem:[%s169 + $0x10] sm:$0xff]
      %v181 = vld [vmem:[%s169 + $0x18] sm:$0xff]
      %v182 = vld [vmem:[%s169 + $0x20] sm:$0xf]
      %v183 = vld [vmem:[%s169 + $0x24] sm:$0xff]
      %v184 = vld [vmem:[%s169 + $0x2c] sm:$0xff]
      %v185 = vld [vmem:[%s169 + $0x34] sm:$0xff]
      %v186 = vld [vmem:[%s169 + $0x3c] sm:$0xff]
      %v187 = vld [vmem:[%s169 + $0x44] sm:$0xf]
      %v188 = vld [vmem:[%s1] sm:$0xf]
      %v189 = vld [vmem:[%s1 + $0x4] sm:$0xf]
      %v190 = vld [vmem:[%s1 + $0x8] sm:$0xf]
      %v191 = vld [vmem:[%s1 + $0xc] sm:$0xf]
      %v192 = vld [vmem:[%s1 + $0x10] sm:$0xf]
      %v193 = vld [vmem:[%s1 + $0x14] sm:$0xf]
      %v194 = vld [vmem:[%s1 + $0x18] sm:$0xf]
      %v195 = vld [vmem:[%s1 + $0x1c] sm:$0xf]
      %v196 = vld [vmem:[%s1 + $0x20] sm:$0xf]
      %v197 = vld [vmem:[%s1 + $0x24] sm:$0xf]
      %v198 = vld [vmem:[%s1 + $0x28] sm:$0xf]
      %v199 = vld [vmem:[%s1 + $0x2c] sm:$0xf]
      %v200 = vld [vmem:[%s1 + $0x30] sm:$0xf]
      %v201 = vld [vmem:[%s1 + $0x34] sm:$0xf]
      %v202 = vld [vmem:[%s1 + $0x38] sm:$0xf]
      %v203 = vld [vmem:[%s1 + $0x3c] sm:$0xf]
      %v204 = vld [vmem:[%s1 + $0x40] sm:$0xf]
      %v205 = vld [vmem:[%s1 + $0x44] sm:$0xf]
      %v206 = vld [vmem:[%s1 + $0x48] sm:$0xf]
      %v207 = vld [vmem:[%s1 + $0x4c] sm:$0xf]
      %v208 = vld [vmem:[%s1 + $0x50] sm:$0xf]
      %v209 = vld [vmem:[%s1 + $0x54] sm:$0xf]
      %v210 = vld [vmem:[%s1 + $0x58] sm:$0xf]
      %v211 = vld [vmem:[%s1 + $0x5c] sm:$0xf]
      %v212 = vld [vmem:[%s1 + $0x60] sm:$0xf]
      %v213 = vld [vmem:[%s1 + $0x64] sm:$0xf]
      %v214 = vld [vmem:[%s1 + $0x68] sm:$0xf]
      %v215 = vld [vmem:[%s1 + $0x6c] sm:$0xf]
      %v216 = vld [vmem:[%s1 + $0x70] sm:$0xf]
      %v217 = vld [vmem:[%s1 + $0x74] sm:$0xf]
      %v218 = vld [vmem:[%s1 + $0x78] sm:$0xf]
      %v219 = vld [vmem:[%s1 + $0x7c] sm:$0xf]
      %v220 = vld [vmem:[%s1 + $0x80] sm:$0xf]
      %v221 = vld [vmem:[%s1 + $0x84] sm:$0xf]
      %v222 = vld [vmem:[%s1 + $0x88] sm:$0xf]
      %v223 = vld [vmem:[%s1 + $0x8c] sm:$0xf]
      %v224 = vld [vmem:[%s1 + $0x90] sm:$0xf]
      %v225 = vld [vmem:[%s1 + $0x94] sm:$0xf]
      %v226 = vld [vmem:[%s1 + $0x98] sm:$0xf]
      %v227 = vld [vmem:[%s1 + $0x9c] sm:$0xf]
      %v228 = vld [vmem:[%s1 + $0xa0] sm:$0xf]
      %v229 = vld [vmem:[%s1 + $0xa4] sm:$0xf]
      %v230 = vld [vmem:[%s1 + $0xa8] sm:$0xf]
      %v231 = vld [vmem:[%s1 + $0xac] sm:$0xf]
      %v232 = vld [vmem:[%s1 + $0xb0] sm:$0xf]
      %v233 = vld [vmem:[%s1 + $0xb4] sm:$0xf]
      %v234 = vld [vmem:[%s1 + $0xb8] sm:$0xf]
      %v235 = vld [vmem:[%s1 + $0xbc] sm:$0xf]
      %v236 = vld [vmem:[%s1 + $0xc0] sm:$0xf]
      %v237 = vld [vmem:[%s1 + $0xc4] sm:$0xf]
      %v238 = vld [vmem:[%s1 + $0xc8] sm:$0xf]
      %v239 = vld [vmem:[%s1 + $0xcc] sm:$0xf]
      %v240 = vld [vmem:[%s1 + $0xd0] sm:$0xf]
      %v241 = vld [vmem:[%s1 + $0xd4] sm:$0xf]
      %v242 = vld [vmem:[%s1 + $0xd8] sm:$0xf]
      %v243 = vld [vmem:[%s1 + $0xdc] sm:$0xf]
      %v244 = vld [vmem:[%s1 + $0xe0] sm:$0xf]
      %v245 = vld [vmem:[%s1 + $0xe4] sm:$0xf]
      %v246 = vld [vmem:[%s1 + $0xe8] sm:$0xf]
      %v247 = vld [vmem:[%s1 + $0xec] sm:$0xf]
      %v248 = vld [vmem:[%s1 + $0xf0] sm:$0xf]
      %v249 = vld [vmem:[%s1 + $0xf4] sm:$0xf]
      %v250 = vld [vmem:[%s1 + $0xf8] sm:$0xf]
      %v251 = vld [vmem:[%s1 + $0xfc] sm:$0xf]
      %v252 = vld [vmem:[%s1 + $0x100] sm:$0xf]
      %v253 = vld [vmem:[%s1 + $0x104] sm:$0xf]
      %v254 = vld [vmem:[%s1 + $0x108] sm:$0xf]
      %v255 = vld [vmem:[%s1 + $0x10c] sm:$0xf]
      %v256 = vld [vmem:[%s1 + $0x110] sm:$0xf]
      %v257 = vld [vmem:[%s1 + $0x114] sm:$0xf]
      %v258 = vld [vmem:[%s1 + $0x118] sm:$0xf]
      %v259 = vld [vmem:[%s1 + $0x11c] sm:$0xf]
      %v260 = vld [vmem:[%s1 + $0x120] sm:$0xf]
      %v261 = vld [vmem:[%s1 + $0x124] sm:$0xf]
      %v262 = vld [vmem:[%s1 + $0x128] sm:$0xf]
      %v263 = vld [vmem:[%s1 + $0x12c] sm:$0xf]
      %v264 = vld [vmem:[%s1 + $0x130] sm:$0xf]
      %v265 = vld [vmem:[%s1 + $0x134] sm:$0xf]
      %v266 = vld [vmem:[%s1 + $0x138] sm:$0xf]
      %v267 = vld [vmem:[%s1 + $0x13c] sm:$0xf]
      %v268 = vld [vmem:[%s1 + $0x140] sm:$0xf]
      %v269 = vld [vmem:[%s1 + $0x144] sm:$0xf]
      %v270 = vld [vmem:[%s1 + $0x148] sm:$0xf]
      %v271 = vld [vmem:[%s1 + $0x14c] sm:$0xf]
      %v272 = vld [vmem:[%s1 + $0x150] sm:$0xf]
      %v273 = vld [vmem:[%s1 + $0x154] sm:$0xf]
      %v274 = vld [vmem:[%s1 + $0x158] sm:$0xf]
      %v275 = vld [vmem:[%s1 + $0x15c] sm:$0xf]
      %v276 = vld [vmem:[%s1 + $0x160] sm:$0xf]
      %v277 = vld [vmem:[%s1 + $0x164] sm:$0xf]
      %v278 = vld [vmem:[%s1 + $0x168] sm:$0xf]
      %v279 = vld [vmem:[%s1 + $0x16c] sm:$0xf]
      %v280 = vld [vmem:[%s1 + $0x170] sm:$0xf]
      %v281 = vld [vmem:[%s1 + $0x174] sm:$0xf]
      %v282 = vld [vmem:[%s1 + $0x178] sm:$0xf]
      %v283 = vld [vmem:[%s1 + $0x17c] sm:$0xf]
      %v284 = vld [vmem:[%s1 + $0x180] sm:$0xf]
      %v285 = vld [vmem:[%s1 + $0x184] sm:$0xf]
      %v286 = vld [vmem:[%s1 + $0x188] sm:$0xf]
      %v287 = vld [vmem:[%s1 + $0x18c] sm:$0xf]
      %v288 = vld [vmem:[%s1 + $0x190] sm:$0xf]
      %v289 = vld [vmem:[%s1 + $0x194] sm:$0xf]
      %v290 = vld [vmem:[%s1 + $0x198] sm:$0xf]
      %v291 = vld [vmem:[%s1 + $0x19c] sm:$0xf]
      %v292 = vld [vmem:[%s1 + $0x1a0] sm:$0xf]
      %v293 = vld [vmem:[%s1 + $0x1a4] sm:$0xf]
      %v294 = vld [vmem:[%s1 + $0x1a8] sm:$0xf]
      %v295 = vld [vmem:[%s1 + $0x1ac] sm:$0xf]
      %v296 = vld [vmem:[%s1 + $0x1b0] sm:$0xf]
      %v297 = vld [vmem:[%s1 + $0x1b4] sm:$0xf]
      %v298 = vld [vmem:[%s1 + $0x1b8] sm:$0xf]
      %v299 = vld [vmem:[%s1 + $0x1bc] sm:$0xf]
      %v300 = vld [vmem:[%s1 + $0x1c0] sm:$0xf]
      %v301 = vld [vmem:[%s1 + $0x1c4] sm:$0xf]
      %v302 = vld [vmem:[%s1 + $0x1c8] sm:$0xf]
      %v303 = vld [vmem:[%s1 + $0x1cc] sm:$0xf]
      %v304 = vld [vmem:[%s1 + $0x1d0] sm:$0xf]
      %v305 = vld [vmem:[%s1 + $0x1d4] sm:$0xf]
      %v306 = vld [vmem:[%s1 + $0x1d8] sm:$0xf]
      %v307 = vld [vmem:[%s1 + $0x1dc] sm:$0xf]
      %v308 = vld [vmem:[%s1 + $0x1e0] sm:$0xf]
      %v309 = vld [vmem:[%s1 + $0x1e4] sm:$0xf]
      %v310 = vld [vmem:[%s1 + $0x1e8] sm:$0xf]
      %v311 = vld [vmem:[%s1 + $0x1ec] sm:$0xf]
      %v312 = vld [vmem:[%s1 + $0x1f0] sm:$0xf]
      %v313 = vld [vmem:[%s1 + $0x1f4] sm:$0xf]
      %v314 = vld [vmem:[%s1 + $0x1f8] sm:$0xf]
      %v315 = vld [vmem:[%s1 + $0x1fc] sm:$0xf]
      %v316 = vld [vmem:[%s1 + $0x200] sm:$0xf]
      %v317 = vld [vmem:[%s1 + $0x204] sm:$0xf]
      %v318 = vld [vmem:[%s1 + $0x208] sm:$0xf]
      %v319 = vld [vmem:[%s1 + $0x20c] sm:$0xf]
      %v320 = vld [vmem:[%s1 + $0x210] sm:$0xf]
      %v321 = vld [vmem:[%s1 + $0x214] sm:$0xf]
      %v322 = vld [vmem:[%s1 + $0x218] sm:$0xf]
      %v323 = vld [vmem:[%s1 + $0x21c] sm:$0xf]
      %v324 = vld [vmem:[%s1 + $0x220] sm:$0xf]
      %v325 = vld [vmem:[%s1 + $0x224] sm:$0xf]
      %v326 = vld [vmem:[%s1 + $0x228] sm:$0xf]
      %v327 = vld [vmem:[%s1 + $0x22c] sm:$0xf]
      %v328 = vld [vmem:[%s1 + $0x230] sm:$0xf]
      %v329 = vld [vmem:[%s1 + $0x234] sm:$0xf]
      %v330 = vld [vmem:[%s1 + $0x238] sm:$0xf]
      %v331 = vld [vmem:[%s1 + $0x23c] sm:$0xf]
      %v332 = vld [vmem:[%s2] sm:$0x1]
      %v334 = vlaneseq
      %v335 = vshrl.u32 %v334, 7
      %v336 = vsub.s32 0, %v335
      %v337 = vrot.slane %v332, %v336
      %v349 = vunpack.c.l.b16 %v178
      %v350 = vunpack.c.h.b16 %v178
      %v351 = vunpack.c.l.b16 %v179
      %v352 = vunpack.c.h.b16 %v179
      %v353 = vunpack.c.l.b16 %v180
      %v354 = vunpack.c.h.b16 %v180
      %v355 = vunpack.c.l.b16 %v181
      %v356 = vunpack.c.h.b16 %v181
      %v357 = vunpack.c.l.b16 %v182
      %v358 = vunpack.c.l.b16 %v183
      %v359 = vunpack.c.h.b16 %v183
      %v360 = vunpack.c.l.b16 %v184
      %v361 = vunpack.c.h.b16 %v184
      %v362 = vunpack.c.l.b16 %v185
      %v363 = vunpack.c.h.b16 %v185
      %v364 = vunpack.c.l.b16 %v186
      %v365 = vunpack.c.h.b16 %v186
      %v366 = vunpack.c.l.b16 %v187
      %v367 = vpack.c.b16 %v358, %v349
      %v368 = vpack.c.b16 %v359, %v350
      %v369 = vpack.c.b16 %v360, %v351
      %v370 = vpack.c.b16 %v361, %v352
      %v371 = vpack.c.b16 %v362, %v353
      %v372 = vpack.c.b16 %v363, %v354
      %v373 = vpack.c.b16 %v364, %v355
      %v374 = vpack.c.b16 %v365, %v356
      %v375 = vpack.c.b16 %v366, %v357
      %v529 = vunpack.c.l.b16 %v188
      %v530 = vunpack.c.l.b16 %v189
      %v531 = vunpack.c.l.b16 %v190
      %v532 = vunpack.c.l.b16 %v191
      %v533 = vunpack.c.l.b16 %v192
      %v534 = vunpack.c.l.b16 %v193
      %v535 = vunpack.c.l.b16 %v194
      %v536 = vunpack.c.l.b16 %v195
      %v537 = vunpack.c.l.b16 %v196
      %v538 = vunpack.c.l.b16 %v197
      %v539 = vunpack.c.l.b16 %v198
      %v540 = vunpack.c.l.b16 %v199
      %v541 = vunpack.c.l.b16 %v200
      %v542 = vunpack.c.l.b16 %v201
      %v543 = vunpack.c.l.b16 %v202
      %v544 = vunpack.c.l.b16 %v203
      %v545 = vunpack.c.l.b16 %v204
      %v546 = vunpack.c.l.b16 %v205
      %v547 = vunpack.c.l.b16 %v206
      %v548 = vunpack.c.l.b16 %v207
      %v549 = vunpack.c.l.b16 %v208
      %v550 = vunpack.c.l.b16 %v209
      %v551 = vunpack.c.l.b16 %v210
      %v552 = vunpack.c.l.b16 %v211
      %v553 = vunpack.c.l.b16 %v212
      %v554 = vunpack.c.l.b16 %v213
      %v555 = vunpack.c.l.b16 %v214
      %v556 = vunpack.c.l.b16 %v215
      %v557 = vunpack.c.l.b16 %v216
      %v558 = vunpack.c.l.b16 %v217
      %v559 = vunpack.c.l.b16 %v218
      %v560 = vunpack.c.l.b16 %v219
      %v561 = vunpack.c.l.b16 %v220
      %v562 = vunpack.c.l.b16 %v221
      %v563 = vunpack.c.l.b16 %v222
      %v564 = vunpack.c.l.b16 %v223
      %v565 = vunpack.c.l.b16 %v224
      %v566 = vunpack.c.l.b16 %v225
      %v567 = vunpack.c.l.b16 %v226
      %v568 = vunpack.c.l.b16 %v227
      %v569 = vunpack.c.l.b16 %v228
      %v570 = vunpack.c.l.b16 %v229
      %v571 = vunpack.c.l.b16 %v230
      %v572 = vunpack.c.l.b16 %v231
      %v573 = vunpack.c.l.b16 %v232
      %v574 = vunpack.c.l.b16 %v233
      %v575 = vunpack.c.l.b16 %v234
      %v576 = vunpack.c.l.b16 %v235
      %v577 = vunpack.c.l.b16 %v236
      %v578 = vunpack.c.l.b16 %v237
      %v579 = vunpack.c.l.b16 %v238
      %v580 = vunpack.c.l.b16 %v239
      %v581 = vunpack.c.l.b16 %v240
      %v582 = vunpack.c.l.b16 %v241
      %v583 = vunpack.c.l.b16 %v242
      %v584 = vunpack.c.l.b16 %v243
      %v585 = vunpack.c.l.b16 %v244
      %v586 = vunpack.c.l.b16 %v245
      %v587 = vunpack.c.l.b16 %v246
      %v588 = vunpack.c.l.b16 %v247
      %v589 = vunpack.c.l.b16 %v248
      %v590 = vunpack.c.l.b16 %v249
      %v591 = vunpack.c.l.b16 %v250
      %v592 = vunpack.c.l.b16 %v251
      %v593 = vunpack.c.l.b16 %v252
      %v594 = vunpack.c.l.b16 %v253
      %v595 = vunpack.c.l.b16 %v254
      %v596 = vunpack.c.l.b16 %v255
      %v597 = vunpack.c.l.b16 %v256
      %v598 = vunpack.c.l.b16 %v257
      %v599 = vunpack.c.l.b16 %v258
      %v600 = vunpack.c.l.b16 %v259
      %v601 = vunpack.c.l.b16 %v260
      %v602 = vunpack.c.l.b16 %v261
      %v603 = vunpack.c.l.b16 %v262
      %v604 = vunpack.c.l.b16 %v263
      %v605 = vunpack.c.l.b16 %v264
      %v606 = vunpack.c.l.b16 %v265
      %v607 = vunpack.c.l.b16 %v266
      %v608 = vunpack.c.l.b16 %v267
      %v609 = vunpack.c.l.b16 %v268
      %v610 = vunpack.c.l.b16 %v269
      %v611 = vunpack.c.l.b16 %v270
      %v612 = vunpack.c.l.b16 %v271
      %v613 = vunpack.c.l.b16 %v272
      %v614 = vunpack.c.l.b16 %v273
      %v615 = vunpack.c.l.b16 %v274
      %v616 = vunpack.c.l.b16 %v275
      %v617 = vunpack.c.l.b16 %v276
      %v618 = vunpack.c.l.b16 %v277
      %v619 = vunpack.c.l.b16 %v278
      %v620 = vunpack.c.l.b16 %v279
      %v621 = vunpack.c.l.b16 %v280
      %v622 = vunpack.c.l.b16 %v281
      %v623 = vunpack.c.l.b16 %v282
      %v624 = vunpack.c.l.b16 %v283
      %v625 = vunpack.c.l.b16 %v284
      %v626 = vunpack.c.l.b16 %v285
      %v627 = vunpack.c.l.b16 %v286
      %v628 = vunpack.c.l.b16 %v287
      %v629 = vunpack.c.l.b16 %v288
      %v630 = vunpack.c.l.b16 %v289
      %v631 = vunpack.c.l.b16 %v290
      %v632 = vunpack.c.l.b16 %v291
      %v633 = vunpack.c.l.b16 %v292
      %v634 = vunpack.c.l.b16 %v293
      %v635 = vunpack.c.l.b16 %v294
      %v636 = vunpack.c.l.b16 %v295
      %v637 = vunpack.c.l.b16 %v296
      %v638 = vunpack.c.l.b16 %v297
      %v639 = vunpack.c.l.b16 %v298
      %v640 = vunpack.c.l.b16 %v299
      %v641 = vunpack.c.l.b16 %v300
      %v642 = vunpack.c.l.b16 %v301
      %v643 = vunpack.c.l.b16 %v302
      %v644 = vunpack.c.l.b16 %v303
      %v645 = vunpack.c.l.b16 %v304
      %v646 = vunpack.c.l.b16 %v305
      %v647 = vunpack.c.l.b16 %v306
      %v648 = vunpack.c.l.b16 %v307
      %v649 = vunpack.c.l.b16 %v308
      %v650 = vunpack.c.l.b16 %v309
      %v651 = vunpack.c.l.b16 %v310
      %v652 = vunpack.c.l.b16 %v311
      %v653 = vunpack.c.l.b16 %v312
      %v654 = vunpack.c.l.b16 %v313
      %v655 = vunpack.c.l.b16 %v314
      %v656 = vunpack.c.l.b16 %v315
      %v657 = vunpack.c.l.b16 %v316
      %v658 = vunpack.c.l.b16 %v317
      %v659 = vunpack.c.l.b16 %v318
      %v660 = vunpack.c.l.b16 %v319
      %v661 = vunpack.c.l.b16 %v320
      %v662 = vunpack.c.l.b16 %v321
      %v663 = vunpack.c.l.b16 %v322
      %v664 = vunpack.c.l.b16 %v323
      %v665 = vunpack.c.l.b16 %v324
      %v666 = vunpack.c.l.b16 %v325
      %v667 = vunpack.c.l.b16 %v326
      %v668 = vunpack.c.l.b16 %v327
      %v669 = vunpack.c.l.b16 %v328
      %v670 = vunpack.c.l.b16 %v329
      %v671 = vunpack.c.l.b16 %v330
      %v672 = vunpack.c.l.b16 %v331
      %v673 = vpack.c.b16 %v530, %v529
      %v674 = vpack.c.b16 %v532, %v531
      %v675 = vpack.c.b16 %v534, %v533
      %v676 = vpack.c.b16 %v536, %v535
      %v677 = vpack.c.b16 %v538, %v537
      %v678 = vpack.c.b16 %v540, %v539
      %v679 = vpack.c.b16 %v542, %v541
      %v680 = vpack.c.b16 %v544, %v543
      %v681 = vpack.c.b16 %v546, %v545
      %v682 = vpack.c.b16 %v548, %v547
      %v683 = vpack.c.b16 %v550, %v549
      %v684 = vpack.c.b16 %v552, %v551
      %v685 = vpack.c.b16 %v554, %v553
      %v686 = vpack.c.b16 %v556, %v555
      %v687 = vpack.c.b16 %v558, %v557
      %v688 = vpack.c.b16 %v560, %v559
      %v689 = vpack.c.b16 %v562, %v561
      %v690 = vpack.c.b16 %v564, %v563
      %v691 = vpack.c.b16 %v566, %v565
      %v692 = vpack.c.b16 %v568, %v567
      %v693 = vpack.c.b16 %v570, %v569
      %v694 = vpack.c.b16 %v572, %v571
      %v695 = vpack.c.b16 %v574, %v573
      %v696 = vpack.c.b16 %v576, %v575
      %v697 = vpack.c.b16 %v578, %v577
      %v698 = vpack.c.b16 %v580, %v579
      %v699 = vpack.c.b16 %v582, %v581
      %v700 = vpack.c.b16 %v584, %v583
      %v701 = vpack.c.b16 %v586, %v585
      %v702 = vpack.c.b16 %v588, %v587
      %v703 = vpack.c.b16 %v590, %v589
      %v704 = vpack.c.b16 %v592, %v591
      %v705 = vpack.c.b16 %v594, %v593
      %v706 = vpack.c.b16 %v596, %v595
      %v707 = vpack.c.b16 %v598, %v597
      %v708 = vpack.c.b16 %v600, %v599
      %v709 = vpack.c.b16 %v602, %v601
      %v710 = vpack.c.b16 %v604, %v603
      %v711 = vpack.c.b16 %v606, %v605
      %v712 = vpack.c.b16 %v608, %v607
      %v713 = vpack.c.b16 %v610, %v609
      %v714 = vpack.c.b16 %v612, %v611
      %v715 = vpack.c.b16 %v614, %v613
      %v716 = vpack.c.b16 %v616, %v615
      %v717 = vpack.c.b16 %v618, %v617
      %v718 = vpack.c.b16 %v620, %v619
      %v719 = vpack.c.b16 %v622, %v621
      %v720 = vpack.c.b16 %v624, %v623
      %v721 = vpack.c.b16 %v626, %v625
      %v722 = vpack.c.b16 %v628, %v627
      %v723 = vpack.c.b16 %v630, %v629
      %v724 = vpack.c.b16 %v632, %v631
      %v725 = vpack.c.b16 %v634, %v633
      %v726 = vpack.c.b16 %v636, %v635
      %v727 = vpack.c.b16 %v638, %v637
      %v728 = vpack.c.b16 %v640, %v639
      %v729 = vpack.c.b16 %v642, %v641
      %v730 = vpack.c.b16 %v644, %v643
      %v731 = vpack.c.b16 %v646, %v645
      %v732 = vpack.c.b16 %v648, %v647
      %v733 = vpack.c.b16 %v650, %v649
      %v734 = vpack.c.b16 %v652, %v651
      %v735 = vpack.c.b16 %v654, %v653
      %v736 = vpack.c.b16 %v656, %v655
      %v737 = vpack.c.b16 %v658, %v657
      %v738 = vpack.c.b16 %v660, %v659
      %v739 = vpack.c.b16 %v662, %v661
      %v740 = vpack.c.b16 %v664, %v663
      %v741 = vpack.c.b16 %v666, %v665
      %v742 = vpack.c.b16 %v668, %v667
      %v743 = vpack.c.b16 %v670, %v669
      %v744 = vpack.c.b16 %v672, %v671
      %817 = vmatprep.subr.bf16.mxu0 0
      %818 = vmatpush1.bf16.msra.mxu0 %v673
      %819 = vmatprep.subr.bf16.mxu0 0
      %820 = vmatpush1.bf16.msra.mxu0 %v674
      %821 = vmatprep.subr.bf16.mxu0 0
      %822 = vmatpush1.bf16.msra.mxu0 %v675
      %823 = vmatprep.subr.bf16.mxu0 0
      %824 = vmatpush1.bf16.msra.mxu0 %v676
      %825 = vmatprep.subr.bf16.mxu0 0
      %826 = vmatpush1.bf16.msra.mxu0 %v677
      %827 = vmatprep.subr.bf16.mxu0 0
      %828 = vmatpush1.bf16.msra.mxu0 %v678
      %829 = vmatprep.subr.bf16.mxu0 0
      %830 = vmatpush1.bf16.msra.mxu0 %v679
      %831 = vmatprep.subr.bf16.mxu0 0
      %832 = vmatpush1.bf16.msra.mxu0 %v680
      %833 = vmatprep.subr.bf16.mxu0 0
      %834 = vmatpush1.bf16.msra.mxu0 %v681
      %835 = vmatprep.subr.bf16.mxu0 0
      %836 = vmatpush1.bf16.msra.mxu0 %v682
      %837 = vmatprep.subr.bf16.mxu0 0
      %838 = vmatpush1.bf16.msra.mxu0 %v683
      %839 = vmatprep.subr.bf16.mxu0 0
      %840 = vmatpush1.bf16.msra.mxu0 %v684
      %841 = vmatprep.subr.bf16.mxu0 0
      %842 = vmatpush1.bf16.msra.mxu0 %v685
      %843 = vmatprep.subr.bf16.mxu0 0
      %844 = vmatpush1.bf16.msra.mxu0 %v686
      %845 = vmatprep.subr.bf16.mxu0 0
      %846 = vmatpush1.bf16.msra.mxu0 %v687
      %847 = vmatprep.subr.bf16.mxu0 0
      %848 = vmatpush1.bf16.msra.mxu0 %v688
      %849 = vmatprep.mubr.bf16.mxu0 %v368
      %850 = vmatmul.mubr.bf16.gmra.mrb[0].mxu0 %v367
      %v851 = vpop.f32.mrb[0].mxu0
      %v852 = vadd.f32 %v337, %v851
      %v853 = vpop.f32.mrb[0].mxu0
      %v854 = vpop.f32.mrb[0].mxu0
      %v855 = vadd.f32 %v337, %v854
      %v856 = vpop.f32.mrb[0].mxu0
      %857 = vdwg.mxu0
      %858 = vmatprep.subr.bf16.mxu0 0
      %859 = vmatpush1.bf16.msra.mxu0 %v689
      %860 = vmatprep.subr.bf16.mxu0 0
      %861 = vmatpush1.bf16.msra.mxu0 %v690
      %862 = vmatprep.subr.bf16.mxu0 0
      %863 = vmatpush1.bf16.msra.mxu0 %v691
      %864 = vmatprep.subr.bf16.mxu0 0
      %865 = vmatpush1.bf16.msra.mxu0 %v692
      %866 = vmatprep.subr.bf16.mxu0 0
      %867 = vmatpush1.bf16.msra.mxu0 %v693
      %868 = vmatprep.subr.bf16.mxu0 0
      %869 = vmatpush1.bf16.msra.mxu0 %v694
      %870 = vmatprep.subr.bf16.mxu0 0
      %871 = vmatpush1.bf16.msra.mxu0 %v695
      %872 = vmatprep.subr.bf16.mxu0 0
      %873 = vmatpush1.bf16.msra.mxu0 %v696
      %874 = vmatprep.subr.bf16.mxu0 0
      %875 = vmatpush1.bf16.msra.mxu0 %v697
      %876 = vmatprep.subr.bf16.mxu0 0
      %877 = vmatpush1.bf16.msra.mxu0 %v698
      %878 = vmatprep.subr.bf16.mxu0 0
      %879 = vmatpush1.bf16.msra.mxu0 %v699
      %880 = vmatprep.subr.bf16.mxu0 0
      %881 = vmatpush1.bf16.msra.mxu0 %v700
      %882 = vmatprep.subr.bf16.mxu0 0
      %883 = vmatpush1.bf16.msra.mxu0 %v701
      %884 = vmatprep.subr.bf16.mxu0 0
      %885 = vmatpush1.bf16.msra.mxu0 %v702
      %886 = vmatprep.subr.bf16.mxu0 0
      %887 = vmatpush1.bf16.msra.mxu0 %v703
      %888 = vmatprep.subr.bf16.mxu0 0
      %889 = vmatpush1.bf16.msra.mxu0 %v704
      %890 = vmatprep.mubr.bf16.mxu0 %v370
      %891 = vmatmul.mubr.bf16.gmra.mrb[0].mxu0 %v369
      %v892 = vpop.f32.mrb[0].mxu0
      %v893 = vadd.f32 %v852, %v892
      %v894 = vpop.f32.mrb[0].mxu0
      %v895 = vpop.f32.mrb[0].mxu0
      %v896 = vadd.f32 %v855, %v895
      %v897 = vpop.f32.mrb[0].mxu0
      %898 = vdwg.mxu0
      %899 = vmatprep.subr.bf16.mxu0 0
      %900 = vmatpush1.bf16.msra.mxu0 %v705
      %901 = vmatprep.subr.bf16.mxu0 0
      %902 = vmatpush1.bf16.msra.mxu0 %v706
      %903 = vmatprep.subr.bf16.mxu0 0
      %904 = vmatpush1.bf16.msra.mxu0 %v707
      %905 = vmatprep.subr.bf16.mxu0 0
      %906 = vmatpush1.bf16.msra.mxu0 %v708
      %907 = vmatprep.subr.bf16.mxu0 0
      %908 = vmatpush1.bf16.msra.mxu0 %v709
      %909 = vmatprep.subr.bf16.mxu0 0
      %910 = vmatpush1.bf16.msra.mxu0 %v710
      %911 = vmatprep.subr.bf16.mxu0 0
      %912 = vmatpush1.bf16.msra.mxu0 %v711
      %913 = vmatprep.subr.bf16.mxu0 0
      %914 = vmatpush1.bf16.msra.mxu0 %v712
      %915 = vmatprep.subr.bf16.mxu0 0
      %916 = vmatpush1.bf16.msra.mxu0 %v713
      %917 = vmatprep.subr.bf16.mxu0 0
      %918 = vmatpush1.bf16.msra.mxu0 %v714
      %919 = vmatprep.subr.bf16.mxu0 0
      %920 = vmatpush1.bf16.msra.mxu0 %v715
      %921 = vmatprep.subr.bf16.mxu0 0
      %922 = vmatpush1.bf16.msra.mxu0 %v716
      %923 = vmatprep.subr.bf16.mxu0 0
      %924 = vmatpush1.bf16.msra.mxu0 %v717
      %925 = vmatprep.subr.bf16.mxu0 0
      %926 = vmatpush1.bf16.msra.mxu0 %v718
      %927 = vmatprep.subr.bf16.mxu0 0
      %928 = vmatpush1.bf16.msra.mxu0 %v719
      %929 = vmatprep.subr.bf16.mxu0 0
      %930 = vmatpush1.bf16.msra.mxu0 %v720
      %931 = vmatprep.mubr.bf16.mxu0 %v372
      %932 = vmatmul.mubr.bf16.gmra.mrb[0].mxu0 %v371
      %v933 = vpop.f32.mrb[0].mxu0
      %v934 = vadd.f32 %v893, %v933
      %v935 = vpop.f32.mrb[0].mxu0
      %v936 = vpop.f32.mrb[0].mxu0
      %v937 = vadd.f32 %v896, %v936
      %v938 = vpop.f32.mrb[0].mxu0
      %939 = vdwg.mxu0
      %940 = vmatprep.subr.bf16.mxu0 0
      %941 = vmatpush1.bf16.msra.mxu0 %v721
      %942 = vmatprep.subr.bf16.mxu0 0
      %943 = vmatpush1.bf16.msra.mxu0 %v722
      %944 = vmatprep.subr.bf16.mxu0 0
      %945 = vmatpush1.bf16.msra.mxu0 %v723
      %946 = vmatprep.subr.bf16.mxu0 0
      %947 = vmatpush1.bf16.msra.mxu0 %v724
      %948 = vmatprep.subr.bf16.mxu0 0
      %949 = vmatpush1.bf16.msra.mxu0 %v725
      %950 = vmatprep.subr.bf16.mxu0 0
      %951 = vmatpush1.bf16.msra.mxu0 %v726
      %952 = vmatprep.subr.bf16.mxu0 0
      %953 = vmatpush1.bf16.msra.mxu0 %v727
      %954 = vmatprep.subr.bf16.mxu0 0
      %955 = vmatpush1.bf16.msra.mxu0 %v728
      %956 = vmatprep.subr.bf16.mxu0 0
      %957 = vmatpush1.bf16.msra.mxu0 %v729
      %958 = vmatprep.subr.bf16.mxu0 0
      %959 = vmatpush1.bf16.msra.mxu0 %v730
      %960 = vmatprep.subr.bf16.mxu0 0
      %961 = vmatpush1.bf16.msra.mxu0 %v731
      %962 = vmatprep.subr.bf16.mxu0 0
      %963 = vmatpush1.bf16.msra.mxu0 %v732
      %964 = vmatprep.subr.bf16.mxu0 0
      %965 = vmatpush1.bf16.msra.mxu0 %v733
      %966 = vmatprep.subr.bf16.mxu0 0
      %967 = vmatpush1.bf16.msra.mxu0 %v734
      %968 = vmatprep.subr.bf16.mxu0 0
      %969 = vmatpush1.bf16.msra.mxu0 %v735
      %970 = vmatprep.subr.bf16.mxu0 0
      %971 = vmatpush1.bf16.msra.mxu0 %v736
      %972 = vmatprep.mubr.bf16.mxu0 %v374
      %973 = vmatmul.mubr.bf16.gmra.mrb[0].mxu0 %v373
      %v974 = vpop.f32.mrb[0].mxu0
      %v975 = vadd.f32 %v934, %v974
      %v976 = vpop.f32.mrb[0].mxu0
      %v977 = vpop.f32.mrb[0].mxu0
      %v978 = vadd.f32 %v937, %v977
      %v979 = vpop.f32.mrb[0].mxu0
      %980 = vdwg.mxu0
      %981 = vmatprep.subr.bf16.mxu0 0
      %982 = vmatpush1.bf16.msra.mxu0 %v737
      %983 = vmatprep.subr.bf16.mxu0 0
      %984 = vmatpush1.bf16.msra.mxu0 %v738
      %985 = vmatprep.subr.bf16.mxu0 0
      %986 = vmatpush1.bf16.msra.mxu0 %v739
      %987 = vmatprep.subr.bf16.mxu0 0
      %988 = vmatpush1.bf16.msra.mxu0 %v740
      %989 = vmatprep.subr.bf16.mxu0 0
      %990 = vmatpush1.bf16.msra.mxu0 %v741
      %991 = vmatprep.subr.bf16.mxu0 0
      %992 = vmatpush1.bf16.msra.mxu0 %v742
      %993 = vmatprep.subr.bf16.mxu0 0
      %994 = vmatpush1.bf16.msra.mxu0 %v743
      %995 = vmatprep.subr.bf16.mxu0 0
      %996 = vmatpush1.bf16.msra.mxu0 %v744
      %997 = vmatprep.subr.bf16.mxu0 0
      %998 = vmatpush1.bf16.msra.mxu0 0
      %999 = vmatprep.subr.bf16.mxu0 0
      %1000 = vmatpush1.bf16.msra.mxu0 0
      %1001 = vmatprep.subr.bf16.mxu0 0
      %1002 = vmatpush1.bf16.msra.mxu0 0
      %1003 = vmatprep.subr.bf16.mxu0 0
      %1004 = vmatpush1.bf16.msra.mxu0 0
      %1005 = vmatprep.subr.bf16.mxu0 0
      %1006 = vmatpush1.bf16.msra.mxu0 0
      %1007 = vmatprep.subr.bf16.mxu0 0
      %1008 = vmatpush1.bf16.msra.mxu0 0
      %1009 = vmatprep.subr.bf16.mxu0 0
      %1010 = vmatpush1.bf16.msra.mxu0 0
      %1011 = vmatprep.subr.bf16.mxu0 0
      %1012 = vmatpush1.bf16.msra.mxu0 0
      %1013 = vmatprep.mubr.bf16.mxu0 0
      %1014 = vmatmul.mubr.bf16.gmra.mrb[0].mxu0 %v375
      %v1015 = vpop.f32.mrb[0].mxu0
      %v1016 = vadd.f32 %v975, %v1015
      %v1017 = vpop.f32.mrb[0].mxu0
      %v1018 = vpop.f32.mrb[0].mxu0
      %v1019 = vadd.f32 %v978, %v1018
      %v1020 = vpop.f32.mrb[0].mxu0
      %1021 = vdwg.mxu0
      %v1022 = vmax.f32 %v1016, 0.0
      %v1023 = vmax.f32 %v1019, 0.0
      %v1024 = vpack.c.bf16 %v1023, %v1022
      %v1026 = vunpack.c.l.b16 %v1024
      %v1027 = vunpack.c.h.b16 %v1024
      %v1028 = vpack.c.b16 %v1026, %v1026
      %v1029 = vpack.c.b16 %v1027, %v1027
      %1032 = vst [vmem:[%s175] sm:$0xf] %v1028
      %1033 = vst [vmem:[%s175 + $0x4] sm:$0xf] %v1029
      %s1034 = smul.u32 2, %s14
      %p1035 = scmp.lt.s32.totalorder %s1034, 3
      %s1036 = scalar_select %p1035, %s1034, 3
      %s1037 = smul.addr %s1036, 4
      %s1038 = scalar_lea.vmem %s3, %s1037
      // Predicated region
      $region33: #{repvgg_forward.9} parent=31 // pred_check
        %p1039 = pneg %p100
      $region34: #{repvgg_forward.9} parent=31 // pred_check_branch
        %1041 = sbr.rel (%p1039) target = $region36
      $region35: #{repvgg_forward.9} parent=31 // pred_region
        %s1042 = smul.u32 2, %s14
      $region36: #{repvgg_forward.9} parent=31 // pred_fallthru
        _
    $region32: #{repvgg_forward.9} parent=5 // pred_fallthru
      _
    %p1043 = scmp.le.s32.totalorder 2, %s9
    // Predicated region
    $region37: #{repvgg_forward.9} parent=5 // pred_check
      %p1044 = pneg %p1043
    $region38: #{repvgg_forward.9} parent=5 // pred_check_branch
      %1046 = sbr.rel (%p1044) target = $region40
    $region39: #{repvgg_forward.9} parent=5 // pred_region
      %s1047 = ssub.s32 %s9, 2
      // Predicated region
      $region41: #{repvgg_forward.9} parent=39 // pred_check
        %p1048 = pneg %p106
      $region42: #{repvgg_forward.9} parent=39 // pred_check_branch
        %1050 = sbr.rel (%p1048) target = $region44
      $region43: #{repvgg_forward.9} parent=39 // pred_region
        %s1051 = smul.u32 2, %s15
        %p1052 = scmp.lt.s32.totalorder %s1051, 3
        %s1053 = scalar_select %p1052, %s1051, 3
        %s1054 = smul.addr %s1053, 4
        %s1055 = scalar_lea.vmem %s3, %s1054
      $region44: #{repvgg_forward.9} parent=39 // pred_fallthru
        _
    $region40: #{repvgg_forward.9} parent=5 // pred_fallthru
      _
  $region6: #{repvgg_forward.9} parent=0 // loop_footer
    %s13 = sadd.s32 1, %s9
  $region7: #{repvgg_forward.9} parent=0 // loop_footer_branch
    %8 = sbr.rel target = $region3
  $region8: #{repvgg_forward.9} parent=0 // loop_exit
    _

// kernel: repvgg_forward.10
$region0: #{repvgg_forward.10}
  #allocation0 [shape = 'u32[]', space=smem, size = 0x4, offset = 0x4, fixed_abs, tag = 'smem constant byte address 0x4 - core index']
  #allocation1 [shape = 'u32[144,128]{1,0:T(1,128)}', space=vmem, size = 0x12000, scoped, tag = 'internal scratch']
  %s0 = inlined_call_operand.vmem [shape: bf16[16,1152], index: 0, kind: input, shape index: {}]
  %s1 = inlined_call_operand.vmem [shape: bf16[1152,128], index: 1, kind: input, shape index: {}]
  %s2 = inlined_call_operand.vmem [shape: f32[1,128], index: 2, kind: input, shape index: {}]
  %s3 = inlined_call_operand.vmem [shape: bf16[16,128], index: 3, kind: output, shape index: {}]
  %s4 = sld [smem:[#allocation0]]
  $region22: #{repvgg_forward.10} parent=0
    _
  %s6 = ssub.s32 1, %s4
  %s7 = scalar_select 0, %s6, %s4
  // Predicated region
  $region2: #{repvgg_forward.10} parent=0 // pred_check
    _
  $region3: #{repvgg_forward.10} parent=0 // pred_check_branch
    %9 = sbr.rel (0) target = $region5
  $region4: #{repvgg_forward.10} parent=0 // pred_region
    _
  $region5: #{repvgg_forward.10} parent=0 // pred_fallthru
    _
  // Predicated region
  $region6: #{repvgg_forward.10} parent=0 // pred_check
    _
  $region7: #{repvgg_forward.10} parent=0 // pred_check_branch
    %11 = sbr.rel (0) target = $region9
  $region8: #{repvgg_forward.10} parent=0 // pred_region
    _
  $region9: #{repvgg_forward.10} parent=0 // pred_fallthru
    _
  // Predicated region
  $region10: #{repvgg_forward.10} parent=0 // pred_check
    _
  $region11: #{repvgg_forward.10} parent=0 // pred_check_branch
    %13 = sbr.rel (0) target = $region13
  $region12: #{repvgg_forward.10} parent=0 // pred_region
    _
  $region13: #{repvgg_forward.10} parent=0 // pred_fallthru
    _
  %v15 = vld [vmem:[%s0] sm:$0xff]
  %v16 = vld [vmem:[%s0 + $0x8] sm:$0xff]
  %v17 = vld [vmem:[%s0 + $0x10] sm:$0xff]
  %v18 = vld [vmem:[%s0 + $0x18] sm:$0xff]
  %v19 = vld [vmem:[%s0 + $0x20] sm:$0xf]
  %v20 = vld [vmem:[%s0 + $0x24] sm:$0xff]
  %v21 = vld [vmem:[%s0 + $0x2c] sm:$0xff]
  %v22 = vld [vmem:[%s0 + $0x34] sm:$0xff]
  %v23 = vld [vmem:[%s0 + $0x3c] sm:$0xff]
  %v24 = vld [vmem:[%s0 + $0x44] sm:$0xf]
  %v25 = vld [vmem:[%s1] sm:$0xf]
  %v26 = vld [vmem:[%s1 + $0x4] sm:$0xf]
  %v27 = vld [vmem:[%s1 + $0x8] sm:$0xf]
  %v28 = vld [vmem:[%s1 + $0xc] sm:$0xf]
  %v29 = vld [vmem:[%s1 + $0x10] sm:$0xf]
  %v30 = vld [vmem:[%s1 + $0x14] sm:$0xf]
  %v31 = vld [vmem:[%s1 + $0x18] sm:$0xf]
  %v32 = vld [vmem:[%s1 + $0x1c] sm:$0xf]
  %v33 = vld [vmem:[%s1 + $0x20] sm:$0xf]
  %v34 = vld [vmem:[%s1 + $0x24] sm:$0xf]
  %v35 = vld [vmem:[%s1 + $0x28] sm:$0xf]
  %v36 = vld [vmem:[%s1 + $0x2c] sm:$0xf]
  %v37 = vld [vmem:[%s1 + $0x30] sm:$0xf]
  %v38 = vld [vmem:[%s1 + $0x34] sm:$0xf]
  %v39 = vld [vmem:[%s1 + $0x38] sm:$0xf]
  %v40 = vld [vmem:[%s1 + $0x3c] sm:$0xf]
  %v41 = vld [vmem:[%s1 + $0x40] sm:$0xf]
  %v42 = vld [vmem:[%s1 + $0x44] sm:$0xf]
  %v43 = vld [vmem:[%s1 + $0x48] sm:$0xf]
  %v44 = vld [vmem:[%s1 + $0x4c] sm:$0xf]
  %v45 = vld [vmem:[%s1 + $0x50] sm:$0xf]
  %v46 = vld [vmem:[%s1 + $0x54] sm:$0xf]
  %v47 = vld [vmem:[%s1 + $0x58] sm:$0xf]
  %v48 = vld [vmem:[%s1 + $0x5c] sm:$0xf]
  %v49 = vld [vmem:[%s1 + $0x60] sm:$0xf]
  %v50 = vld [vmem:[%s1 + $0x64] sm:$0xf]
  %v51 = vld [vmem:[%s1 + $0x68] sm:$0xf]
  %v52 = vld [vmem:[%s1 + $0x6c] sm:$0xf]
  %v53 = vld [vmem:[%s1 + $0x70] sm:$0xf]
  %v54 = vld [vmem:[%s1 + $0x74] sm:$0xf]
  %v55 = vld [vmem:[%s1 + $0x78] sm:$0xf]
  %v56 = vld [vmem:[%s1 + $0x7c] sm:$0xf]
  %v57 = vld [vmem:[%s1 + $0x80] sm:$0xf]
  %v58 = vld [vmem:[%s1 + $0x84] sm:$0xf]
  %v59 = vld [vmem:[%s1 + $0x88] sm:$0xf]
  %v60 = vld [vmem:[%s1 + $0x8c] sm:$0xf]
  %v61 = vld [vmem:[%s1 + $0x90] sm:$0xf]
  %v62 = vld [vmem:[%s1 + $0x94] sm:$0xf]
  %v63 = vld [vmem:[%s1 + $0x98] sm:$0xf]
  %v64 = vld [vmem:[%s1 + $0x9c] sm:$0xf]
  %v65 = vld [vmem:[%s1 + $0xa0] sm:$0xf]
  %v66 = vld [vmem:[%s1 + $0xa4] sm:$0xf]
  %v67 = vld [vmem:[%s1 + $0xa8] sm:$0xf]
  %v68 = vld [vmem:[%s1 + $0xac] sm:$0xf]
  %v69 = vld [vmem:[%s1 + $0xb0] sm:$0xf]
  %v70 = vld [vmem:[%s1 + $0xb4] sm:$0xf]
  %v71 = vld [vmem:[%s1 + $0xb8] sm:$0xf]
  %v72 = vld [vmem:[%s1 + $0xbc] sm:$0xf]
  %v73 = vld [vmem:[%s1 + $0xc0] sm:$0xf]
  %v74 = vld [vmem:[%s1 + $0xc4] sm:$0xf]
  %v75 = vld [vmem:[%s1 + $0xc8] sm:$0xf]
  %v76 = vld [vmem:[%s1 + $0xcc] sm:$0xf]
  %v77 = vld [vmem:[%s1 + $0xd0] sm:$0xf]
  %v78 = vld [vmem:[%s1 + $0xd4] sm:$0xf]
  %v79 = vld [vmem:[%s1 + $0xd8] sm:$0xf]
  %v80 = vld [vmem:[%s1 + $0xdc] sm:$0xf]
  %v81 = vld [vmem:[%s1 + $0xe0] sm:$0xf]
  %v82 = vld [vmem:[%s1 + $0xe4] sm:$0xf]
  %v83 = vld [vmem:[%s1 + $0xe8] sm:$0xf]
  %v84 = vld [vmem:[%s1 + $0xec] sm:$0xf]
  %v85 = vld [vmem:[%s1 + $0xf0] sm:$0xf]
  %v86 = vld [vmem:[%s1 + $0xf4] sm:$0xf]
  %v87 = vld [vmem:[%s1 + $0xf8] sm:$0xf]
  %v88 = vld [vmem:[%s1 + $0xfc] sm:$0xf]
  %v89 = vld [vmem:[%s1 + $0x100] sm:$0xf]
  %v90 = vld [vmem:[%s1 + $0x104] sm:$0xf]
  %v91 = vld [vmem:[%s1 + $0x108] sm:$0xf]
  %v92 = vld [vmem:[%s1 + $0x10c] sm:$0xf]
  %v93 = vld [vmem:[%s1 + $0x110] sm:$0xf]
  %v94 = vld [vmem:[%s1 + $0x114] sm:$0xf]
  %v95 = vld [vmem:[%s1 + $0x118] sm:$0xf]
  %v96 = vld [vmem:[%s1 + $0x11c] sm:$0xf]
  %v97 = vld [vmem:[%s1 + $0x120] sm:$0xf]
  %v98 = vld [vmem:[%s1 + $0x124] sm:$0xf]
  %v99 = vld [vmem:[%s1 + $0x128] sm:$0xf]
  %v100 = vld [vmem:[%s1 + $0x12c] sm:$0xf]
  %v101 = vld [vmem:[%s1 + $0x130] sm:$0xf]
  %v102 = vld [vmem:[%s1 + $0x134] sm:$0xf]
  %v103 = vld [vmem:[%s1 + $0x138] sm:$0xf]
  %v104 = vld [vmem:[%s1 + $0x13c] sm:$0xf]
  %v105 = vld [vmem:[%s1 + $0x140] sm:$0xf]
  %v106 = vld [vmem:[%s1 + $0x144] sm:$0xf]
  %v107 = vld [vmem:[%s1 + $0x148] sm:$0xf]
  %v108 = vld [vmem:[%s1 + $0x14c] sm:$0xf]
  %v109 = vld [vmem:[%s1 + $0x150] sm:$0xf]
  %v110 = vld [vmem:[%s1 + $0x154] sm:$0xf]
  %v111 = vld [vmem:[%s1 + $0x158] sm:$0xf]
  %v112 = vld [vmem:[%s1 + $0x15c] sm:$0xf]
  %v113 = vld [vmem:[%s1 + $0x160] sm:$0xf]
  %v114 = vld [vmem:[%s1 + $0x164] sm:$0xf]
  %v115 = vld [vmem:[%s1 + $0x168] sm:$0xf]
  %v116 = vld [vmem:[%s1 + $0x16c] sm:$0xf]
  %v117 = vld [vmem:[%s1 + $0x170] sm:$0xf]
  %v118 = vld [vmem:[%s1 + $0x174] sm:$0xf]
  %v119 = vld [vmem:[%s1 + $0x178] sm:$0xf]
  %v120 = vld [vmem:[%s1 + $0x17c] sm:$0xf]
  %v121 = vld [vmem:[%s1 + $0x180] sm:$0xf]
  %v122 = vld [vmem:[%s1 + $0x184] sm:$0xf]
  %v123 = vld [vmem:[%s1 + $0x188] sm:$0xf]
  %v124 = vld [vmem:[%s1 + $0x18c] sm:$0xf]
  %v125 = vld [vmem:[%s1 + $0x190] sm:$0xf]
  %v126 = vld [vmem:[%s1 + $0x194] sm:$0xf]
  %v127 = vld [vmem:[%s1 + $0x198] sm:$0xf]
  %v128 = vld [vmem:[%s1 + $0x19c] sm:$0xf]
  %v129 = vld [vmem:[%s1 + $0x1a0] sm:$0xf]
  %v130 = vld [vmem:[%s1 + $0x1a4] sm:$0xf]
  %v131 = vld [vmem:[%s1 + $0x1a8] sm:$0xf]
  %v132 = vld [vmem:[%s1 + $0x1ac] sm:$0xf]
  %v133 = vld [vmem:[%s1 + $0x1b0] sm:$0xf]
  %v134 = vld [vmem:[%s1 + $0x1b4] sm:$0xf]
  %v135 = vld [vmem:[%s1 + $0x1b8] sm:$0xf]
  %v136 = vld [vmem:[%s1 + $0x1bc] sm:$0xf]
  %v137 = vld [vmem:[%s1 + $0x1c0] sm:$0xf]
  %v138 = vld [vmem:[%s1 + $0x1c4] sm:$0xf]
  %v139 = vld [vmem:[%s1 + $0x1c8] sm:$0xf]
  %v140 = vld [vmem:[%s1 + $0x1cc] sm:$0xf]
  %v141 = vld [vmem:[%s1 + $0x1d0] sm:$0xf]
  %v142 = vld [vmem:[%s1 + $0x1d4] sm:$0xf]
  %v143 = vld [vmem:[%s1 + $0x1d8] sm:$0xf]
  %v144 = vld [vmem:[%s1 + $0x1dc] sm:$0xf]
  %v145 = vld [vmem:[%s1 + $0x1e0] sm:$0xf]
  %v146 = vld [vmem:[%s1 + $0x1e4] sm:$0xf]
  %v147 = vld [vmem:[%s1 + $0x1e8] sm:$0xf]
  %v148 = vld [vmem:[%s1 + $0x1ec] sm:$0xf]
  %v149 = vld [vmem:[%s1 + $0x1f0] sm:$0xf]
  %v150 = vld [vmem:[%s1 + $0x1f4] sm:$0xf]
  %v151 = vld [vmem:[%s1 + $0x1f8] sm:$0xf]
  %v152 = vld [vmem:[%s1 + $0x1fc] sm:$0xf]
  %v153 = vld [vmem:[%s1 + $0x200] sm:$0xf]
  %v154 = vld [vmem:[%s1 + $0x204] sm:$0xf]
  %v155 = vld [vmem:[%s1 + $0x208] sm:$0xf]
  %v156 = vld [vmem:[%s1 + $0x20c] sm:$0xf]
  %v157 = vld [vmem:[%s1 + $0x210] sm:$0xf]
  %v158 = vld [vmem:[%s1 + $0x214] sm:$0xf]
  %v159 = vld [vmem:[%s1 + $0x218] sm:$0xf]
  %v160 = vld [vmem:[%s1 + $0x21c] sm:$0xf]
  %v161 = vld [vmem:[%s1 + $0x220] sm:$0xf]
  %v162 = vld [vmem:[%s1 + $0x224] sm:$0xf]
  %v163 = vld [vmem:[%s1 + $0x228] sm:$0xf]
  %v164 = vld [vmem:[%s1 + $0x22c] sm:$0xf]
  %v165 = vld [vmem:[%s1 + $0x230] sm:$0xf]
  %v166 = vld [vmem:[%s1 + $0x234] sm:$0xf]
  %v167 = vld [vmem:[%s1 + $0x238] sm:$0xf]
  %v168 = vld [vmem:[%s1 + $0x23c] sm:$0xf]
  %v169 = vld [vmem:[%s2] sm:$0x1]
  %v171 = vlaneseq
  %v172 = vshrl.u32 %v171, 7
  %v173 = vsub.s32 0, %v172
  %v174 = vrot.slane %v169, %v173
  %v186 = vunpack.c.l.b16 %v15
  %v187 = vunpack.c.h.b16 %v15
  %v188 = vunpack.c.l.b16 %v16
  %v189 = vunpack.c.h.b16 %v16
  %v190 = vunpack.c.l.b16 %v17
  %v191 = vunpack.c.h.b16 %v17
  %v192 = vunpack.c.l.b16 %v18
  %v193 = vunpack.c.h.b16 %v18
  %v194 = vunpack.c.l.b16 %v19
  %v195 = vunpack.c.l.b16 %v20
  %v196 = vunpack.c.h.b16 %v20
  %v197 = vunpack.c.l.b16 %v21
  %v198 = vunpack.c.h.b16 %v21
  %v199 = vunpack.c.l.b16 %v22
  %v200 = vunpack.c.h.b16 %v22
  %v201 = vunpack.c.l.b16 %v23
  %v202 = vunpack.c.h.b16 %v23
  %v203 = vunpack.c.l.b16 %v24
  %v204 = vpack.c.b16 %v195, %v186
  %v205 = vpack.c.b16 %v196, %v187
  %v206 = vpack.c.b16 %v197, %v188
  %v207 = vpack.c.b16 %v198, %v189
  %v208 = vpack.c.b16 %v199, %v190
  %v209 = vpack.c.b16 %v200, %v191
  %v210 = vpack.c.b16 %v201, %v192
  %v211 = vpack.c.b16 %v202, %v193
  %v212 = vpack.c.b16 %v203, %v194
  %v366 = vunpack.c.l.b16 %v25
  %v367 = vunpack.c.l.b16 %v26
  %v368 = vunpack.c.l.b16 %v27
  %v369 = vunpack.c.l.b16 %v28
  %v370 = vunpack.c.l.b16 %v29
  %v371 = vunpack.c.l.b16 %v30
  %v372 = vunpack.c.l.b16 %v31
  %v373 = vunpack.c.l.b16 %v32
  %v374 = vunpack.c.l.b16 %v33
  %v375 = vunpack.c.l.b16 %v34
  %v376 = vunpack.c.l.b16 %v35
  %v377 = vunpack.c.l.b16 %v36
  %v378 = vunpack.c.l.b16 %v37
  %v379 = vunpack.c.l.b16 %v38
  %v380 = vunpack.c.l.b16 %v39
  %v381 = vunpack.c.l.b16 %v40
  %v382 = vunpack.c.l.b16 %v41
  %v383 = vunpack.c.l.b16 %v42
  %v384 = vunpack.c.l.b16 %v43
  %v385 = vunpack.c.l.b16 %v44
  %v386 = vunpack.c.l.b16 %v45
  %v387 = vunpack.c.l.b16 %v46
  %v388 = vunpack.c.l.b16 %v47
  %v389 = vunpack.c.l.b16 %v48
  %v390 = vunpack.c.l.b16 %v49
  %v391 = vunpack.c.l.b16 %v50
  %v392 = vunpack.c.l.b16 %v51
  %v393 = vunpack.c.l.b16 %v52
  %v394 = vunpack.c.l.b16 %v53
  %v395 = vunpack.c.l.b16 %v54
  %v396 = vunpack.c.l.b16 %v55
  %v397 = vunpack.c.l.b16 %v56
  %v398 = vunpack.c.l.b16 %v57
  %v399 = vunpack.c.l.b16 %v58
  %v400 = vunpack.c.l.b16 %v59
  %v401 = vunpack.c.l.b16 %v60
  %v402 = vunpack.c.l.b16 %v61
  %v403 = vunpack.c.l.b16 %v62
  %v404 = vunpack.c.l.b16 %v63
  %v405 = vunpack.c.l.b16 %v64
  %v406 = vunpack.c.l.b16 %v65
  %v407 = vunpack.c.l.b16 %v66
  %v408 = vunpack.c.l.b16 %v67
  %v409 = vunpack.c.l.b16 %v68
  %v410 = vunpack.c.l.b16 %v69
  %v411 = vunpack.c.l.b16 %v70
  %v412 = vunpack.c.l.b16 %v71
  %v413 = vunpack.c.l.b16 %v72
  %v414 = vunpack.c.l.b16 %v73
  %v415 = vunpack.c.l.b16 %v74
  %v416 = vunpack.c.l.b16 %v75
  %v417 = vunpack.c.l.b16 %v76
  %v418 = vunpack.c.l.b16 %v77
  %v419 = vunpack.c.l.b16 %v78
  %v420 = vunpack.c.l.b16 %v79
  %v421 = vunpack.c.l.b16 %v80
  %v422 = vunpack.c.l.b16 %v81
  %v423 = vunpack.c.l.b16 %v82
  %v424 = vunpack.c.l.b16 %v83
  %v425 = vunpack.c.l.b16 %v84
  %v426 = vunpack.c.l.b16 %v85
  %v427 = vunpack.c.l.b16 %v86
  %v428 = vunpack.c.l.b16 %v87
  %v429 = vunpack.c.l.b16 %v88
  %v430 = vunpack.c.l.b16 %v89
  %v431 = vunpack.c.l.b16 %v90
  %v432 = vunpack.c.l.b16 %v91
  %v433 = vunpack.c.l.b16 %v92
  %v434 = vunpack.c.l.b16 %v93
  %v435 = vunpack.c.l.b16 %v94
  %v436 = vunpack.c.l.b16 %v95
  %v437 = vunpack.c.l.b16 %v96
  %v438 = vunpack.c.l.b16 %v97
  %v439 = vunpack.c.l.b16 %v98
  %v440 = vunpack.c.l.b16 %v99
  %v441 = vunpack.c.l.b16 %v100
  %v442 = vunpack.c.l.b16 %v101
  %v443 = vunpack.c.l.b16 %v102
  %v444 = vunpack.c.l.b16 %v103
  %v445 = vunpack.c.l.b16 %v104
  %v446 = vunpack.c.l.b16 %v105
  %v447 = vunpack.c.l.b16 %v106
  %v448 = vunpack.c.l.b16 %v107
  %v449 = vunpack.c.l.b16 %v108
  %v450 = vunpack.c.l.b16 %v109
  %v451 = vunpack.c.l.b16 %v110
  %v452 = vunpack.c.l.b16 %v111
  %v453 = vunpack.c.l.b16 %v112
  %v454 = vunpack.c.l.b16 %v113
  %v455 = vunpack.c.l.b16 %v114
  %v456 = vunpack.c.l.b16 %v115
  %v457 = vunpack.c.l.b16 %v116
  %v458 = vunpack.c.l.b16 %v117
  %v459 = vunpack.c.l.b16 %v118
  %v460 = vunpack.c.l.b16 %v119
  %v461 = vunpack.c.l.b16 %v120
  %v462 = vunpack.c.l.b16 %v121
  %v463 = vunpack.c.l.b16 %v122
  %v464 = vunpack.c.l.b16 %v123
  %v465 = vunpack.c.l.b16 %v124
  %v466 = vunpack.c.l.b16 %v125
  %v467 = vunpack.c.l.b16 %v126
  %v468 = vunpack.c.l.b16 %v127
  %v469 = vunpack.c.l.b16 %v128
  %v470 = vunpack.c.l.b16 %v129
  %v471 = vunpack.c.l.b16 %v130
  %v472 = vunpack.c.l.b16 %v131
  %v473 = vunpack.c.l.b16 %v132
  %v474 = vunpack.c.l.b16 %v133
  %v475 = vunpack.c.l.b16 %v134
  %v476 = vunpack.c.l.b16 %v135
  %v477 = vunpack.c.l.b16 %v136
  %v478 = vunpack.c.l.b16 %v137
  %v479 = vunpack.c.l.b16 %v138
  %v480 = vunpack.c.l.b16 %v139
  %v481 = vunpack.c.l.b16 %v140
  %v482 = vunpack.c.l.b16 %v141
  %v483 = vunpack.c.l.b16 %v142
  %v484 = vunpack.c.l.b16 %v143
  %v485 = vunpack.c.l.b16 %v144
  %v486 = vunpack.c.l.b16 %v145
  %v487 = vunpack.c.l.b16 %v146
  %v488 = vunpack.c.l.b16 %v147
  %v489 = vunpack.c.l.b16 %v148
  %v490 = vunpack.c.l.b16 %v149
  %v491 = vunpack.c.l.b16 %v150
  %v492 = vunpack.c.l.b16 %v151
  %v493 = vunpack.c.l.b16 %v152
  %v494 = vunpack.c.l.b16 %v153
  %v495 = vunpack.c.l.b16 %v154
  %v496 = vunpack.c.l.b16 %v155
  %v497 = vunpack.c.l.b16 %v156
  %v498 = vunpack.c.l.b16 %v157
  %v499 = vunpack.c.l.b16 %v158
  %v500 = vunpack.c.l.b16 %v159
  %v501 = vunpack.c.l.b16 %v160
  %v502 = vunpack.c.l.b16 %v161
  %v503 = vunpack.c.l.b16 %v162
  %v504 = vunpack.c.l.b16 %v163
  %v505 = vunpack.c.l.b16 %v164
  %v506 = vunpack.c.l.b16 %v165
  %v507 = vunpack.c.l.b16 %v166
  %v508 = vunpack.c.l.b16 %v167
  %v509 = vunpack.c.l.b16 %v168
  %v510 = vpack.c.b16 %v367, %v366
  %v511 = vpack.c.b16 %v369, %v368
  %v512 = vpack.c.b16 %v371, %v370
  %v513 = vpack.c.b16 %v373, %v372
  %v514 = vpack.c.b16 %v375, %v374
  %v515 = vpack.c.b16 %v377, %v376
  %v516 = vpack.c.b16 %v379, %v378
  %v517 = vpack.c.b16 %v381, %v380
  %v518 = vpack.c.b16 %v383, %v382
  %v519 = vpack.c.b16 %v385, %v384
  %v520 = vpack.c.b16 %v387, %v386
  %v521 = vpack.c.b16 %v389, %v388
  %v522 = vpack.c.b16 %v391, %v390
  %v523 = vpack.c.b16 %v393, %v392
  %v524 = vpack.c.b16 %v395, %v394
  %v525 = vpack.c.b16 %v397, %v396
  %v526 = vpack.c.b16 %v399, %v398
  %v527 = vpack.c.b16 %v401, %v400
  %v528 = vpack.c.b16 %v403, %v402
  %v529 = vpack.c.b16 %v405, %v404
  %v530 = vpack.c.b16 %v407, %v406
  %v531 = vpack.c.b16 %v409, %v408
  %v532 = vpack.c.b16 %v411, %v410
  %v533 = vpack.c.b16 %v413, %v412
  %v534 = vpack.c.b16 %v415, %v414
  %v535 = vpack.c.b16 %v417, %v416
  %v536 = vpack.c.b16 %v419, %v418
  %v537 = vpack.c.b16 %v421, %v420
  %v538 = vpack.c.b16 %v423, %v422
  %v539 = vpack.c.b16 %v425, %v424
  %v540 = vpack.c.b16 %v427, %v426
  %v541 = vpack.c.b16 %v429, %v428
  %v542 = vpack.c.b16 %v431, %v430
  %v543 = vpack.c.b16 %v433, %v432
  %v544 = vpack.c.b16 %v435, %v434
  %v545 = vpack.c.b16 %v437, %v436
  %v546 = vpack.c.b16 %v439, %v438
  %v547 = vpack.c.b16 %v441, %v440
  %v548 = vpack.c.b16 %v443, %v442
  %v549 = vpack.c.b16 %v445, %v444
  %v550 = vpack.c.b16 %v447, %v446
  %v551 = vpack.c.b16 %v449, %v448
  %v552 = vpack.c.b16 %v451, %v450
  %v553 = vpack.c.b16 %v453, %v452
  %v554 = vpack.c.b16 %v455, %v454
  %v555 = vpack.c.b16 %v457, %v456
  %v556 = vpack.c.b16 %v459, %v458
  %v557 = vpack.c.b16 %v461, %v460
  %v558 = vpack.c.b16 %v463, %v462
  %v559 = vpack.c.b16 %v465, %v464
  %v560 = vpack.c.b16 %v467, %v466
  %v561 = vpack.c.b16 %v469, %v468
  %v562 = vpack.c.b16 %v471, %v470
  %v563 = vpack.c.b16 %v473, %v472
  %v564 = vpack.c.b16 %v475, %v474
  %v565 = vpack.c.b16 %v477, %v476
  %v566 = vpack.c.b16 %v479, %v478
  %v567 = vpack.c.b16 %v481, %v480
  %v568 = vpack.c.b16 %v483, %v482
  %v569 = vpack.c.b16 %v485, %v484
  %v570 = vpack.c.b16 %v487, %v486
  %v571 = vpack.c.b16 %v489, %v488
  %v572 = vpack.c.b16 %v491, %v490
  %v573 = vpack.c.b16 %v493, %v492
  %v574 = vpack.c.b16 %v495, %v494
  %v575 = vpack.c.b16 %v497, %v496
  %v576 = vpack.c.b16 %v499, %v498
  %v577 = vpack.c.b16 %v501, %v500
  %v578 = vpack.c.b16 %v503, %v502
  %v579 = vpack.c.b16 %v505, %v504
  %v580 = vpack.c.b16 %v507, %v506
  %v581 = vpack.c.b16 %v509, %v508
  %654 = vmatprep.subr.bf16.mxu0 0
  %655 = vmatpush1.bf16.msra.mxu0 %v510
  %656 = vmatprep.subr.bf16.mxu0 0
  %657 = vmatpush1.bf16.msra.mxu0 %v511
  %658 = vmatprep.subr.bf16.mxu0 0
  %659 = vmatpush1.bf16.msra.mxu0 %v512
  %660 = vmatprep.subr.bf16.mxu0 0
  %661 = vmatpush1.bf16.msra.mxu0 %v513
  %662 = vmatprep.subr.bf16.mxu0 0
  %663 = vmatpush1.bf16.msra.mxu0 %v514
  %664 = vmatprep.subr.bf16.mxu0 0
  %665 = vmatpush1.bf16.msra.mxu0 %v515
  %666 = vmatprep.subr.bf16.mxu0 0
  %667 = vmatpush1.bf16.msra.mxu0 %v516
  %668 = vmatprep.subr.bf16.mxu0 0
  %669 = vmatpush1.bf16.msra.mxu0 %v517
  %670 = vmatprep.subr.bf16.mxu0 0
  %671 = vmatpush1.bf16.msra.mxu0 %v518
  %672 = vmatprep.subr.bf16.mxu0 0
  %673 = vmatpush1.bf16.msra.mxu0 %v519
  %674 = vmatprep.subr.bf16.mxu0 0
  %675 = vmatpush1.bf16.msra.mxu0 %v520
  %676 = vmatprep.subr.bf16.mxu0 0
  %677 = vmatpush1.bf16.msra.mxu0 %v521
  %678 = vmatprep.subr.bf16.mxu0 0
  %679 = vmatpush1.bf16.msra.mxu0 %v522
  %680 = vmatprep.subr.bf16.mxu0 0
  %681 = vmatpush1.bf16.msra.mxu0 %v523
  %682 = vmatprep.subr.bf16.mxu0 0
  %683 = vmatpush1.bf16.msra.mxu0 %v524
  %684 = vmatprep.subr.bf16.mxu0 0
  %685 = vmatpush1.bf16.msra.mxu0 %v525
  %686 = vmatprep.mubr.bf16.mxu0 %v205
  %687 = vmatmul.mubr.bf16.gmra.mrb[0].mxu0 %v204
  %v688 = vpop.f32.mrb[0].mxu0
  %v689 = vadd.f32 %v174, %v688
  %v690 = vpop.f32.mrb[0].mxu0
  %v691 = vpop.f32.mrb[0].mxu0
  %v692 = vadd.f32 %v174, %v691
  %v693 = vpop.f32.mrb[0].mxu0
  %694 = vdwg.mxu0
  %695 = vmatprep.subr.bf16.mxu0 0
  %696 = vmatpush1.bf16.msra.mxu0 %v526
  %697 = vmatprep.subr.bf16.mxu0 0
  %698 = vmatpush1.bf16.msra.mxu0 %v527
  %699 = vmatprep.subr.bf16.mxu0 0
  %700 = vmatpush1.bf16.msra.mxu0 %v528
  %701 = vmatprep.subr.bf16.mxu0 0
  %702 = vmatpush1.bf16.msra.mxu0 %v529
  %703 = vmatprep.subr.bf16.mxu0 0
  %704 = vmatpush1.bf16.msra.mxu0 %v530
  %705 = vmatprep.subr.bf16.mxu0 0
  %706 = vmatpush1.bf16.msra.mxu0 %v531
  %707 = vmatprep.subr.bf16.mxu0 0
  %708 = vmatpush1.bf16.msra.mxu0 %v532
  %709 = vmatprep.subr.bf16.mxu0 0
  %710 = vmatpush1.bf16.msra.mxu0 %v533
  %711 = vmatprep.subr.bf16.mxu0 0
  %712 = vmatpush1.bf16.msra.mxu0 %v534
  %713 = vmatprep.subr.bf16.mxu0 0
  %714 = vmatpush1.bf16.msra.mxu0 %v535
  %715 = vmatprep.subr.bf16.mxu0 0
  %716 = vmatpush1.bf16.msra.mxu0 %v536
  %717 = vmatprep.subr.bf16.mxu0 0
  %718 = vmatpush1.bf16.msra.mxu0 %v537
  %719 = vmatprep.subr.bf16.mxu0 0
  %720 = vmatpush1.bf16.msra.mxu0 %v538
  %721 = vmatprep.subr.bf16.mxu0 0
  %722 = vmatpush1.bf16.msra.mxu0 %v539
  %723 = vmatprep.subr.bf16.mxu0 0
  %724 = vmatpush1.bf16.msra.mxu0 %v540
  %725 = vmatprep.subr.bf16.mxu0 0
  %726 = vmatpush1.bf16.msra.mxu0 %v541
  %727 = vmatprep.mubr.bf16.mxu0 %v207
  %728 = vmatmul.mubr.bf16.gmra.mrb[0].mxu0 %v206
  %v729 = vpop.f32.mrb[0].mxu0
  %v730 = vadd.f32 %v689, %v729
  %v731 = vpop.f32.mrb[0].mxu0
  %v732 = vpop.f32.mrb[0].mxu0
  %v733 = vadd.f32 %v692, %v732
  %v734 = vpop.f32.mrb[0].mxu0
  %735 = vdwg.mxu0
  %736 = vmatprep.subr.bf16.mxu0 0
  %737 = vmatpush1.bf16.msra.mxu0 %v542
  %738 = vmatprep.subr.bf16.mxu0 0
  %739 = vmatpush1.bf16.msra.mxu0 %v543
  %740 = vmatprep.subr.bf16.mxu0 0
  %741 = vmatpush1.bf16.msra.mxu0 %v544
  %742 = vmatprep.subr.bf16.mxu0 0
  %743 = vmatpush1.bf16.msra.mxu0 %v545
  %744 = vmatprep.subr.bf16.mxu0 0
  %745 = vmatpush1.bf16.msra.mxu0 %v546
  %746 = vmatprep.subr.bf16.mxu0 0
  %747 = vmatpush1.bf16.msra.mxu0 %v547
  %748 = vmatprep.subr.bf16.mxu0 0
  %749 = vmatpush1.bf16.msra.mxu0 %v548
  %750 = vmatprep.subr.bf16.mxu0 0
  %751 = vmatpush1.bf16.msra.mxu0 %v549
  %752 = vmatprep.subr.bf16.mxu0 0
  %753 = vmatpush1.bf16.msra.mxu0 %v550
  %754 = vmatprep.subr.bf16.mxu0 0
  %755 = vmatpush1.bf16.msra.mxu0 %v551
  %756 = vmatprep.subr.bf16.mxu0 0
  %757 = vmatpush1.bf16.msra.mxu0 %v552
  %758 = vmatprep.subr.bf16.mxu0 0
  %759 = vmatpush1.bf16.msra.mxu0 %v553
  %760 = vmatprep.subr.bf16.mxu0 0
  %761 = vmatpush1.bf16.msra.mxu0 %v554
  %762 = vmatprep.subr.bf16.mxu0 0
  %763 = vmatpush1.bf16.msra.mxu0 %v555
  %764 = vmatprep.subr.bf16.mxu0 0
  %765 = vmatpush1.bf16.msra.mxu0 %v556
  %766 = vmatprep.subr.bf16.mxu0 0
  %767 = vmatpush1.bf16.msra.mxu0 %v557
  %768 = vmatprep.mubr.bf16.mxu0 %v209
  %769 = vmatmul.mubr.bf16.gmra.mrb[0].mxu0 %v208
  %v770 = vpop.f32.mrb[0].mxu0
  %v771 = vadd.f32 %v730, %v770
  %v772 = vpop.f32.mrb[0].mxu0
  %v773 = vpop.f32.mrb[0].mxu0
  %v774 = vadd.f32 %v733, %v773
  %v775 = vpop.f32.mrb[0].mxu0
  %776 = vdwg.mxu0
  %777 = vmatprep.subr.bf16.mxu0 0
  %778 = vmatpush1.bf16.msra.mxu0 %v558
  %779 = vmatprep.subr.bf16.mxu0 0
  %780 = vmatpush1.bf16.msra.mxu0 %v559
  %781 = vmatprep.subr.bf16.mxu0 0
  %782 = vmatpush1.bf16.msra.mxu0 %v560
  %783 = vmatprep.subr.bf16.mxu0 0
  %784 = vmatpush1.bf16.msra.mxu0 %v561
  %785 = vmatprep.subr.bf16.mxu0 0
  %786 = vmatpush1.bf16.msra.mxu0 %v562
  %787 = vmatprep.subr.bf16.mxu0 0
  %788 = vmatpush1.bf16.msra.mxu0 %v563
  %789 = vmatprep.subr.bf16.mxu0 0
  %790 = vmatpush1.bf16.msra.mxu0 %v564
  %791 = vmatprep.subr.bf16.mxu0 0
  %792 = vmatpush1.bf16.msra.mxu0 %v565
  %793 = vmatprep.subr.bf16.mxu0 0
  %794 = vmatpush1.bf16.msra.mxu0 %v566
  %795 = vmatprep.subr.bf16.mxu0 0
  %796 = vmatpush1.bf16.msra.mxu0 %v567
  %797 = vmatprep.subr.bf16.mxu0 0
  %798 = vmatpush1.bf16.msra.mxu0 %v568
  %799 = vmatprep.subr.bf16.mxu0 0
  %800 = vmatpush1.bf16.msra.mxu0 %v569
  %801 = vmatprep.subr.bf16.mxu0 0
  %802 = vmatpush1.bf16.msra.mxu0 %v570
  %803 = vmatprep.subr.bf16.mxu0 0
  %804 = vmatpush1.bf16.msra.mxu0 %v571
  %805 = vmatprep.subr.bf16.mxu0 0
  %806 = vmatpush1.bf16.msra.mxu0 %v572
  %807 = vmatprep.subr.bf16.mxu0 0
  %808 = vmatpush1.bf16.msra.mxu0 %v573
  %809 = vmatprep.mubr.bf16.mxu0 %v211
  %810 = vmatmul.mubr.bf16.gmra.mrb[0].mxu0 %v210
  %v811 = vpop.f32.mrb[0].mxu0
  %v812 = vadd.f32 %v771, %v811
  %v813 = vpop.f32.mrb[0].mxu0
  %v814 = vpop.f32.mrb[0].mxu0
  %v815 = vadd.f32 %v774, %v814
  %v816 = vpop.f32.mrb[0].mxu0
  %817 = vdwg.mxu0
  %818 = vmatprep.subr.bf16.mxu0 0
  %819 = vmatpush1.bf16.msra.mxu0 %v574
  %820 = vmatprep.subr.bf16.mxu0 0
  %821 = vmatpush1.bf16.msra.mxu0 %v575
  %822 = vmatprep.subr.bf16.mxu0 0
  %823 = vmatpush1.bf16.msra.mxu0 %v576
  %824 = vmatprep.subr.bf16.mxu0 0
  %825 = vmatpush1.bf16.msra.mxu0 %v577
  %826 = vmatprep.subr.bf16.mxu0 0
  %827 = vmatpush1.bf16.msra.mxu0 %v578
  %828 = vmatprep.subr.bf16.mxu0 0
  %829 = vmatpush1.bf16.msra.mxu0 %v579
  %830 = vmatprep.subr.bf16.mxu0 0
  %831 = vmatpush1.bf16.msra.mxu0 %v580
  %832 = vmatprep.subr.bf16.mxu0 0
  %833 = vmatpush1.bf16.msra.mxu0 %v581
  %834 = vmatprep.subr.bf16.mxu0 0
  %835 = vmatpush1.bf16.msra.mxu0 0
  %836 = vmatprep.subr.bf16.mxu0 0
  %837 = vmatpush1.bf16.msra.mxu0 0
  %838 = vmatprep.subr.bf16.mxu0 0
  %839 = vmatpush1.bf16.msra.mxu0 0
  %840 = vmatprep.subr.bf16.mxu0 0
  %841 = vmatpush1.bf16.msra.mxu0 0
  %842 = vmatprep.subr.bf16.mxu0 0
  %843 = vmatpush1.bf16.msra.mxu0 0
  %844 = vmatprep.subr.bf16.mxu0 0
  %845 = vmatpush1.bf16.msra.mxu0 0
  %846 = vmatprep.subr.bf16.mxu0 0
  %847 = vmatpush1.bf16.msra.mxu0 0
  %848 = vmatprep.subr.bf16.mxu0 0
  %849 = vmatpush1.bf16.msra.mxu0 0
  %850 = vmatprep.mubr.bf16.mxu0 0
  %851 = vmatmul.mubr.bf16.gmra.mrb[0].mxu0 %v212
  %v852 = vpop.f32.mrb[0].mxu0
  %v853 = vadd.f32 %v812, %v852
  %v854 = vpop.f32.mrb[0].mxu0
  %v855 = vpop.f32.mrb[0].mxu0
  %v856 = vadd.f32 %v815, %v855
  %v857 = vpop.f32.mrb[0].mxu0
  %858 = vdwg.mxu0
  %v859 = vmax.f32 %v853, 0.0
  %v860 = vmax.f32 %v856, 0.0
  %v861 = vpack.c.bf16 %v860, %v859
  %v863 = vunpack.c.l.b16 %v861
  %v864 = vunpack.c.h.b16 %v861
  %v865 = vpack.c.b16 %v863, %v863
  %v866 = vpack.c.b16 %v864, %v864
  %869 = vst [vmem:[%s3] sm:$0xf] %v865
  %870 = vst [vmem:[%s3 + $0x4] sm:$0xf] %v866
  // Predicated region
  $region14: #{repvgg_forward.10} parent=0 // pred_check
    _
  $region15: #{repvgg_forward.10} parent=0 // pred_check_branch
    %872 = sbr.rel (0) target = $region17
  $region16: #{repvgg_forward.10} parent=0 // pred_region
    _
  $region17: #{repvgg_forward.10} parent=0 // pred_fallthru
    _
  // Predicated region
  $region18: #{repvgg_forward.10} parent=0 // pred_check
    _
  $region19: #{repvgg_forward.10} parent=0 // pred_check_branch
    %874 = sbr.rel (0) target = $region21
  $region20: #{repvgg_forward.10} parent=0 // pred_region
    _
  $region21: #{repvgg_forward.10} parent=0 // pred_fallthru
    _

</llo_original>
